<compile_context>
chip_gen: v7x
topology: tpu7x:2x2x1
jax: 0.10.0
libtpu: 0.0.40
codegen_flags: <defaults>
</compile_context>

<pallas_src>
import functools

import jax
import jax.numpy as jnp
import numpy as np
from jax.experimental import pallas as pl
from jax.experimental.pallas import tpu as pltpu


def _round_up(x, m):
    return ((x + m - 1) // m) * m


def _vmem_budget_bytes():
    """Generation-aware scoped-VMEM budget: ~48 MiB on v7x (64 MiB/TC), ~96 MiB on v5e/v6e."""
    cap = 64 << 20
    try:
        cap = int(getattr(pltpu.get_tpu_info(), "vmem_capacity_bytes", cap))
    except Exception:
        pass
    return int(min(cap * 3 // 4, cap - (16 << 20)))


def _choose_prop_tiles(n_pad, dp, budget):
    """Rectangular G tiles: TM on sublanes, TK (lane axis of G) as large as possible."""
    tm = 128
    for cand in (512, 256, 128):
        if n_pad % cand == 0:
            tm = cand
            break
    tk = 128
    for cand in (4096, 2048, 1024, 512, 256, 128):
        # Double-buffered bf16 G tiles must stay a small fraction of the budget.
        if n_pad % cand == 0 and 2 * (tm * cand * 2) <= budget // 4:
            tk = cand
            break
    # Keep E_cur fully VMEM-resident when it comfortably fits; else stream K tiles.
    e_resident = (n_pad * dp * 2) <= budget // 3
    return tm, tk, e_resident


# ---------------------------------------------------------------------------
# Kernel 1: one propagation layer  E_next = G @ E_cur  (+ fused acc += w*E_next)
# ---------------------------------------------------------------------------
def _propagate_layer_kernel(ktile_idx_ref, ktile_count_ref, acc_in_ref, g_ref,
                            e_ref, acc_out_ref, *rest, w_k, tk, e_resident,
                            produce_e_next):
    if produce_e_next:
        e_next_ref, mm_ref = rest
    else:
        (mm_ref,) = rest
        e_next_ref = None

    i = pl.program_id(0)
    kk = pl.program_id(1)

    @pl.when(kk == 0)
    def _init():
        mm_ref[...] = jnp.zeros_like(mm_ref)

    # Only real (non-zero) K tiles contribute. Padded steps repeat the previous
    # tile index (so the Pallas pipeline skips their DMA) and are masked here.
    @pl.when(kk < ktile_count_ref[i])
    def _accumulate():
        if e_resident:
            kt = ktile_idx_ref[i * pl.num_programs(1) + kk]
            start = pl.multiple_of(kt * tk, tk)
            e_blk = e_ref[pl.ds(start, tk), :]          # slice resident E_cur
        else:
            e_blk = e_ref[...]                           # streamed (tk, dp) tile
        mm_ref[...] += jnp.dot(g_ref[...], e_blk,
                               preferred_element_type=jnp.float32)

    @pl.when(kk == pl.num_programs(1) - 1)
    def _finalize():
        # Fused exponential-smoothing layer combination (free VPU work).
        acc_out_ref[...] = acc_in_ref[...] + w_k * mm_ref[...]
        if produce_e_next:
            e_next_ref[...] = mm_ref[...].astype(e_next_ref.dtype)


def _propagate_layer(ktile_idx, ktile_count, graph_bf16, e_cur, acc, w_k, *,
                     tm, tk, max_k, e_resident, produce_e_next, vmem_limit):
    n_pad, dp = acc.shape
    grid = (n_pad // tm, max_k)

    row_spec = pl.BlockSpec((tm, dp), lambda i, kk, kt, kc: (i, 0))
    g_spec = pl.BlockSpec((tm, tk),
                          lambda i, kk, kt, kc: (i, kt[i * max_k + kk]))
    if e_resident:
        e_spec = pl.BlockSpec((n_pad, dp), lambda i, kk, kt, kc: (0, 0))
    else:
        e_spec = pl.BlockSpec((tk, dp),
                              lambda i, kk, kt, kc: (kt[i * max_k + kk], 0))

    if produce_e_next:
        out_shape = (jax.ShapeDtypeStruct((n_pad, dp), jnp.float32),
                     jax.ShapeDtypeStruct((n_pad, dp), jnp.bfloat16))
        out_specs = (row_spec, row_spec)
    else:  # last layer: E_next is dead, skip its HBM writeback entirely
        out_shape = jax.ShapeDtypeStruct((n_pad, dp), jnp.float32)
        out_specs = row_spec

    kernel = functools.partial(_propagate_layer_kernel, w_k=float(w_k), tk=tk,
                               e_resident=e_resident,
                               produce_e_next=produce_e_next)
    return pl.pallas_call(
        kernel,
        out_shape=out_shape,
        grid_spec=pltpu.PrefetchScalarGridSpec(
            num_scalar_prefetch=2,           # tile-index table + per-row counts
            grid=grid,
            in_specs=[row_spec, g_spec, e_spec],
            out_specs=out_specs,
            scratch_shapes=[pltpu.VMEM((tm, dp), jnp.float32)],
        ),
        compiler_params=pltpu.CompilerParams(
            dimension_semantics=("parallel", "arbitrary"),
            vmem_limit_bytes=int(vmem_limit)),
    )(ktile_idx, ktile_count, acc, graph_bf16, e_cur)


@functools.partial(jax.jit, static_argnames=("weights", "tm", "tk", "max_k",
                                             "e_resident", "vmem_limit"))
def _compute_light_out(graph_bf16, ktile_idx, ktile_count, emb0, *, weights,
                       tm, tk, max_k, e_resident, vmem_limit):
    """light_out = sum_k w_k E_k with E_{k+1} = G @ E_k (padded, lane-dense)."""
    acc = weights[0] * emb0                 # f32 E_0 contribution
    e_cur = emb0.astype(jnp.bfloat16)       # bf16 MXU operand
    n_layers = len(weights) - 1
    for layer in range(n_layers):
        last = layer == n_layers - 1
        if last:
            acc = _propagate_layer(ktile_idx, ktile_count, graph_bf16, e_cur,
                                   acc, weights[layer + 1], tm=tm, tk=tk,
                                   max_k=max_k, e_resident=e_resident,
                                   produce_e_next=False, vmem_limit=vmem_limit)
        else:
            acc, e_cur = _propagate_layer(ktile_idx, ktile_count, graph_bf16,
                                          e_cur, acc, weights[layer + 1],
                                          tm=tm, tk=tk, max_k=max_k,
                                          e_resident=e_resident,
                                          produce_e_next=True,
                                          vmem_limit=vmem_limit)
    return acc


# ---------------------------------------------------------------------------
# Kernel 2: fused gather + scoring, 128 pairs per grid step
# ---------------------------------------------------------------------------
_SCORE_TB = 128


def _score_kernel(u_rows_ref, i_rows_ref, emb_ref, out_ref, u_buf, i_buf):
    b = pl.program_id(0)

    def gather(j, carry):
        u_row = u_rows_ref[b * _SCORE_TB + j]
        i_row = i_rows_ref[b * _SCORE_TB + j]
        u_buf[pl.ds(j, 1), :] = emb_ref[pl.ds(u_row, 1), :]
        i_buf[pl.ds(j, 1), :] = emb_ref[pl.ds(i_row, 1), :]
        return carry

    jax.lax.fori_loop(0, _SCORE_TB, gather, 0, unroll=8)

    prod_t = (u_buf[...] * i_buf[...]).T                       # (dp, TB) transpose
    out_ref[...] = jnp.sum(prod_t, axis=0, keepdims=True)      # lane-dense (1, TB)


@jax.jit
def _score_pairs(light_out, user_rows, item_rows):
    batch = user_rows.shape[0]
    n_pad, dp = light_out.shape
    b_pad = _round_up(batch, _SCORE_TB)
    u = jnp.zeros((b_pad,), jnp.int32).at[:batch].set(user_rows)
    it = jnp.zeros((b_pad,), jnp.int32).at[:batch].set(item_rows)
    # TODO(synk): for graphs where light_out exceeds VMEM, switch the gather to
    # manual make_async_copy row DMAs from an HBM-resident (pl.ANY) light_out.
    out = pl.pallas_call(
        _score_kernel,
        out_shape=jax.ShapeDtypeStruct((1, b_pad), jnp.float32),
        grid_spec=pltpu.PrefetchScalarGridSpec(
            num_scalar_prefetch=2,              # user rows + item rows in SMEM
            grid=(b_pad // _SCORE_TB,),
            in_specs=[pl.BlockSpec((n_pad, dp), lambda b, ur, ir: (0, 0))],
            out_specs=pl.BlockSpec((1, _SCORE_TB), lambda b, ur, ir: (0, b)),
            scratch_shapes=[pltpu.VMEM((_SCORE_TB, dp), jnp.float32),
                            pltpu.VMEM((_SCORE_TB, dp), jnp.float32)],
        ),
        compiler_params=pltpu.CompilerParams(
            dimension_semantics=("parallel",)),
    )(u, it, light_out)
    return out[0, :batch]


# ---------------------------------------------------------------------------
# LightGCN module (JAX/Pallas version of the PyTorch forward pass).
# ---------------------------------------------------------------------------
class LightGCNPallas:
    def __init__(self, num_users, num_items, latent_dim, n_layers, beta, key,
                 density=0.1):
        self.num_users = num_users
        self.num_items = num_items
        self.latent_dim = latent_dim
        self.n_layers = n_layers

        ku, ki, kg = jax.random.split(key, 3)
        # nn.init.normal_(std=0.1)
        self.user_emb = 0.1 * jax.random.normal(ku, (num_users, latent_dim), jnp.float32)
        self.item_emb = 0.1 * jax.random.normal(ki, (num_items, latent_dim), jnp.float32)

        # Synthetic symmetric-normalized bipartite adjacency built on the host
        # (numpy) as a stand-in for dataset.getSparseGraph(). Only the bf16
        # operand is uploaded to HBM; the f32 copy never leaves the host.
        n = num_users + num_items
        R = np.asarray(jax.random.uniform(kg, (num_users, num_items)) < density,
                       dtype=np.float32)
        A = np.zeros((n, n), np.float32)
        A[:num_users, num_users:] = R
        A[num_users:, :num_users] = R.T
        deg = A.sum(axis=1)
        d_inv_sqrt = np.where(deg > 0, 1.0 / np.sqrt(np.maximum(deg, 1e-12)),
                              0.0).astype(np.float32)
        self.graph_np = A * d_inv_sqrt[:, None] * d_inv_sqrt[None, :]

        # Exponential-smoothing layer weights (static Python floats).
        w = np.array([(1.0 - beta) ** k for k in range(n_layers + 1)], np.float64)
        self.weights = tuple((w / w.sum()).astype(np.float32).tolist())

        # Padded, lane-dense kernel operands + generation-aware tiling.
        self.dp = _round_up(latent_dim, 128)
        self.n_pad = _round_up(n, 128)
        self.vmem_limit = _vmem_budget_bytes()
        self.tm, self.tk, self.e_resident = _choose_prop_tiles(
            self.n_pad, self.dp, self.vmem_limit)

        g_pad = np.zeros((self.n_pad, self.n_pad), np.float32)
        g_pad[:n, :n] = self.graph_np
        # TODO(synk): quantize G per-tile to int8 (v5e/v6e) / fp8 (v7x) to halve
        # the dominant HBM stream; bf16 is used here for simplicity/accuracy.
        self.graph_bf16 = jnp.asarray(g_pad, dtype=jnp.bfloat16)

        # Block-sparse tile table: for each row tile, the list of non-zero K
        # tiles (scalar-prefetched). Padded slots repeat the last valid index so
        # the pipeline de-dups their DMA; pl.when masks their compute.
        nrt = self.n_pad // self.tm
        nkt = self.n_pad // self.tk
        nz = np.abs(g_pad).reshape(nrt, self.tm, nkt, self.tk).sum(axis=(1, 3)) > 0
        counts = nz.sum(axis=1).astype(np.int32)
        max_k = int(max(int(counts.max()), 1))
        idx_tbl = np.zeros((nrt, max_k), np.int32)
        for i in range(nrt):
            nzi = np.nonzero(nz[i])[0].astype(np.int32)
            if nzi.size:
                idx_tbl[i, :counts[i]] = nzi
                idx_tbl[i, counts[i]:] = nzi[-1]
        self.max_k = max_k
        self.ktile_idx = jnp.asarray(idx_tbl.reshape(-1))
        self.ktile_count = jnp.asarray(counts)

        emb0 = np.zeros((self.n_pad, self.dp), np.float32)
        emb0[:num_users, :latent_dim] = np.asarray(self.user_emb)
        emb0[num_users:n, :latent_dim] = np.asarray(self.item_emb)
        self.emb0 = jnp.asarray(emb0)

        # light_out cache: embeddings are frozen at inference, so propagation is
        # run once and reused by every forward()/computer() call.
        self._light_out = None

    def _light_out_cached(self):
        if self._light_out is None:
            self._light_out = _compute_light_out(
                self.graph_bf16, self.ktile_idx, self.ktile_count, self.emb0,
                weights=self.weights, tm=self.tm, tk=self.tk, max_k=self.max_k,
                e_resident=self.e_resident, vmem_limit=self.vmem_limit)
        return self._light_out

    def computer(self):
        light_out = self._light_out_cached()
        users_final = light_out[:self.num_users, :self.latent_dim]
        items_final = light_out[self.num_users:self.num_users + self.num_items,
                                :self.latent_dim]
        return users_final, items_final

    def forward(self, users, items):
        light_out = self._light_out_cached()
        user_rows = users.astype(jnp.int32)
        item_rows = (items + self.num_users).astype(jnp.int32)
        return _score_pairs(light_out, user_rows, item_rows)

    # Pure-f32 host reference (mirrors the PyTorch module semantics).
    def forward_ref(self, users, items):
        all_emb = np.concatenate([np.asarray(self.user_emb),
                                  np.asarray(self.item_emb)], axis=0)
        light_out = self.weights[0] * all_emb
        cur = all_emb
        for k in range(self.n_layers):
            cur = self.graph_np @ cur
            light_out = light_out + self.weights[k + 1] * cur
        users_final = light_out[:self.num_users]
        items_final = light_out[self.num_users:]
        u = np.asarray(users)
        it = np.asarray(items)
        return np.sum(users_final[u] * items_final[it], axis=1).astype(np.float32)


if __name__ == "__main__":
    key = jax.random.PRNGKey(0)
    k_model, k_u, k_i = jax.random.split(key, 3)

    # Small demo shapes: 96 users + 288 items -> 384 padded nodes = a 3x3 tile
    # grid whose item-item blocks are all-zero (exercises the block-sparse path).
    num_users, num_items, latent_dim, n_layers, beta = 96, 288, 32, 3, 0.5
    model = LightGCNPallas(num_users, num_items, latent_dim, n_layers, beta, k_model)

    batch = 200
    users = jax.random.randint(k_u, (batch,), 0, num_users, dtype=jnp.int32)
    items = jax.random.randint(k_i, (batch,), 0, num_items, dtype=jnp.int32)

    scores = jax.block_until_ready(model.forward(users, items))
    scores_again = jax.block_until_ready(model.forward(users, items))  # cached light_out
    ref = model.forward_ref(users, items)

    assert scores.shape == (batch,)
    # G and intermediate E_k are bf16 MXU operands (f32 accumulation), so the
    # comparison against the pure-f32 reference uses relaxed tolerances.
    np.testing.assert_allclose(np.asarray(scores), ref, rtol=3e-2, atol=5e-3)
    np.testing.assert_allclose(np.asarray(scores_again), np.asarray(scores),
                               rtol=0.0, atol=0.0)

    print("KERNEL_OK")
</pallas_src>

<mosaic_0001>
module attributes {stable_mosaic.version = 11 : i64} {
  func.func @_propagate_layer_kernel(%arg0: i32, %arg1: i32, %arg2: memref<9xi32, #tpu.memory_space<smem>>, %arg3: memref<3xi32, #tpu.memory_space<smem>>, %arg4: memref<128x128xf32, #tpu.memory_space<vmem>>, %arg5: memref<128x128xbf16, #tpu.memory_space<vmem>>, %arg6: memref<384x128xbf16, #tpu.memory_space<vmem>>, %arg7: memref<128x128xf32, #tpu.memory_space<vmem>>, %arg8: memref<128x128xbf16, #tpu.memory_space<vmem>>, %arg9: memref<128x128xf32, #tpu.memory_space<vmem>>) attributes {dimension_semantics = [#tpu.dimension_semantics<parallel>, #tpu.dimension_semantics<arbitrary>], iteration_bounds = array<i64: 3, 3>, scalar_prefetch = 2 : i64, scratch_operands = 1 : i64, tpu.core_type = #tpu.core_type<tc>, window_params = [{transform_indices = @transform_0, window_bounds = array<i64: 128, 128>}, {transform_indices = @transform_1, window_bounds = array<i64: 128, 128>}, {pipeline_mode = #tpu.pipeline_mode<synchronous>, transform_indices = @transform_2, window_bounds = array<i64: 384, 128>}, {transform_indices = @transform_3, window_bounds = array<i64: 128, 128>}, {transform_indices = @transform_4, window_bounds = array<i64: 128, 128>}]} {
    %c0_i32 = arith.constant 0 : i32
    %0 = arith.cmpi eq, %arg1, %c0_i32 : i32
    %1 = arith.extui %0 : i1 to i32
    %c0_i32_0 = arith.constant 0 : i32
    %2 = arith.cmpi ne, %1, %c0_i32_0 : i32
    scf.if %2 {
      %cst = arith.constant 0.000000e+00 : f32
      %11 = vector.broadcast %cst : f32 to vector<128x128xf32>
      %c0 = arith.constant 0 : index
      %c0_3 = arith.constant 0 : index
      %12 = vector.load %arg9[%c0, %c0_3] : memref<128x128xf32, #tpu.memory_space<vmem>>, vector<128x128xf32>
      tpu.vector_store %arg9[%c0, %c0_3], %11 {strides = array<i32>} : memref<128x128xf32, #tpu.memory_space<vmem>>, vector<128x128xf32>,
    } else {
    }
    %3 = arith.index_cast %arg0 : i32 to index
    %4 = memref.load %arg3[%3] : memref<3xi32, #tpu.memory_space<smem>>
    %5 = arith.cmpi slt, %arg1, %4 : i32
    %6 = arith.extui %5 : i1 to i32
    %c0_i32_1 = arith.constant 0 : i32
    %7 = arith.cmpi ne, %6, %c0_i32_1 : i32
    scf.if %7 {
      %c3_i32 = arith.constant 3 : i32
      %11 = arith.muli %arg0, %c3_i32 : i32
      %12 = arith.addi %11, %arg1 : i32
      %13 = arith.index_cast %12 : i32 to index
      %14 = memref.load %arg2[%13] : memref<9xi32, #tpu.memory_space<smem>>
      %c128_i32 = arith.constant 128 : i32
      %15 = arith.muli %14, %c128_i32 : i32
      %16 = tpu.assume_multiple %15, 128 : i32
      %17 = arith.index_cast %16 : i32 to index
      %c0 = arith.constant 0 : index
      %18 = vector.load %arg6[%17, %c0] : memref<384x128xbf16, #tpu.memory_space<vmem>>, vector<128x128xbf16>
      %c0_3 = arith.constant 0 : index
      %c0_4 = arith.constant 0 : index
      %19 = vector.load %arg9[%c0_3, %c0_4] : memref<128x128xf32, #tpu.memory_space<vmem>>, vector<128x128xf32>
      %c0_5 = arith.constant 0 : index
      %c0_6 = arith.constant 0 : index
      %20 = vector.load %arg5[%c0_5, %c0_6] : memref<128x128xbf16, #tpu.memory_space<vmem>>, vector<128x128xbf16>
      %cst = arith.constant dense<0.000000e+00> : vector<128x128xf32>
      %21 = tpu.matmul %20, %18, %cst {dimension_numbers = #tpu.dot_dimension_numbers<[1], [0], [0], [1], [0, 0, 1, 1], [], []>} : vector<128x128xbf16>, vector<128x128xbf16>, vector<128x128xf32> -> vector<128x128xf32>
      %22 = arith.addf %19, %21 : vector<128x128xf32>
      %c0_7 = arith.constant 0 : index
      %c0_8 = arith.constant 0 : index
      %23 = vector.load %arg9[%c0_7, %c0_8] : memref<128x128xf32, #tpu.memory_space<vmem>>, vector<128x128xf32>
      tpu.vector_store %arg9[%c0_7, %c0_8], %22 {strides = array<i32>} : memref<128x128xf32, #tpu.memory_space<vmem>>, vector<128x128xf32>,
    } else {
    }
    %c2_i32 = arith.constant 2 : i32
    %8 = arith.cmpi eq, %arg1, %c2_i32 : i32
    %9 = arith.extui %8 : i1 to i32
    %c0_i32_2 = arith.constant 0 : i32
    %10 = arith.cmpi ne, %9, %c0_i32_2 : i32
    scf.if %10 {
      %c0 = arith.constant 0 : index
      %c0_3 = arith.constant 0 : index
      %11 = vector.load %arg4[%c0, %c0_3] : memref<128x128xf32, #tpu.memory_space<vmem>>, vector<128x128xf32>
      %c0_4 = arith.constant 0 : index
      %c0_5 = arith.constant 0 : index
      %12 = vector.load %arg9[%c0_4, %c0_5] : memref<128x128xf32, #tpu.memory_space<vmem>>, vector<128x128xf32>
      %cst = arith.constant 0.266666681 : f32
      %13 = vector.broadcast %cst : f32 to vector<128x128xf32>
      %14 = arith.mulf %13, %12 : vector<128x128xf32>
      %15 = arith.addf %11, %14 : vector<128x128xf32>
      %c0_6 = arith.constant 0 : index
      %c0_7 = arith.constant 0 : index
      %16 = vector.load %arg7[%c0_6, %c0_7] : memref<128x128xf32, #tpu.memory_space<vmem>>, vector<128x128xf32>
      tpu.vector_store %arg7[%c0_6, %c0_7], %15 {strides = array<i32>} : memref<128x128xf32, #tpu.memory_space<vmem>>, vector<128x128xf32>,
      %c0_8 = arith.constant 0 : index
      %c0_9 = arith.constant 0 : index
      %17 = vector.load %arg9[%c0_8, %c0_9] : memref<128x128xf32, #tpu.memory_space<vmem>>, vector<128x128xf32>
      %18 = arith.truncf %17 : vector<128x128xf32> to vector<128x128xbf16>
      %c0_10 = arith.constant 0 : index
      %c0_11 = arith.constant 0 : index
      %19 = vector.load %arg8[%c0_10, %c0_11] : memref<128x128xbf16, #tpu.memory_space<vmem>>, vector<128x128xbf16>
      tpu.vector_store %arg8[%c0_10, %c0_11], %18 {strides = array<i32>} : memref<128x128xbf16, #tpu.memory_space<vmem>>, vector<128x128xbf16>,
    } else {
    }
    return
  }
  func.func @transform_0(%arg0: i32, %arg1: i32, %arg2: memref<9xi32, #tpu.memory_space<smem>>, %arg3: memref<3xi32, #tpu.memory_space<smem>>) -> (i32, i32) {
    %c0_i32 = arith.constant 0 : i32
    %c0_i32_0 = arith.constant 0 : i32
    return %arg0, %c0_i32 : i32, i32
  }
  func.func @transform_1(%arg0: i32, %arg1: i32, %arg2: memref<9xi32, #tpu.memory_space<smem>>, %arg3: memref<3xi32, #tpu.memory_space<smem>>) -> (i32, i32) {
    %c3_i32 = arith.constant 3 : i32
    %0 = arith.muli %arg0, %c3_i32 : i32
    %1 = arith.addi %0, %arg1 : i32
    %2 = arith.index_cast %1 : i32 to index
    %3 = memref.load %arg2[%2] : memref<9xi32, #tpu.memory_space<smem>>
    %c0_i32 = arith.constant 0 : i32
    return %arg0, %3 : i32, i32
  }
  func.func @transform_2(%arg0: i32, %arg1: i32, %arg2: memref<9xi32, #tpu.memory_space<smem>>, %arg3: memref<3xi32, #tpu.memory_space<smem>>) -> (i32, i32) {
    %c0_i32 = arith.constant 0 : i32
    %c0_i32_0 = arith.constant 0 : i32
    %c0_i32_1 = arith.constant 0 : i32
    return %c0_i32, %c0_i32_0 : i32, i32
  }
  func.func @transform_3(%arg0: i32, %arg1: i32, %arg2: memref<9xi32, #tpu.memory_space<smem>>, %arg3: memref<3xi32, #tpu.memory_space<smem>>) -> (i32, i32) {
    %c0_i32 = arith.constant 0 : i32
    %c0_i32_0 = arith.constant 0 : i32
    return %arg0, %c0_i32 : i32, i32
  }
  func.func @transform_4(%arg0: i32, %arg1: i32, %arg2: memref<9xi32, #tpu.memory_space<smem>>, %arg3: memref<3xi32, #tpu.memory_space<smem>>) -> (i32, i32) {
    %c0_i32 = arith.constant 0 : i32
    %c0_i32_0 = arith.constant 0 : i32
    return %arg0, %c0_i32 : i32, i32
  }
}

module attributes {stable_mosaic.version = 11 : i64} {
  func.func @_propagate_layer_kernel(%arg0: i32, %arg1: i32, %arg2: memref<9xi32, #tpu.memory_space<smem>>, %arg3: memref<3xi32, #tpu.memory_space<smem>>, %arg4: memref<128x128xf32, #tpu.memory_space<vmem>>, %arg5: memref<128x128xbf16, #tpu.memory_space<vmem>>, %arg6: memref<384x128xbf16, #tpu.memory_space<vmem>>, %arg7: memref<128x128xf32, #tpu.memory_space<vmem>>, %arg8: memref<128x128xf32, #tpu.memory_space<vmem>>) attributes {dimension_semantics = [#tpu.dimension_semantics<parallel>, #tpu.dimension_semantics<arbitrary>], iteration_bounds = array<i64: 3, 3>, scalar_prefetch = 2 : i64, scratch_operands = 1 : i64, tpu.core_type = #tpu.core_type<tc>, window_params = [{transform_indices = @transform_0, window_bounds = array<i64: 128, 128>}, {transform_indices = @transform_1, window_bounds = array<i64: 128, 128>}, {pipeline_mode = #tpu.pipeline_mode<synchronous>, transform_indices = @transform_2, window_bounds = array<i64: 384, 128>}, {transform_indices = @transform_3, window_bounds = array<i64: 128, 128>}]} {
    %c0_i32 = arith.constant 0 : i32
    %0 = arith.cmpi eq, %arg1, %c0_i32 : i32
    %1 = arith.extui %0 : i1 to i32
    %c0_i32_0 = arith.constant 0 : i32
    %2 = arith.cmpi ne, %1, %c0_i32_0 : i32
    scf.if %2 {
      %cst = arith.constant 0.000000e+00 : f32
      %11 = vector.broadcast %cst : f32 to vector<128x128xf32>
      %c0 = arith.constant 0 : index
      %c0_3 = arith.constant 0 : index
      %12 = vector.load %arg8[%c0, %c0_3] : memref<128x128xf32, #tpu.memory_space<vmem>>, vector<128x128xf32>
      tpu.vector_store %arg8[%c0, %c0_3], %11 {strides = array<i32>} : memref<128x128xf32, #tpu.memory_space<vmem>>, vector<128x128xf32>,
    } else {
    }
    %3 = arith.index_cast %arg0 : i32 to index
    %4 = memref.load %arg3[%3] : memref<3xi32, #tpu.memory_space<smem>>
    %5 = arith.cmpi slt, %arg1, %4 : i32
    %6 = arith.extui %5 : i1 to i32
    %c0_i32_1 = arith.constant 0 : i32
    %7 = arith.cmpi ne, %6, %c0_i32_1 : i32
    scf.if %7 {
      %c3_i32 = arith.constant 3 : i32
      %11 = arith.muli %arg0, %c3_i32 : i32
      %12 = arith.addi %11, %arg1 : i32
      %13 = arith.index_cast %12 : i32 to index
      %14 = memref.load %arg2[%13] : memref<9xi32, #tpu.memory_space<smem>>
      %c128_i32 = arith.constant 128 : i32
      %15 = arith.muli %14, %c128_i32 : i32
      %16 = tpu.assume_multiple %15, 128 : i32
      %17 = arith.index_cast %16 : i32 to index
      %c0 = arith.constant 0 : index
      %18 = vector.load %arg6[%17, %c0] : memref<384x128xbf16, #tpu.memory_space<vmem>>, vector<128x128xbf16>
      %c0_3 = arith.constant 0 : index
      %c0_4 = arith.constant 0 : index
      %19 = vector.load %arg8[%c0_3, %c0_4] : memref<128x128xf32, #tpu.memory_space<vmem>>, vector<128x128xf32>
      %c0_5 = arith.constant 0 : index
      %c0_6 = arith.constant 0 : index
      %20 = vector.load %arg5[%c0_5, %c0_6] : memref<128x128xbf16, #tpu.memory_space<vmem>>, vector<128x128xbf16>
      %cst = arith.constant dense<0.000000e+00> : vector<128x128xf32>
      %21 = tpu.matmul %20, %18, %cst {dimension_numbers = #tpu.dot_dimension_numbers<[1], [0], [0], [1], [0, 0, 1, 1], [], []>} : vector<128x128xbf16>, vector<128x128xbf16>, vector<128x128xf32> -> vector<128x128xf32>
      %22 = arith.addf %19, %21 : vector<128x128xf32>
      %c0_7 = arith.constant 0 : index
      %c0_8 = arith.constant 0 : index
      %23 = vector.load %arg8[%c0_7, %c0_8] : memref<128x128xf32, #tpu.memory_space<vmem>>, vector<128x128xf32>
      tpu.vector_store %arg8[%c0_7, %c0_8], %22 {strides = array<i32>} : memref<128x128xf32, #tpu.memory_space<vmem>>, vector<128x128xf32>,
    } else {
    }
    %c2_i32 = arith.constant 2 : i32
    %8 = arith.cmpi eq, %arg1, %c2_i32 : i32
    %9 = arith.extui %8 : i1 to i32
    %c0_i32_2 = arith.constant 0 : i32
    %10 = arith.cmpi ne, %9, %c0_i32_2 : i32
    scf.if %10 {
      %c0 = arith.constant 0 : index
      %c0_3 = arith.constant 0 : index
      %11 = vector.load %arg4[%c0, %c0_3] : memref<128x128xf32, #tpu.memory_space<vmem>>, vector<128x128xf32>
      %c0_4 = arith.constant 0 : index
      %c0_5 = arith.constant 0 : index
      %12 = vector.load %arg8[%c0_4, %c0_5] : memref<128x128xf32, #tpu.memory_space<vmem>>, vector<128x128xf32>
      %cst = arith.constant 0.0666666701 : f32
      %13 = vector.broadcast %cst : f32 to vector<128x128xf32>
      %14 = arith.mulf %13, %12 : vector<128x128xf32>
      %15 = arith.addf %11, %14 : vector<128x128xf32>
      %c0_6 = arith.constant 0 : index
      %c0_7 = arith.constant 0 : index
      %16 = vector.load %arg7[%c0_6, %c0_7] : memref<128x128xf32, #tpu.memory_space<vmem>>, vector<128x128xf32>
      tpu.vector_store %arg7[%c0_6, %c0_7], %15 {strides = array<i32>} : memref<128x128xf32, #tpu.memory_space<vmem>>, vector<128x128xf32>,
    } else {
    }
    return
  }
  func.func @transform_0(%arg0: i32, %arg1: i32, %arg2: memref<9xi32, #tpu.memory_space<smem>>, %arg3: memref<3xi32, #tpu.memory_space<smem>>) -> (i32, i32) {
    %c0_i32 = arith.constant 0 : i32
    %c0_i32_0 = arith.constant 0 : i32
    return %arg0, %c0_i32 : i32, i32
  }
  func.func @transform_1(%arg0: i32, %arg1: i32, %arg2: memref<9xi32, #tpu.memory_space<smem>>, %arg3: memref<3xi32, #tpu.memory_space<smem>>) -> (i32, i32) {
    %c3_i32 = arith.constant 3 : i32
    %0 = arith.muli %arg0, %c3_i32 : i32
    %1 = arith.addi %0, %arg1 : i32
    %2 = arith.index_cast %1 : i32 to index
    %3 = memref.load %arg2[%2] : memref<9xi32, #tpu.memory_space<smem>>
    %c0_i32 = arith.constant 0 : i32
    return %arg0, %3 : i32, i32
  }
  func.func @transform_2(%arg0: i32, %arg1: i32, %arg2: memref<9xi32, #tpu.memory_space<smem>>, %arg3: memref<3xi32, #tpu.memory_space<smem>>) -> (i32, i32) {
    %c0_i32 = arith.constant 0 : i32
    %c0_i32_0 = arith.constant 0 : i32
    %c0_i32_1 = arith.constant 0 : i32
    return %c0_i32, %c0_i32_0 : i32, i32
  }
  func.func @transform_3(%arg0: i32, %arg1: i32, %arg2: memref<9xi32, #tpu.memory_space<smem>>, %arg3: memref<3xi32, #tpu.memory_space<smem>>) -> (i32, i32) {
    %c0_i32 = arith.constant 0 : i32
    %c0_i32_0 = arith.constant 0 : i32
    return %arg0, %c0_i32 : i32, i32
  }
}

module attributes {stable_mosaic.version = 11 : i64} {
  func.func @_propagate_layer_kernel(%arg0: i32, %arg1: i32, %arg2: memref<9xi32, #tpu.memory_space<smem>>, %arg3: memref<3xi32, #tpu.memory_space<smem>>, %arg4: memref<128x128xf32, #tpu.memory_space<vmem>>, %arg5: memref<128x128xbf16, #tpu.memory_space<vmem>>, %arg6: memref<384x128xbf16, #tpu.memory_space<vmem>>, %arg7: memref<128x128xf32, #tpu.memory_space<vmem>>, %arg8: memref<128x128xbf16, #tpu.memory_space<vmem>>, %arg9: memref<128x128xf32, #tpu.memory_space<vmem>>) attributes {dimension_semantics = [#tpu.dimension_semantics<parallel>, #tpu.dimension_semantics<arbitrary>], iteration_bounds = array<i64: 3, 3>, scalar_prefetch = 2 : i64, scratch_operands = 1 : i64, tpu.core_type = #tpu.core_type<tc>, window_params = [{transform_indices = @transform_0, window_bounds = array<i64: 128, 128>}, {transform_indices = @transform_1, window_bounds = array<i64: 128, 128>}, {pipeline_mode = #tpu.pipeline_mode<synchronous>, transform_indices = @transform_2, window_bounds = array<i64: 384, 128>}, {transform_indices = @transform_3, window_bounds = array<i64: 128, 128>}, {transform_indices = @transform_4, window_bounds = array<i64: 128, 128>}]} {
    %c0_i32 = arith.constant 0 : i32
    %0 = arith.cmpi eq, %arg1, %c0_i32 : i32
    %1 = arith.extui %0 : i1 to i32
    %c0_i32_0 = arith.constant 0 : i32
    %2 = arith.cmpi ne, %1, %c0_i32_0 : i32
    scf.if %2 {
      %cst = arith.constant 0.000000e+00 : f32
      %11 = vector.broadcast %cst : f32 to vector<128x128xf32>
      %c0 = arith.constant 0 : index
      %c0_3 = arith.constant 0 : index
      %12 = vector.load %arg9[%c0, %c0_3] : memref<128x128xf32, #tpu.memory_space<vmem>>, vector<128x128xf32>
      tpu.vector_store %arg9[%c0, %c0_3], %11 {strides = array<i32>} : memref<128x128xf32, #tpu.memory_space<vmem>>, vector<128x128xf32>,
    } else {
    }
    %3 = arith.index_cast %arg0 : i32 to index
    %4 = memref.load %arg3[%3] : memref<3xi32, #tpu.memory_space<smem>>
    %5 = arith.cmpi slt, %arg1, %4 : i32
    %6 = arith.extui %5 : i1 to i32
    %c0_i32_1 = arith.constant 0 : i32
    %7 = arith.cmpi ne, %6, %c0_i32_1 : i32
    scf.if %7 {
      %c3_i32 = arith.constant 3 : i32
      %11 = arith.muli %arg0, %c3_i32 : i32
      %12 = arith.addi %11, %arg1 : i32
      %13 = arith.index_cast %12 : i32 to index
      %14 = memref.load %arg2[%13] : memref<9xi32, #tpu.memory_space<smem>>
      %c128_i32 = arith.constant 128 : i32
      %15 = arith.muli %14, %c128_i32 : i32
      %16 = tpu.assume_multiple %15, 128 : i32
      %17 = arith.index_cast %16 : i32 to index
      %c0 = arith.constant 0 : index
      %18 = vector.load %arg6[%17, %c0] : memref<384x128xbf16, #tpu.memory_space<vmem>>, vector<128x128xbf16>
      %c0_3 = arith.constant 0 : index
      %c0_4 = arith.constant 0 : index
      %19 = vector.load %arg9[%c0_3, %c0_4] : memref<128x128xf32, #tpu.memory_space<vmem>>, vector<128x128xf32>
      %c0_5 = arith.constant 0 : index
      %c0_6 = arith.constant 0 : index
      %20 = vector.load %arg5[%c0_5, %c0_6] : memref<128x128xbf16, #tpu.memory_space<vmem>>, vector<128x128xbf16>
      %cst = arith.constant dense<0.000000e+00> : vector<128x128xf32>
      %21 = tpu.matmul %20, %18, %cst {dimension_numbers = #tpu.dot_dimension_numbers<[1], [0], [0], [1], [0, 0, 1, 1], [], []>} : vector<128x128xbf16>, vector<128x128xbf16>, vector<128x128xf32> -> vector<128x128xf32>
      %22 = arith.addf %19, %21 : vector<128x128xf32>
      %c0_7 = arith.constant 0 : index
      %c0_8 = arith.constant 0 : index
      %23 = vector.load %arg9[%c0_7, %c0_8] : memref<128x128xf32, #tpu.memory_space<vmem>>, vector<128x128xf32>
      tpu.vector_store %arg9[%c0_7, %c0_8], %22 {strides = array<i32>} : memref<128x128xf32, #tpu.memory_space<vmem>>, vector<128x128xf32>,
    } else {
    }
    %c2_i32 = arith.constant 2 : i32
    %8 = arith.cmpi eq, %arg1, %c2_i32 : i32
    %9 = arith.extui %8 : i1 to i32
    %c0_i32_2 = arith.constant 0 : i32
    %10 = arith.cmpi ne, %9, %c0_i32_2 : i32
    scf.if %10 {
      %c0 = arith.constant 0 : index
      %c0_3 = arith.constant 0 : index
      %11 = vector.load %arg4[%c0, %c0_3] : memref<128x128xf32, #tpu.memory_space<vmem>>, vector<128x128xf32>
      %c0_4 = arith.constant 0 : index
      %c0_5 = arith.constant 0 : index
      %12 = vector.load %arg9[%c0_4, %c0_5] : memref<128x128xf32, #tpu.memory_space<vmem>>, vector<128x128xf32>
      %cst = arith.constant 0.13333334 : f32
      %13 = vector.broadcast %cst : f32 to vector<128x128xf32>
      %14 = arith.mulf %13, %12 : vector<128x128xf32>
      %15 = arith.addf %11, %14 : vector<128x128xf32>
      %c0_6 = arith.constant 0 : index
      %c0_7 = arith.constant 0 : index
      %16 = vector.load %arg7[%c0_6, %c0_7] : memref<128x128xf32, #tpu.memory_space<vmem>>, vector<128x128xf32>
      tpu.vector_store %arg7[%c0_6, %c0_7], %15 {strides = array<i32>} : memref<128x128xf32, #tpu.memory_space<vmem>>, vector<128x128xf32>,
      %c0_8 = arith.constant 0 : index
      %c0_9 = arith.constant 0 : index
      %17 = vector.load %arg9[%c0_8, %c0_9] : memref<128x128xf32, #tpu.memory_space<vmem>>, vector<128x128xf32>
      %18 = arith.truncf %17 : vector<128x128xf32> to vector<128x128xbf16>
      %c0_10 = arith.constant 0 : index
      %c0_11 = arith.constant 0 : index
      %19 = vector.load %arg8[%c0_10, %c0_11] : memref<128x128xbf16, #tpu.memory_space<vmem>>, vector<128x128xbf16>
      tpu.vector_store %arg8[%c0_10, %c0_11], %18 {strides = array<i32>} : memref<128x128xbf16, #tpu.memory_space<vmem>>, vector<128x128xbf16>,
    } else {
    }
    return
  }
  func.func @transform_0(%arg0: i32, %arg1: i32, %arg2: memref<9xi32, #tpu.memory_space<smem>>, %arg3: memref<3xi32, #tpu.memory_space<smem>>) -> (i32, i32) {
    %c0_i32 = arith.constant 0 : i32
    %c0_i32_0 = arith.constant 0 : i32
    return %arg0, %c0_i32 : i32, i32
  }
  func.func @transform_1(%arg0: i32, %arg1: i32, %arg2: memref<9xi32, #tpu.memory_space<smem>>, %arg3: memref<3xi32, #tpu.memory_space<smem>>) -> (i32, i32) {
    %c3_i32 = arith.constant 3 : i32
    %0 = arith.muli %arg0, %c3_i32 : i32
    %1 = arith.addi %0, %arg1 : i32
    %2 = arith.index_cast %1 : i32 to index
    %3 = memref.load %arg2[%2] : memref<9xi32, #tpu.memory_space<smem>>
    %c0_i32 = arith.constant 0 : i32
    return %arg0, %3 : i32, i32
  }
  func.func @transform_2(%arg0: i32, %arg1: i32, %arg2: memref<9xi32, #tpu.memory_space<smem>>, %arg3: memref<3xi32, #tpu.memory_space<smem>>) -> (i32, i32) {
    %c0_i32 = arith.constant 0 : i32
    %c0_i32_0 = arith.constant 0 : i32
    %c0_i32_1 = arith.constant 0 : i32
    return %c0_i32, %c0_i32_0 : i32, i32
  }
  func.func @transform_3(%arg0: i32, %arg1: i32, %arg2: memref<9xi32, #tpu.memory_space<smem>>, %arg3: memref<3xi32, #tpu.memory_space<smem>>) -> (i32, i32) {
    %c0_i32 = arith.constant 0 : i32
    %c0_i32_0 = arith.constant 0 : i32
    return %arg0, %c0_i32 : i32, i32
  }
  func.func @transform_4(%arg0: i32, %arg1: i32, %arg2: memref<9xi32, #tpu.memory_space<smem>>, %arg3: memref<3xi32, #tpu.memory_space<smem>>) -> (i32, i32) {
    %c0_i32 = arith.constant 0 : i32
    %c0_i32_0 = arith.constant 0 : i32
    return %arg0, %c0_i32 : i32, i32
  }
}

</mosaic_0001>

<llo_original>
// kernel: _compute_light_out.5
$region0: #{_compute_light_out.5}
  #allocation0 [shape = 'u32[]', space=smem, size = 0x4, offset = 0x4, fixed_abs, tag = 'smem constant byte address 0x4 - core index']
  #allocation1 [shape = 'u32[144,128]{1,0:T(1,128)}', space=vmem, size = 0x12000, scoped, tag = 'internal scratch']
  #allocation2 [shape = 'f32[128,128]{1,0:T(8,128)}', space=vmem, size = 0x10000, scoped, tag = 'scratch operand']
  #allocation3 [shape = 's32[1]{0}', space=sflag, size = 0x4, scoped, tag = 'scoped memory for _compute_light_out.5']
  #allocation4 [shape = 'u8[512]{0}', space=smem, size = 0x200, scoped, tag = 'prefetched SMEM operand 0']
  #allocation5 [shape = 'u8[512]{0}', space=smem, size = 0x200, scoped, tag = 'prefetched SMEM operand 1']
  %s0 = inlined_call_operand.vmem [shape: s32[9], index: 0, kind: input, shape index: {}]
  %s1 = inlined_call_operand.vmem [shape: s32[3], index: 1, kind: input, shape index: {}]
  %s2 = inlined_call_operand.vmem [shape: f32[384,128], index: 2, kind: input, shape index: {}]
  %s3 = inlined_call_operand.vmem [shape: bf16[384,384], index: 3, kind: input, shape index: {}]
  %s4 = inlined_call_operand.vmem [shape: bf16[384,128], index: 4, kind: input, shape index: {}]
  %s5 = inlined_call_operand.hbm [shape: f32[384,128], index: 5, kind: output, shape index: {}]
  %s6 = sld [smem:[#allocation0]]
  $region98: #{_compute_light_out.5} parent=0
    _
  %s8 = ssub.s32 1, %s6
  %s9 = scalar_select 0, %s8, %s6
  %s10 = sshll.u32 %s0, 4
  %s11 = int_to_ptr.vmem [resolvable:$true] %s10
  %13 = dma.vmem_to_smem %s11, 16, [#allocation4], [#allocation3]
  %s14 = sshll.u32 %s1, 4
  %s15 = int_to_ptr.vmem [resolvable:$true] %s14
  %17 = dma.vmem_to_smem %s15, 16, [#allocation5], [#allocation3]
  %18 = dma.done [#allocation3], 32
  %19 = sfence
  $region1: #{_compute_light_out.5} parent=0
    #allocation6 [shape = 'u8[65536]{0}', space=vmem, size = 0x10000, scoped, tag = 'input window, operand 3']
    #allocation7 [shape = 'u8[131072]{0}', space=vmem, size = 0x20000, scoped, tag = 'output window, operand 0']
    #allocation8 [shape = 's32[2]{0}', space=sflag, size = 0x8, scoped, tag = 'scoped memory for _compute_light_out.5']
    %20 = vsyncpa [#allocation8], 0
    %s21 = scalar_lea.sflag [#allocation8], 1
    %22 = vsyncpa %s21, 0
    loop: start=0, step=1, limit=11
    $region2: #{_compute_light_out.5} parent=1 // loop_pre_header
      _
    $region3: #{_compute_light_out.5} parent=1 // loop_header
      %s24 = sphi 0, %s28
      %p25 = scmp.ge.s32.totalorder %s24, 11
      %s31 = sphi 0, %s43
      %s32 = sphi 0, %s39
      %s33 = sphi 0, %s31
      %s34 = sphi 0, %s32
      %s35 = sphi 0, %s33
      %s36 = sphi 0, %s34
      %s46 = sphi 0, %s48
      %s49 = sphi 0, %s46
      %s50 = sphi 0, %s49
      %s66 = sphi 0, %s50
      %s80 = sphi 0, %s82
      %s83 = sphi 0, %s80
      %s84 = sphi 0, %s83
      %s100 = sphi 0, %s84
      %s104 = sphi 0, %s104
      %s106 = sphi 0, %s104
      %s107 = sphi 0, %s106
      %s121 = sphi 0, %s107
      %s127 = sphi 0, %s129
      %s130 = sphi 0, %s127
      %s131 = sphi 0, %s130
      %s147 = sphi 0, %s131
    $region4: #{_compute_light_out.5} parent=1 // loop_header_branch
      %27 = sbr.rel (%p25) target = $region8
    $region5: #{_compute_light_out.5} parent=1 // loop_body
      %s29 = ssub.s32 %s24, 1
      %s30 = ssub.s32 %s24, 2
      %s37 = sadd.s32 1, %s32
      %p38 = scmp.ge.s32.totalorder %s37, 3
      %s39 = scalar_select %p38, 0, %s37
      %s40 = sadd.s32 1, %s31
      %s41 = scalar_select %p38, %s40, %s31
      %p42 = scmp.ge.s32.totalorder %s41, 3
      %s43 = scalar_select %p42, 0, %s41
      %s44 = ssub.s32 %s31, %s43
      %p45 = scmp.eq.s32.totalorder %s44, 0
      %s47 = sadd.s32 %s46, 1
      %s48 = scalar_select %p45, %s46, %s47
      %p51 = pneg %p45
      %p52 = scmp.eq.s32.totalorder %s24, 8
      %p53 = por %p51, %p52
      %p54 = scmp.ne.s32.totalorder %s46, %s49
      %p55 = scmp.eq.s32.totalorder %s24, 0
      %p56 = por %p54, %p55
      %p57 = scmp.ne.s32.totalorder %s46, %s49
      %p58 = scmp.eq.s32.totalorder %s29, 8
      %p59 = por %p57, %p58
      %p60 = scmp.ne.s32.totalorder %s49, %s50
      %p61 = scmp.eq.s32.totalorder %s29, 0
      %p62 = por %p60, %p61
      %p63 = scmp.ne.s32.totalorder %s49, %s50
      %p64 = scmp.eq.s32.totalorder %s30, 8
      %p65 = por %p63, %p64
      %p67 = scmp.ne.s32.totalorder %s50, %s66
      %p68 = scmp.eq.s32.totalorder %s30, 0
      %p69 = por %p67, %p68
      %s70 = smul.u32 %s31, 3
      %s71 = sadd.s32 %s70, %s32
      %s72 = sld [smem:[#allocation4 + %s71]]
      %s73 = smul.u32 %s43, 3
      %s74 = sadd.s32 %s73, %s39
      %s75 = sld [smem:[#allocation4 + %s74]]
      %s76 = ssub.s32 %s31, %s43
      %s77 = ssub.s32 %s72, %s75
      %s78 = sor.u32 %s76, %s77
      %p79 = scmp.eq.s32.totalorder %s78, 0
      %s81 = sadd.s32 %s80, 1
      %s82 = scalar_select %p79, %s80, %s81
      %p85 = pneg %p79
      %p86 = scmp.eq.s32.totalorder %s24, 8
      %p87 = por %p85, %p86
      %p88 = scmp.ne.s32.totalorder %s80, %s83
      %p89 = scmp.eq.s32.totalorder %s24, 0
      %p90 = por %p88, %p89
      %p91 = scmp.ne.s32.totalorder %s80, %s83
      %p92 = scmp.eq.s32.totalorder %s29, 8
      %p93 = por %p91, %p92
      %p94 = scmp.ne.s32.totalorder %s83, %s84
      %p95 = scmp.eq.s32.totalorder %s29, 0
      %p96 = por %p94, %p95
      %p97 = scmp.ne.s32.totalorder %s83, %s84
      %p98 = scmp.eq.s32.totalorder %s30, 8
      %p99 = por %p97, %p98
      %p101 = scmp.ne.s32.totalorder %s84, %s100
      %p102 = scmp.eq.s32.totalorder %s30, 0
      %p103 = por %p101, %p102
      %s105 = sadd.s32 %s104, 1
      %p108 = scmp.eq.s32.totalorder %s24, 8
      %p109 = scmp.ne.s32.totalorder %s104, %s106
      %p110 = scmp.eq.s32.totalorder %s24, 0
      %p111 = por %p109, %p110
      %p112 = scmp.ne.s32.totalorder %s104, %s106
      %p113 = scmp.eq.s32.totalorder %s29, 8
      %p114 = por %p112, %p113
      %p115 = scmp.ne.s32.totalorder %s106, %s107
      %p116 = scmp.eq.s32.totalorder %s29, 0
      %p117 = por %p115, %p116
      %p118 = scmp.ne.s32.totalorder %s106, %s107
      %p119 = scmp.eq.s32.totalorder %s30, 8
      %p120 = por %p118, %p119
      %p122 = scmp.ne.s32.totalorder %s107, %s121
      %p123 = scmp.eq.s32.totalorder %s30, 0
      %p124 = por %p122, %p123
      %s125 = ssub.s32 %s31, %s43
      %p126 = scmp.eq.s32.totalorder %s125, 0
      %s128 = sadd.s32 %s127, 1
      %s129 = scalar_select %p126, %s127, %s128
      %p132 = pneg %p126
      %p133 = scmp.eq.s32.totalorder %s24, 8
      %p134 = por %p132, %p133
      %p135 = scmp.ne.s32.totalorder %s127, %s130
      %p136 = scmp.eq.s32.totalorder %s24, 0
      %p137 = por %p135, %p136
      %p138 = scmp.ne.s32.totalorder %s127, %s130
      %p139 = scmp.eq.s32.totalorder %s29, 8
      %p140 = por %p138, %p139
      %p141 = scmp.ne.s32.totalorder %s130, %s131
      %p142 = scmp.eq.s32.totalorder %s29, 0
      %p143 = por %p141, %p142
      %p144 = scmp.ne.s32.totalorder %s130, %s131
      %p145 = scmp.eq.s32.totalorder %s30, 8
      %p146 = por %p144, %p145
      %p148 = scmp.ne.s32.totalorder %s131, %s147
      %p149 = scmp.eq.s32.totalorder %s30, 0
      %p150 = por %p148, %p149
      %p151 = scmp.le.s32.totalorder 1, %s24
      %p152 = scmp.lt.s32.totalorder %s24, 10
      %p153 = pnand %p151, %p152
      %p154 = pneg %p153
      // Predicated region
      $region9: #{_compute_light_out.5} parent=5 // pred_check
        _
      $region10: #{_compute_light_out.5} parent=5 // pred_check_branch
        %156 = sbr.rel (%p153) target = $region12
      $region11: #{_compute_light_out.5} parent=5 // pred_region
        %s157 = ssub.s32 %s24, 1
        // Predicated region
        $region13: #{_compute_light_out.5} parent=11 // pred_check
          %p158 = pneg %p117
        $region14: #{_compute_light_out.5} parent=11 // pred_check_branch
          %160 = sbr.rel (%p158) target = $region16
        $region15: #{_compute_light_out.5} parent=11 // pred_region
          _
        $region16: #{_compute_light_out.5} parent=11 // pred_fallthru
          _
      $region12: #{_compute_light_out.5} parent=5 // pred_fallthru
        _
      %p161 = scmp.lt.s32.totalorder %s24, 9
      // Predicated region
      $region17: #{_compute_light_out.5} parent=5 // pred_check
        %p162 = pneg %p161
      $region18: #{_compute_light_out.5} parent=5 // pred_check_branch
        %164 = sbr.rel (%p162) target = $region20
      $region19: #{_compute_light_out.5} parent=5 // pred_region
        // Predicated region
        $region21: #{_compute_light_out.5} parent=19 // pred_check
          %p165 = pneg %p56
        $region22: #{_compute_light_out.5} parent=19 // pred_check_branch
          %167 = sbr.rel (%p165) target = $region24
        $region23: #{_compute_light_out.5} parent=19 // pred_region
          %s168 = smul.u32 16, %s31
          %p169 = scmp.lt.s32.totalorder %s168, 47
          %s170 = scalar_select %p169, %s168, 47
          %s171 = smul.addr %s170, 8
          %s172 = scalar_lea.vmem %s2, %s171
          %s173 = smul.u32 16, %s31
        $region24: #{_compute_light_out.5} parent=19 // pred_fallthru
          _
        // Predicated region
        $region25: #{_compute_light_out.5} parent=19 // pred_check
          %p174 = pneg %p90
        $region26: #{_compute_light_out.5} parent=19 // pred_check_branch
          %176 = sbr.rel (%p174) target = $region28
        $region27: #{_compute_light_out.5} parent=19 // pred_region
          %s177 = sand.u32 %s80, 1
          %s178 = sand.u32 %s80, 1
          %s179 = smul.addr %s178, 64
          %s180 = scalar_lea.vmem [#allocation6], %s179
          %s181 = smul.u32 %s31, 3
          %s182 = sadd.s32 %s181, %s32
          %s183 = sld [smem:[#allocation4 + %s182]]
          %s184 = smul.u32 16, %s31
          %s185 = smul.addr %s184, 3
          %s186 = sadd.s32 %s183, %s185
          %s187 = smul.addr %s186, 4
          %s188 = scalar_lea.vmem %s3, %s187
          // Predicated region
          $region29: #{_compute_light_out.5} parent=27 // pred_check
            _
          $region30: #{_compute_light_out.5} parent=27 // pred_check_branch
            %190 = sbr.rel (0) target = $region32
          $region31: #{_compute_light_out.5} parent=27 // pred_region
            // Predicated region
            $region33: #{_compute_light_out.5} parent=31 // pred_check
              _
            $region34: #{_compute_light_out.5} parent=31 // pred_check_branch
              %192 = sbr.rel target = $region36
            $region35: #{_compute_light_out.5} parent=31 // pred_region
              // Predicated region
              $region48: #{_compute_light_out.5} parent=35 // pred_check
                _
              $region49: #{_compute_light_out.5} parent=35 // pred_check_branch
                %237 = sbr.rel (0) target = $region51
              $region50: #{_compute_light_out.5} parent=35 // pred_region
                loop: start=0, step=1, limit=1
                $region52: #{_compute_light_out.5} parent=50 // loop_pre_header
                  _
                $region53: #{_compute_light_out.5} parent=50 // loop_header
                  %s239 = sphi 0, %s243
                  %p240 = scmp.ge.s32.totalorder %s239, 1
                  %s244 = sphi %s188, %s188
                  %s245 = sphi %s180, %s180
                $region54: #{_compute_light_out.5} parent=50 // loop_header_branch
                  %242 = sbr.rel (%p240) target = $region58
                $region55: #{_compute_light_out.5} parent=50 // loop_body
                  _
                $region56: #{_compute_light_out.5} parent=50 // loop_footer
                  %s243 = sadd.s32 1, %s239
                $region57: #{_compute_light_out.5} parent=50 // loop_footer_branch
                  %238 = sbr.rel target = $region53
                $region58: #{_compute_light_out.5} parent=50 // loop_exit
                  _
                loop: start=0, step=1, limit=1
                $region59: #{_compute_light_out.5} parent=50 // loop_pre_header
                  _
                $region60: #{_compute_light_out.5} parent=50 // loop_header
                  %s248 = sphi 0, %s252
                  %p249 = scmp.ge.s32.totalorder %s248, 1
                  %s253 = sphi %s188, %s188
                  %s254 = sphi %s180, %s180
                $region61: #{_compute_light_out.5} parent=50 // loop_header_branch
                  %251 = sbr.rel (%p249) target = $region65
                $region62: #{_compute_light_out.5} parent=50 // loop_body
                  %v255 = vld [vmem:[%s253] sm:$0xf]
                  %256 = vst [vmem:[%s254] sm:$0xf] %v255
                  %v257 = vld [vmem:[%s253 + $0xc] sm:$0xf]
                  %258 = vst [vmem:[%s254 + $0x4] sm:$0xf] %v257
                  %v259 = vld [vmem:[%s253 + $0x18] sm:$0xf]
                  %260 = vst [vmem:[%s254 + $0x8] sm:$0xf] %v259
                  %v261 = vld [vmem:[%s253 + $0x24] sm:$0xf]
                  %262 = vst [vmem:[%s254 + $0xc] sm:$0xf] %v261
                  %v263 = vld [vmem:[%s253 + $0x30] sm:$0xf]
                  %264 = vst [vmem:[%s254 + $0x10] sm:$0xf] %v263
                  %v265 = vld [vmem:[%s253 + $0x3c] sm:$0xf]
                  %266 = vst [vmem:[%s254 + $0x14] sm:$0xf] %v265
                  %v267 = vld [vmem:[%s253 + $0x48] sm:$0xf]
                  %268 = vst [vmem:[%s254 + $0x18] sm:$0xf] %v267
                  %v269 = vld [vmem:[%s253 + $0x54] sm:$0xf]
                  %270 = vst [vmem:[%s254 + $0x1c] sm:$0xf] %v269
                  %v271 = vld [vmem:[%s253 + $0x60] sm:$0xf]
                  %272 = vst [vmem:[%s254 + $0x20] sm:$0xf] %v271
                  %v273 = vld [vmem:[%s253 + $0x6c] sm:$0xf]
                  %274 = vst [vmem:[%s254 + $0x24] sm:$0xf] %v273
                  %v275 = vld [vmem:[%s253 + $0x78] sm:$0xf]
                  %276 = vst [vmem:[%s254 + $0x28] sm:$0xf] %v275
                  %v277 = vld [vmem:[%s253 + $0x84] sm:$0xf]
                  %278 = vst [vmem:[%s254 + $0x2c] sm:$0xf] %v277
                  %v279 = vld [vmem:[%s253 + $0x90] sm:$0xf]
                  %280 = vst [vmem:[%s254 + $0x30] sm:$0xf] %v279
                  %v281 = vld [vmem:[%s253 + $0x9c] sm:$0xf]
                  %282 = vst [vmem:[%s254 + $0x34] sm:$0xf] %v281
                  %v283 = vld [vmem:[%s253 + $0xa8] sm:$0xf]
                  %284 = vst [vmem:[%s254 + $0x38] sm:$0xf] %v283
                  %v285 = vld [vmem:[%s253 + $0xb4] sm:$0xf]
                  %286 = vst [vmem:[%s254 + $0x3c] sm:$0xf] %v285
                $region63: #{_compute_light_out.5} parent=50 // loop_footer
                  %s252 = sadd.s32 1, %s248
                $region64: #{_compute_light_out.5} parent=50 // loop_footer_branch
                  %247 = sbr.rel target = $region60
                $region65: #{_compute_light_out.5} parent=50 // loop_exit
                  _
              $region51: #{_compute_light_out.5} parent=35 // pred_fallthru
                _
            $region36: #{_compute_light_out.5} parent=31 // pred_fallthru
              _
            // Predicated region
            $region37: #{_compute_light_out.5} parent=31 // pred_check
              _
            $region38: #{_compute_light_out.5} parent=31 // pred_check_branch
              %194 = sbr.rel (0) target = $region40
            $region39: #{_compute_light_out.5} parent=31 // pred_region
              loop: start=0, step=1, limit=1
              $region41: #{_compute_light_out.5} parent=39 // loop_pre_header
                _
              $region42: #{_compute_light_out.5} parent=39 // loop_header
                %s197 = sphi 0, %s201
                %p198 = scmp.ge.s32.totalorder %s197, 1
                %s202 = sphi %s188, %s188
                %s203 = sphi %s180, %s180
              $region43: #{_compute_light_out.5} parent=39 // loop_header_branch
                %200 = sbr.rel (%p198) target = $region47
              $region44: #{_compute_light_out.5} parent=39 // loop_body
                %v204 = vld [vmem:[%s202] sm:$0xf]
                %205 = vst [vmem:[%s203] sm:$0xf] %v204
                %v206 = vld [vmem:[%s202 + $0xc] sm:$0xf]
                %207 = vst [vmem:[%s203 + $0x4] sm:$0xf] %v206
                %v208 = vld [vmem:[%s202 + $0x18] sm:$0xf]
                %209 = vst [vmem:[%s203 + $0x8] sm:$0xf] %v208
                %v210 = vld [vmem:[%s202 + $0x24] sm:$0xf]
                %211 = vst [vmem:[%s203 + $0xc] sm:$0xf] %v210
                %v212 = vld [vmem:[%s202 + $0x30] sm:$0xf]
                %213 = vst [vmem:[%s203 + $0x10] sm:$0xf] %v212
                %v214 = vld [vmem:[%s202 + $0x3c] sm:$0xf]
                %215 = vst [vmem:[%s203 + $0x14] sm:$0xf] %v214
                %v216 = vld [vmem:[%s202 + $0x48] sm:$0xf]
                %217 = vst [vmem:[%s203 + $0x18] sm:$0xf] %v216
                %v218 = vld [vmem:[%s202 + $0x54] sm:$0xf]
                %219 = vst [vmem:[%s203 + $0x1c] sm:$0xf] %v218
                %v220 = vld [vmem:[%s202 + $0x60] sm:$0xf]
                %221 = vst [vmem:[%s203 + $0x20] sm:$0xf] %v220
                %v222 = vld [vmem:[%s202 + $0x6c] sm:$0xf]
                %223 = vst [vmem:[%s203 + $0x24] sm:$0xf] %v222
                %v224 = vld [vmem:[%s202 + $0x78] sm:$0xf]
                %225 = vst [vmem:[%s203 + $0x28] sm:$0xf] %v224
                %v226 = vld [vmem:[%s202 + $0x84] sm:$0xf]
                %227 = vst [vmem:[%s203 + $0x2c] sm:$0xf] %v226
                %v228 = vld [vmem:[%s202 + $0x90] sm:$0xf]
                %229 = vst [vmem:[%s203 + $0x30] sm:$0xf] %v228
                %v230 = vld [vmem:[%s202 + $0x9c] sm:$0xf]
                %231 = vst [vmem:[%s203 + $0x34] sm:$0xf] %v230
                %v232 = vld [vmem:[%s202 + $0xa8] sm:$0xf]
                %233 = vst [vmem:[%s203 + $0x38] sm:$0xf] %v232
                %v234 = vld [vmem:[%s202 + $0xb4] sm:$0xf]
                %235 = vst [vmem:[%s203 + $0x3c] sm:$0xf] %v234
              $region45: #{_compute_light_out.5} parent=39 // loop_footer
                %s201 = sadd.s32 1, %s197
              $region46: #{_compute_light_out.5} parent=39 // loop_footer_branch
                %196 = sbr.rel target = $region42
              $region47: #{_compute_light_out.5} parent=39 // loop_exit
                _
            $region40: #{_compute_light_out.5} parent=31 // pred_fallthru
              _
          $region32: #{_compute_light_out.5} parent=27 // pred_fallthru
            _
          %287 = vnop
        $region28: #{_compute_light_out.5} parent=19 // pred_fallthru
          _
      $region20: #{_compute_light_out.5} parent=5 // pred_fallthru
        _
      %p288 = scmp.le.s32.totalorder 1, %s24
      %p289 = scmp.lt.s32.totalorder %s24, 10
      %p290 = pnand %p288, %p289
      %p291 = pneg %p290
      // Predicated region
      $region66: #{_compute_light_out.5} parent=5 // pred_check
        _
      $region67: #{_compute_light_out.5} parent=5 // pred_check_branch
        %293 = sbr.rel (%p290) target = $region69
      $region68: #{_compute_light_out.5} parent=5 // pred_region
        %s294 = ssub.s32 %s24, 1
        %s295 = sand.u32 %s83, 1
        %s296 = sand.u32 %s83, 1
        %s297 = smul.addr %s296, 64
        %s298 = scalar_lea.vmem [#allocation6], %s297
        // Predicated region
        $region70: #{_compute_light_out.5} parent=68 // pred_check
          %p299 = pneg %p96
        $region71: #{_compute_light_out.5} parent=68 // pred_check_branch
          %301 = sbr.rel (%p299) target = $region73
        $region72: #{_compute_light_out.5} parent=68 // pred_region
          _
        $region73: #{_compute_light_out.5} parent=68 // pred_fallthru
          _
        %s302 = smul.u32 16, %s33
        %p303 = scmp.lt.s32.totalorder %s302, 47
        %s304 = scalar_select %p303, %s302, 47
        %s305 = smul.addr %s304, 8
        %s306 = scalar_lea.vmem %s2, %s305
        %p307 = pneg %p62
        %p308 = pneg %p59
        %s309 = sand.u32 %s83, 1
        %s310 = sand.u32 %s83, 1
        %s311 = smul.addr %s310, 64
        %s312 = scalar_lea.vmem [#allocation6], %s311
        %p313 = pneg %p96
        %p314 = pneg %p93
        %p315 = pneg %p117
        %p316 = pneg %p114
        %p317 = pneg %p143
        %p318 = pneg %p140
        %s319 = sand.u32 %s130, 1
        %s320 = scalar_lea.sflag [#allocation8], %s319
        %s321 = sand.u32 %s130, 1
        %s322 = smul.addr %s321, 128
        %s323 = scalar_lea.vmem [#allocation7], %s322
        %s324 = smul.u32 16, %s33
        %p325 = scmp.lt.s32.totalorder %s324, 47
        %s326 = scalar_select %p325, %s324, 47
        %s327 = smul.addr %s326, 8
        %s328 = scalar_lea.vmem %s2, %s327
        %s329 = smul.u32 16, %s33
        %s330 = smul.u32 %s33, 3
        %s331 = sadd.s32 %s330, %s34
        %s332 = sld [smem:[#allocation4 + %s331]]
        %s333 = smul.u32 16, %s33
        %s334 = smul.u32 16, %s33
        %p336 = scmp.eq.s32.totalorder %s34, 0
        // Predicated region
        $region74: #{_compute_light_out.5} parent=68 // pred_check
          %p337 = pneg %p336
        $region75: #{_compute_light_out.5} parent=68 // pred_check_branch
          %339 = sbr.rel (%p337) target = $region77
        $region76: #{_compute_light_out.5} parent=68 // pred_region
          %340 = vst [vmem:[#allocation2] sm:$0xff] 0.0
          %341 = vst [vmem:[#allocation2 + $0x8] sm:$0xff] 0.0
          %342 = vst [vmem:[#allocation2 + $0x10] sm:$0xff] 0.0
          %343 = vst [vmem:[#allocation2 + $0x18] sm:$0xff] 0.0
          %344 = vst [vmem:[#allocation2 + $0x20] sm:$0xff] 0.0
          %345 = vst [vmem:[#allocation2 + $0x28] sm:$0xff] 0.0
          %346 = vst [vmem:[#allocation2 + $0x30] sm:$0xff] 0.0
          %347 = vst [vmem:[#allocation2 + $0x38] sm:$0xff] 0.0
          %348 = vst [vmem:[#allocation2 + $0x40] sm:$0xff] 0.0
          %349 = vst [vmem:[#allocation2 + $0x48] sm:$0xff] 0.0
          %350 = vst [vmem:[#allocation2 + $0x50] sm:$0xff] 0.0
          %351 = vst [vmem:[#allocation2 + $0x58] sm:$0xff] 0.0
          %352 = vst [vmem:[#allocation2 + $0x60] sm:$0xff] 0.0
          %353 = vst [vmem:[#allocation2 + $0x68] sm:$0xff] 0.0
          %354 = vst [vmem:[#allocation2 + $0x70] sm:$0xff] 0.0
          %355 = vst [vmem:[#allocation2 + $0x78] sm:$0xff] 0.0
        $region77: #{_compute_light_out.5} parent=68 // pred_fallthru
          _
        %s356 = sld [smem:[#allocation5 + %s33]]
        %p357 = scmp.lt.s32.totalorder %s34, %s356
        // Predicated region
        $region78: #{_compute_light_out.5} parent=68 // pred_check
          %p358 = pneg %p357
        $region79: #{_compute_light_out.5} parent=68 // pred_check_branch
          %360 = sbr.rel (%p358) target = $region81
        $region80: #{_compute_light_out.5} parent=68 // pred_region
          %s361 = smul.u32 %s33, 3
          %s362 = sadd.s32 %s361, %s34
          %s363 = sld [smem:[#allocation4 + %s362]]
          %s364 = smul.u32 %s363, 128
          %s365 = sshra.s32 %s364, 3
          %s366 = sand.u32 %s364, 7
          %s367 = smul.addr %s365, 4
          %s368 = scalar_lea.vmem %s4, %s367
          %v369 = vld [vmem:[%s368] sm:$0xf]
          %v370 = vld [vmem:[%s368 + $0x4] sm:$0xf]
          %v371 = vld [vmem:[%s368 + $0x8] sm:$0xf]
          %v372 = vld [vmem:[%s368 + $0xc] sm:$0xf]
          %v373 = vld [vmem:[%s368 + $0x10] sm:$0xf]
          %v374 = vld [vmem:[%s368 + $0x14] sm:$0xf]
          %v375 = vld [vmem:[%s368 + $0x18] sm:$0xf]
          %v376 = vld [vmem:[%s368 + $0x1c] sm:$0xf]
          %v377 = vld [vmem:[%s368 + $0x20] sm:$0xf]
          %v378 = vld [vmem:[%s368 + $0x24] sm:$0xf]
          %v379 = vld [vmem:[%s368 + $0x28] sm:$0xf]
          %v380 = vld [vmem:[%s368 + $0x2c] sm:$0xf]
          %v381 = vld [vmem:[%s368 + $0x30] sm:$0xf]
          %v382 = vld [vmem:[%s368 + $0x34] sm:$0xf]
          %v383 = vld [vmem:[%s368 + $0x38] sm:$0xf]
          %v384 = vld [vmem:[%s368 + $0x3c] sm:$0xf]
          %v385 = vld [vmem:[#allocation2] sm:$0xff]
          %v386 = vld [vmem:[#allocation2 + $0x8] sm:$0xff]
          %v387 = vld [vmem:[#allocation2 + $0x10] sm:$0xff]
          %v388 = vld [vmem:[#allocation2 + $0x18] sm:$0xff]
          %v389 = vld [vmem:[#allocation2 + $0x20] sm:$0xff]
          %v390 = vld [vmem:[#allocation2 + $0x28] sm:$0xff]
          %v391 = vld [vmem:[#allocation2 + $0x30] sm:$0xff]
          %v392 = vld [vmem:[#allocation2 + $0x38] sm:$0xff]
          %v393 = vld [vmem:[#allocation2 + $0x40] sm:$0xff]
          %v394 = vld [vmem:[#allocation2 + $0x48] sm:$0xff]
          %v395 = vld [vmem:[#allocation2 + $0x50] sm:$0xff]
          %v396 = vld [vmem:[#allocation2 + $0x58] sm:$0xff]
          %v397 = vld [vmem:[#allocation2 + $0x60] sm:$0xff]
          %v398 = vld [vmem:[#allocation2 + $0x68] sm:$0xff]
          %v399 = vld [vmem:[#allocation2 + $0x70] sm:$0xff]
          %v400 = vld [vmem:[#allocation2 + $0x78] sm:$0xff]
          %v401 = vld [vmem:[%s298] sm:$0xf]
          %v402 = vld [vmem:[%s298 + $0x4] sm:$0xf]
          %v403 = vld [vmem:[%s298 + $0x8] sm:$0xf]
          %v404 = vld [vmem:[%s298 + $0xc] sm:$0xf]
          %v405 = vld [vmem:[%s298 + $0x10] sm:$0xf]
          %v406 = vld [vmem:[%s298 + $0x14] sm:$0xf]
          %v407 = vld [vmem:[%s298 + $0x18] sm:$0xf]
          %v408 = vld [vmem:[%s298 + $0x1c] sm:$0xf]
          %v409 = vld [vmem:[%s298 + $0x20] sm:$0xf]
          %v410 = vld [vmem:[%s298 + $0x24] sm:$0xf]
          %v411 = vld [vmem:[%s298 + $0x28] sm:$0xf]
          %v412 = vld [vmem:[%s298 + $0x2c] sm:$0xf]
          %v413 = vld [vmem:[%s298 + $0x30] sm:$0xf]
          %v414 = vld [vmem:[%s298 + $0x34] sm:$0xf]
          %v415 = vld [vmem:[%s298 + $0x38] sm:$0xf]
          %v416 = vld [vmem:[%s298 + $0x3c] sm:$0xf]
          %v433 = vunpack.c.l.b16 %v401
          %v434 = vunpack.c.l.b16 %v402
          %v435 = vunpack.c.l.b16 %v403
          %v436 = vunpack.c.l.b16 %v404
          %v437 = vunpack.c.l.b16 %v405
          %v438 = vunpack.c.l.b16 %v406
          %v439 = vunpack.c.l.b16 %v407
          %v440 = vunpack.c.l.b16 %v408
          %v441 = vunpack.c.l.b16 %v409
          %v442 = vunpack.c.l.b16 %v410
          %v443 = vunpack.c.l.b16 %v411
          %v444 = vunpack.c.l.b16 %v412
          %v445 = vunpack.c.l.b16 %v413
          %v446 = vunpack.c.l.b16 %v414
          %v447 = vunpack.c.l.b16 %v415
          %v448 = vunpack.c.l.b16 %v416
          %v449 = vpack.c.b16 %v434, %v433
          %v450 = vpack.c.b16 %v436, %v435
          %v451 = vpack.c.b16 %v438, %v437
          %v452 = vpack.c.b16 %v440, %v439
          %v453 = vpack.c.b16 %v442, %v441
          %v454 = vpack.c.b16 %v444, %v443
          %v455 = vpack.c.b16 %v446, %v445
          %v456 = vpack.c.b16 %v448, %v447
          %v481 = vunpack.c.l.b16 %v369
          %v482 = vunpack.c.l.b16 %v370
          %v483 = vunpack.c.l.b16 %v371
          %v484 = vunpack.c.l.b16 %v372
          %v485 = vunpack.c.l.b16 %v373
          %v486 = vunpack.c.l.b16 %v374
          %v487 = vunpack.c.l.b16 %v375
          %v488 = vunpack.c.l.b16 %v376
          %v489 = vunpack.c.l.b16 %v377
          %v490 = vunpack.c.l.b16 %v378
          %v491 = vunpack.c.l.b16 %v379
          %v492 = vunpack.c.l.b16 %v380
          %v493 = vunpack.c.l.b16 %v381
          %v494 = vunpack.c.l.b16 %v382
          %v495 = vunpack.c.l.b16 %v383
          %v496 = vunpack.c.l.b16 %v384
          %v497 = vpack.c.b16 %v482, %v481
          %v498 = vpack.c.b16 %v484, %v483
          %v499 = vpack.c.b16 %v486, %v485
          %v500 = vpack.c.b16 %v488, %v487
          %v501 = vpack.c.b16 %v490, %v489
          %v502 = vpack.c.b16 %v492, %v491
          %v503 = vpack.c.b16 %v494, %v493
          %v504 = vpack.c.b16 %v496, %v495
          %513 = vmatprep.subr.bf16.mxu0 0
          %514 = vmatpush1.bf16.msra.mxu0 %v497
          %515 = vmatprep.subr.bf16.mxu0 0
          %516 = vmatpush1.bf16.msra.mxu0 %v498
          %517 = vmatprep.subr.bf16.mxu0 0
          %518 = vmatpush1.bf16.msra.mxu0 %v499
          %519 = vmatprep.subr.bf16.mxu0 0
          %520 = vmatpush1.bf16.msra.mxu0 %v500
          %521 = vmatprep.subr.bf16.mxu0 0
          %522 = vmatpush1.bf16.msra.mxu0 %v501
          %523 = vmatprep.subr.bf16.mxu0 0
          %524 = vmatpush1.bf16.msra.mxu0 %v502
          %525 = vmatprep.subr.bf16.mxu0 0
          %526 = vmatpush1.bf16.msra.mxu0 %v503
          %527 = vmatprep.subr.bf16.mxu0 0
          %528 = vmatpush1.bf16.msra.mxu0 %v504
          %529 = vmatprep.subr.bf16.mxu0 0
          %530 = vmatpush1.bf16.msra.mxu0 0
          %531 = vmatprep.subr.bf16.mxu0 0
          %532 = vmatpush1.bf16.msra.mxu0 0
          %533 = vmatprep.subr.bf16.mxu0 0
          %534 = vmatpush1.bf16.msra.mxu0 0
          %535 = vmatprep.subr.bf16.mxu0 0
          %536 = vmatpush1.bf16.msra.mxu0 0
          %537 = vmatprep.subr.bf16.mxu0 0
          %538 = vmatpush1.bf16.msra.mxu0 0
          %539 = vmatprep.subr.bf16.mxu0 0
          %540 = vmatpush1.bf16.msra.mxu0 0
          %541 = vmatprep.subr.bf16.mxu0 0
          %542 = vmatpush1.bf16.msra.mxu0 0
          %543 = vmatprep.subr.bf16.mxu0 0
          %544 = vmatpush1.bf16.msra.mxu0 0
          %545 = vmatprep.mubr.bf16.mxu0 0
          %546 = vmatmul.mubr.bf16.gmra.mrb[0].mxu0 %v449
          %v547 = vpop.f32.mrb[0].mxu0
          %v548 = vadd.f32 0.0, %v547
          %v549 = vpop.f32.mrb[0].mxu0
          %v550 = vpop.f32.mrb[0].mxu0
          %v551 = vadd.f32 0.0, %v550
          %v552 = vpop.f32.mrb[0].mxu0
          %553 = vmatprep.mubr.bf16.mxu0 0
          %554 = vmatmul.mubr.bf16.gmra.mrb[0].mxu0 %v450
          %v555 = vpop.f32.mrb[0].mxu0
          %v556 = vadd.f32 0.0, %v555
          %v557 = vpop.f32.mrb[0].mxu0
          %v558 = vpop.f32.mrb[0].mxu0
          %v559 = vadd.f32 0.0, %v558
          %v560 = vpop.f32.mrb[0].mxu0
          %561 = vmatprep.mubr.bf16.mxu0 0
          %562 = vmatmul.mubr.bf16.gmra.mrb[0].mxu0 %v451
          %v563 = vpop.f32.mrb[0].mxu0
          %v564 = vadd.f32 0.0, %v563
          %v565 = vpop.f32.mrb[0].mxu0
          %v566 = vpop.f32.mrb[0].mxu0
          %v567 = vadd.f32 0.0, %v566
          %v568 = vpop.f32.mrb[0].mxu0
          %569 = vmatprep.mubr.bf16.mxu0 0
          %570 = vmatmul.mubr.bf16.gmra.mrb[0].mxu0 %v452
          %v571 = vpop.f32.mrb[0].mxu0
          %v572 = vadd.f32 0.0, %v571
          %v573 = vpop.f32.mrb[0].mxu0
          %v574 = vpop.f32.mrb[0].mxu0
          %v575 = vadd.f32 0.0, %v574
          %v576 = vpop.f32.mrb[0].mxu0
          %577 = vmatprep.mubr.bf16.mxu0 0
          %578 = vmatmul.mubr.bf16.gmra.mrb[0].mxu0 %v453
          %v579 = vpop.f32.mrb[0].mxu0
          %v580 = vadd.f32 0.0, %v579
          %v581 = vpop.f32.mrb[0].mxu0
          %v582 = vpop.f32.mrb[0].mxu0
          %v583 = vadd.f32 0.0, %v582
          %v584 = vpop.f32.mrb[0].mxu0
          %585 = vmatprep.mubr.bf16.mxu0 0
          %586 = vmatmul.mubr.bf16.gmra.mrb[0].mxu0 %v454
          %v587 = vpop.f32.mrb[0].mxu0
          %v588 = vadd.f32 0.0, %v587
          %v589 = vpop.f32.mrb[0].mxu0
          %v590 = vpop.f32.mrb[0].mxu0
          %v591 = vadd.f32 0.0, %v590
          %v592 = vpop.f32.mrb[0].mxu0
          %593 = vmatprep.mubr.bf16.mxu0 0
          %594 = vmatmul.mubr.bf16.gmra.mrb[0].mxu0 %v455
          %v595 = vpop.f32.mrb[0].mxu0
          %v596 = vadd.f32 0.0, %v595
          %v597 = vpop.f32.mrb[0].mxu0
          %v598 = vpop.f32.mrb[0].mxu0
          %v599 = vadd.f32 0.0, %v598
          %v600 = vpop.f32.mrb[0].mxu0
          %601 = vmatprep.mubr.bf16.mxu0 0
          %602 = vmatmul.mubr.bf16.gmra.mrb[0].mxu0 %v456
          %v603 = vpop.f32.mrb[0].mxu0
          %v604 = vadd.f32 0.0, %v603
          %v605 = vpop.f32.mrb[0].mxu0
          %v606 = vpop.f32.mrb[0].mxu0
          %v607 = vadd.f32 0.0, %v606
          %v608 = vpop.f32.mrb[0].mxu0
          %609 = vdwg.mxu0
          %v610 = vadd.f32 %v385, %v548
          %v611 = vadd.f32 %v386, %v551
          %v612 = vadd.f32 %v387, %v556
          %v613 = vadd.f32 %v388, %v559
          %v614 = vadd.f32 %v389, %v564
          %v615 = vadd.f32 %v390, %v567
          %v616 = vadd.f32 %v391, %v572
          %v617 = vadd.f32 %v392, %v575
          %v618 = vadd.f32 %v393, %v580
          %v619 = vadd.f32 %v394, %v583
          %v620 = vadd.f32 %v395, %v588
          %v621 = vadd.f32 %v396, %v591
          %v622 = vadd.f32 %v397, %v596
          %v623 = vadd.f32 %v398, %v599
          %v624 = vadd.f32 %v399, %v604
          %v625 = vadd.f32 %v400, %v607
          %626 = vst [vmem:[#allocation2] sm:$0xff] %v610
          %627 = vst [vmem:[#allocation2 + $0x8] sm:$0xff] %v611
          %628 = vst [vmem:[#allocation2 + $0x10] sm:$0xff] %v612
          %629 = vst [vmem:[#allocation2 + $0x18] sm:$0xff] %v613
          %630 = vst [vmem:[#allocation2 + $0x20] sm:$0xff] %v614
          %631 = vst [vmem:[#allocation2 + $0x28] sm:$0xff] %v615
          %632 = vst [vmem:[#allocation2 + $0x30] sm:$0xff] %v616
          %633 = vst [vmem:[#allocation2 + $0x38] sm:$0xff] %v617
          %634 = vst [vmem:[#allocation2 + $0x40] sm:$0xff] %v618
          %635 = vst [vmem:[#allocation2 + $0x48] sm:$0xff] %v619
          %636 = vst [vmem:[#allocation2 + $0x50] sm:$0xff] %v620
          %637 = vst [vmem:[#allocation2 + $0x58] sm:$0xff] %v621
          %638 = vst [vmem:[#allocation2 + $0x60] sm:$0xff] %v622
          %639 = vst [vmem:[#allocation2 + $0x68] sm:$0xff] %v623
          %640 = vst [vmem:[#allocation2 + $0x70] sm:$0xff] %v624
          %641 = vst [vmem:[#allocation2 + $0x78] sm:$0xff] %v625
        $region81: #{_compute_light_out.5} parent=68 // pred_fallthru
          _
        %p642 = scmp.eq.s32.totalorder %s34, 2
        // Predicated region
        $region82: #{_compute_light_out.5} parent=68 // pred_check
          %p643 = pneg %p642
        $region83: #{_compute_light_out.5} parent=68 // pred_check_branch
          %645 = sbr.rel (%p643) target = $region85
        $region84: #{_compute_light_out.5} parent=68 // pred_region
          %v646 = vld [vmem:[%s328] sm:$0xff]
          %v647 = vld [vmem:[%s328 + $0x8] sm:$0xff]
          %v648 = vld [vmem:[%s328 + $0x10] sm:$0xff]
          %v649 = vld [vmem:[%s328 + $0x18] sm:$0xff]
          %v650 = vld [vmem:[%s328 + $0x20] sm:$0xff]
          %v651 = vld [vmem:[%s328 + $0x28] sm:$0xff]
          %v652 = vld [vmem:[%s328 + $0x30] sm:$0xff]
          %v653 = vld [vmem:[%s328 + $0x38] sm:$0xff]
          %v654 = vld [vmem:[%s328 + $0x40] sm:$0xff]
          %v655 = vld [vmem:[%s328 + $0x48] sm:$0xff]
          %v656 = vld [vmem:[%s328 + $0x50] sm:$0xff]
          %v657 = vld [vmem:[%s328 + $0x58] sm:$0xff]
          %v658 = vld [vmem:[%s328 + $0x60] sm:$0xff]
          %v659 = vld [vmem:[%s328 + $0x68] sm:$0xff]
          %v660 = vld [vmem:[%s328 + $0x70] sm:$0xff]
          %v661 = vld [vmem:[%s328 + $0x78] sm:$0xff]
          %v662 = vld [vmem:[#allocation2] sm:$0xff]
          %v663 = vld [vmem:[#allocation2 + $0x8] sm:$0xff]
          %v664 = vld [vmem:[#allocation2 + $0x10] sm:$0xff]
          %v665 = vld [vmem:[#allocation2 + $0x18] sm:$0xff]
          %v666 = vld [vmem:[#allocation2 + $0x20] sm:$0xff]
          %v667 = vld [vmem:[#allocation2 + $0x28] sm:$0xff]
          %v668 = vld [vmem:[#allocation2 + $0x30] sm:$0xff]
          %v669 = vld [vmem:[#allocation2 + $0x38] sm:$0xff]
          %v670 = vld [vmem:[#allocation2 + $0x40] sm:$0xff]
          %v671 = vld [vmem:[#allocation2 + $0x48] sm:$0xff]
          %v672 = vld [vmem:[#allocation2 + $0x50] sm:$0xff]
          %v673 = vld [vmem:[#allocation2 + $0x58] sm:$0xff]
          %v674 = vld [vmem:[#allocation2 + $0x60] sm:$0xff]
          %v675 = vld [vmem:[#allocation2 + $0x68] sm:$0xff]
          %v676 = vld [vmem:[#allocation2 + $0x70] sm:$0xff]
          %v677 = vld [vmem:[#allocation2 + $0x78] sm:$0xff]
          %v678 = vmul.f32 %v662, 0.06666667
          %v679 = vmul.f32 %v663, 0.06666667
          %v680 = vmul.f32 %v664, 0.06666667
          %v681 = vmul.f32 %v665, 0.06666667
          %v682 = vmul.f32 %v666, 0.06666667
          %v683 = vmul.f32 %v667, 0.06666667
          %v684 = vmul.f32 %v668, 0.06666667
          %v685 = vmul.f32 %v669, 0.06666667
          %v686 = vmul.f32 %v670, 0.06666667
          %v687 = vmul.f32 %v671, 0.06666667
          %v688 = vmul.f32 %v672, 0.06666667
          %v689 = vmul.f32 %v673, 0.06666667
          %v690 = vmul.f32 %v674, 0.06666667
          %v691 = vmul.f32 %v675, 0.06666667
          %v692 = vmul.f32 %v676, 0.06666667
          %v693 = vmul.f32 %v677, 0.06666667
          %v694 = vadd.f32 %v646, %v678
          %v695 = vadd.f32 %v647, %v679
          %v696 = vadd.f32 %v648, %v680
          %v697 = vadd.f32 %v649, %v681
          %v698 = vadd.f32 %v650, %v682
          %v699 = vadd.f32 %v651, %v683
          %v700 = vadd.f32 %v652, %v684
          %v701 = vadd.f32 %v653, %v685
          %v702 = vadd.f32 %v654, %v686
          %v703 = vadd.f32 %v655, %v687
          %v704 = vadd.f32 %v656, %v688
          %v705 = vadd.f32 %v657, %v689
          %v706 = vadd.f32 %v658, %v690
          %v707 = vadd.f32 %v659, %v691
          %v708 = vadd.f32 %v660, %v692
          %v709 = vadd.f32 %v661, %v693
          %710 = vst [vmem:[%s323] sm:$0xff] %v694
          %711 = vst [vmem:[%s323 + $0x8] sm:$0xff] %v695
          %712 = vst [vmem:[%s323 + $0x10] sm:$0xff] %v696
          %713 = vst [vmem:[%s323 + $0x18] sm:$0xff] %v697
          %714 = vst [vmem:[%s323 + $0x20] sm:$0xff] %v698
          %715 = vst [vmem:[%s323 + $0x28] sm:$0xff] %v699
          %716 = vst [vmem:[%s323 + $0x30] sm:$0xff] %v700
          %717 = vst [vmem:[%s323 + $0x38] sm:$0xff] %v701
          %718 = vst [vmem:[%s323 + $0x40] sm:$0xff] %v702
          %719 = vst [vmem:[%s323 + $0x48] sm:$0xff] %v703
          %720 = vst [vmem:[%s323 + $0x50] sm:$0xff] %v704
          %721 = vst [vmem:[%s323 + $0x58] sm:$0xff] %v705
          %722 = vst [vmem:[%s323 + $0x60] sm:$0xff] %v706
          %723 = vst [vmem:[%s323 + $0x68] sm:$0xff] %v707
          %724 = vst [vmem:[%s323 + $0x70] sm:$0xff] %v708
          %725 = vst [vmem:[%s323 + $0x78] sm:$0xff] %v709
        $region85: #{_compute_light_out.5} parent=68 // pred_fallthru
          _
        %s726 = sand.u32 %s130, 1
        %s727 = scalar_lea.sflag [#allocation8], %s726
        %s728 = sand.u32 %s130, 1
        %s729 = smul.addr %s728, 128
        %s730 = scalar_lea.vmem [#allocation7], %s729
        // Predicated region
        $region86: #{_compute_light_out.5} parent=68 // pred_check
          %p731 = pneg %p140
        $region87: #{_compute_light_out.5} parent=68 // pred_check_branch
          %733 = sbr.rel (%p731) target = $region89
        $region88: #{_compute_light_out.5} parent=68 // pred_region
          %s734 = smul.u32 16, %s33
          %s736 = ssub.s32 2048, 2048
          %737 = vsyncadd %s727, %s736
          %s738 = smul.addr %s734, 128
          %s739 = scalar_lea.hbm %s5, %s738
          %s740 = sshll.u32 %s730, 4
          %s741 = int_to_ptr.vmem [resolvable:$true] %s740
          %746 = dma.vmem_to_hbm [thread:$0]  %s741, 2048, %s739, %s727, 128, 128, 8
        $region89: #{_compute_light_out.5} parent=68 // pred_fallthru
          _
      $region69: #{_compute_light_out.5} parent=5 // pred_fallthru
        _
      %p747 = scmp.le.s32.totalorder 2, %s24
      // Predicated region
      $region90: #{_compute_light_out.5} parent=5 // pred_check
        %p748 = pneg %p747
      $region91: #{_compute_light_out.5} parent=5 // pred_check_branch
        %750 = sbr.rel (%p748) target = $region93
      $region92: #{_compute_light_out.5} parent=5 // pred_region
        %s751 = ssub.s32 %s24, 2
        // Predicated region
        $region94: #{_compute_light_out.5} parent=92 // pred_check
          %p752 = pneg %p146
        $region95: #{_compute_light_out.5} parent=92 // pred_check_branch
          %754 = sbr.rel (%p752) target = $region97
        $region96: #{_compute_light_out.5} parent=92 // pred_region
          %s755 = sand.u32 %s131, 1
          %s756 = scalar_lea.sflag [#allocation8], %s755
          %s757 = sand.u32 %s131, 1
          %s758 = smul.addr %s757, 128
          %s759 = scalar_lea.vmem [#allocation7], %s758
          %760 = dma.done %s756, 2048
        $region97: #{_compute_light_out.5} parent=92 // pred_fallthru
          _
      $region93: #{_compute_light_out.5} parent=5 // pred_fallthru
        _
    $region6: #{_compute_light_out.5} parent=1 // loop_footer
      %s28 = sadd.s32 1, %s24
    $region7: #{_compute_light_out.5} parent=1 // loop_footer_branch
      %23 = sbr.rel target = $region3
    $region8: #{_compute_light_out.5} parent=1 // loop_exit
      _
    %761 = vsyncpa [#allocation8], 1
    %s762 = scalar_lea.sflag [#allocation8], 1
    %763 = vsyncpa %s762, 1

// kernel: _compute_light_out.4
$region0: #{_compute_light_out.4}
  #allocation0 [shape = 'u32[]', space=smem, size = 0x4, offset = 0x4, fixed_abs, tag = 'smem constant byte address 0x4 - core index']
  #allocation1 [shape = 'u32[144,128]{1,0:T(1,128)}', space=vmem, size = 0x12000, scoped, tag = 'internal scratch']
  #allocation2 [shape = 'f32[128,128]{1,0:T(8,128)}', space=vmem, size = 0x10000, scoped, tag = 'scratch operand']
  #allocation3 [shape = 's32[1]{0}', space=sflag, size = 0x4, scoped, tag = 'scoped memory for _compute_light_out.4']
  #allocation4 [shape = 'u8[512]{0}', space=smem, size = 0x200, scoped, tag = 'prefetched SMEM operand 0']
  #allocation5 [shape = 'u8[512]{0}', space=smem, size = 0x200, scoped, tag = 'prefetched SMEM operand 1']
  %s0 = inlined_call_operand.vmem [shape: s32[9], index: 0, kind: input, shape index: {}]
  %s1 = inlined_call_operand.vmem [shape: s32[3], index: 1, kind: input, shape index: {}]
  %s2 = inlined_call_operand.vmem [shape: f32[384,128], index: 2, kind: input, shape index: {}]
  %s3 = inlined_call_operand.vmem [shape: bf16[384,384], index: 3, kind: input, shape index: {}]
  %s4 = inlined_call_operand.vmem [shape: bf16[384,128], index: 4, kind: input, shape index: {}]
  %s5 = inlined_call_operand.vmem [shape: f32[384,128], index: 5, kind: output, shape index: {0}]
  %s6 = inlined_call_operand.vmem [shape: bf16[384,128], index: 6, kind: output, shape index: {1}]
  %7 = xla_tuple %s5, %s6
  %s8 = sld [smem:[#allocation0]]
  $region106: #{_compute_light_out.4} parent=0
    _
  %s10 = ssub.s32 1, %s8
  %s11 = scalar_select 0, %s10, %s8
  %s12 = sshll.u32 %s0, 4
  %s13 = int_to_ptr.vmem [resolvable:$true] %s12
  %15 = dma.vmem_to_smem %s13, 16, [#allocation4], [#allocation3]
  %s16 = sshll.u32 %s1, 4
  %s17 = int_to_ptr.vmem [resolvable:$true] %s16
  %19 = dma.vmem_to_smem %s17, 16, [#allocation5], [#allocation3]
  %20 = dma.done [#allocation3], 32
  %21 = sfence
  $region1: #{_compute_light_out.4} parent=0
    #allocation6 [shape = 'u8[65536]{0}', space=vmem, size = 0x10000, scoped, tag = 'input window, operand 3']
    loop: start=0, step=1, limit=11
    $region2: #{_compute_light_out.4} parent=1 // loop_pre_header
      _
    $region3: #{_compute_light_out.4} parent=1 // loop_header
      %s23 = sphi 0, %s27
      %p24 = scmp.ge.s32.totalorder %s23, 11
      %s30 = sphi 0, %s42
      %s31 = sphi 0, %s38
      %s32 = sphi 0, %s30
      %s33 = sphi 0, %s31
      %s34 = sphi 0, %s32
      %s35 = sphi 0, %s33
      %s45 = sphi 0, %s47
      %s48 = sphi 0, %s45
      %s49 = sphi 0, %s48
      %s65 = sphi 0, %s49
      %s79 = sphi 0, %s81
      %s82 = sphi 0, %s79
      %s83 = sphi 0, %s82
      %s99 = sphi 0, %s83
      %s103 = sphi 0, %s103
      %s105 = sphi 0, %s103
      %s106 = sphi 0, %s105
      %s120 = sphi 0, %s106
      %s126 = sphi 0, %s128
      %s129 = sphi 0, %s126
      %s130 = sphi 0, %s129
      %s146 = sphi 0, %s130
      %s152 = sphi 0, %s154
      %s155 = sphi 0, %s152
      %s156 = sphi 0, %s155
      %s172 = sphi 0, %s156
    $region4: #{_compute_light_out.4} parent=1 // loop_header_branch
      %26 = sbr.rel (%p24) target = $region8
    $region5: #{_compute_light_out.4} parent=1 // loop_body
      %s28 = ssub.s32 %s23, 1
      %s29 = ssub.s32 %s23, 2
      %s36 = sadd.s32 1, %s31
      %p37 = scmp.ge.s32.totalorder %s36, 3
      %s38 = scalar_select %p37, 0, %s36
      %s39 = sadd.s32 1, %s30
      %s40 = scalar_select %p37, %s39, %s30
      %p41 = scmp.ge.s32.totalorder %s40, 3
      %s42 = scalar_select %p41, 0, %s40
      %s43 = ssub.s32 %s30, %s42
      %p44 = scmp.eq.s32.totalorder %s43, 0
      %s46 = sadd.s32 %s45, 1
      %s47 = scalar_select %p44, %s45, %s46
      %p50 = pneg %p44
      %p51 = scmp.eq.s32.totalorder %s23, 8
      %p52 = por %p50, %p51
      %p53 = scmp.ne.s32.totalorder %s45, %s48
      %p54 = scmp.eq.s32.totalorder %s23, 0
      %p55 = por %p53, %p54
      %p56 = scmp.ne.s32.totalorder %s45, %s48
      %p57 = scmp.eq.s32.totalorder %s28, 8
      %p58 = por %p56, %p57
      %p59 = scmp.ne.s32.totalorder %s48, %s49
      %p60 = scmp.eq.s32.totalorder %s28, 0
      %p61 = por %p59, %p60
      %p62 = scmp.ne.s32.totalorder %s48, %s49
      %p63 = scmp.eq.s32.totalorder %s29, 8
      %p64 = por %p62, %p63
      %p66 = scmp.ne.s32.totalorder %s49, %s65
      %p67 = scmp.eq.s32.totalorder %s29, 0
      %p68 = por %p66, %p67
      %s69 = smul.u32 %s30, 3
      %s70 = sadd.s32 %s69, %s31
      %s71 = sld [smem:[#allocation4 + %s70]]
      %s72 = smul.u32 %s42, 3
      %s73 = sadd.s32 %s72, %s38
      %s74 = sld [smem:[#allocation4 + %s73]]
      %s75 = ssub.s32 %s30, %s42
      %s76 = ssub.s32 %s71, %s74
      %s77 = sor.u32 %s75, %s76
      %p78 = scmp.eq.s32.totalorder %s77, 0
      %s80 = sadd.s32 %s79, 1
      %s81 = scalar_select %p78, %s79, %s80
      %p84 = pneg %p78
      %p85 = scmp.eq.s32.totalorder %s23, 8
      %p86 = por %p84, %p85
      %p87 = scmp.ne.s32.totalorder %s79, %s82
      %p88 = scmp.eq.s32.totalorder %s23, 0
      %p89 = por %p87, %p88
      %p90 = scmp.ne.s32.totalorder %s79, %s82
      %p91 = scmp.eq.s32.totalorder %s28, 8
      %p92 = por %p90, %p91
      %p93 = scmp.ne.s32.totalorder %s82, %s83
      %p94 = scmp.eq.s32.totalorder %s28, 0
      %p95 = por %p93, %p94
      %p96 = scmp.ne.s32.totalorder %s82, %s83
      %p97 = scmp.eq.s32.totalorder %s29, 8
      %p98 = por %p96, %p97
      %p100 = scmp.ne.s32.totalorder %s83, %s99
      %p101 = scmp.eq.s32.totalorder %s29, 0
      %p102 = por %p100, %p101
      %s104 = sadd.s32 %s103, 1
      %p107 = scmp.eq.s32.totalorder %s23, 8
      %p108 = scmp.ne.s32.totalorder %s103, %s105
      %p109 = scmp.eq.s32.totalorder %s23, 0
      %p110 = por %p108, %p109
      %p111 = scmp.ne.s32.totalorder %s103, %s105
      %p112 = scmp.eq.s32.totalorder %s28, 8
      %p113 = por %p111, %p112
      %p114 = scmp.ne.s32.totalorder %s105, %s106
      %p115 = scmp.eq.s32.totalorder %s28, 0
      %p116 = por %p114, %p115
      %p117 = scmp.ne.s32.totalorder %s105, %s106
      %p118 = scmp.eq.s32.totalorder %s29, 8
      %p119 = por %p117, %p118
      %p121 = scmp.ne.s32.totalorder %s106, %s120
      %p122 = scmp.eq.s32.totalorder %s29, 0
      %p123 = por %p121, %p122
      %s124 = ssub.s32 %s30, %s42
      %p125 = scmp.eq.s32.totalorder %s124, 0
      %s127 = sadd.s32 %s126, 1
      %s128 = scalar_select %p125, %s126, %s127
      %p131 = pneg %p125
      %p132 = scmp.eq.s32.totalorder %s23, 8
      %p133 = por %p131, %p132
      %p134 = scmp.ne.s32.totalorder %s126, %s129
      %p135 = scmp.eq.s32.totalorder %s23, 0
      %p136 = por %p134, %p135
      %p137 = scmp.ne.s32.totalorder %s126, %s129
      %p138 = scmp.eq.s32.totalorder %s28, 8
      %p139 = por %p137, %p138
      %p140 = scmp.ne.s32.totalorder %s129, %s130
      %p141 = scmp.eq.s32.totalorder %s28, 0
      %p142 = por %p140, %p141
      %p143 = scmp.ne.s32.totalorder %s129, %s130
      %p144 = scmp.eq.s32.totalorder %s29, 8
      %p145 = por %p143, %p144
      %p147 = scmp.ne.s32.totalorder %s130, %s146
      %p148 = scmp.eq.s32.totalorder %s29, 0
      %p149 = por %p147, %p148
      %s150 = ssub.s32 %s30, %s42
      %p151 = scmp.eq.s32.totalorder %s150, 0
      %s153 = sadd.s32 %s152, 1
      %s154 = scalar_select %p151, %s152, %s153
      %p157 = pneg %p151
      %p158 = scmp.eq.s32.totalorder %s23, 8
      %p159 = por %p157, %p158
      %p160 = scmp.ne.s32.totalorder %s152, %s155
      %p161 = scmp.eq.s32.totalorder %s23, 0
      %p162 = por %p160, %p161
      %p163 = scmp.ne.s32.totalorder %s152, %s155
      %p164 = scmp.eq.s32.totalorder %s28, 8
      %p165 = por %p163, %p164
      %p166 = scmp.ne.s32.totalorder %s155, %s156
      %p167 = scmp.eq.s32.totalorder %s28, 0
      %p168 = por %p166, %p167
      %p169 = scmp.ne.s32.totalorder %s155, %s156
      %p170 = scmp.eq.s32.totalorder %s29, 8
      %p171 = por %p169, %p170
      %p173 = scmp.ne.s32.totalorder %s156, %s172
      %p174 = scmp.eq.s32.totalorder %s29, 0
      %p175 = por %p173, %p174
      %p176 = scmp.le.s32.totalorder 1, %s23
      %p177 = scmp.lt.s32.totalorder %s23, 10
      %p178 = pnand %p176, %p177
      %p179 = pneg %p178
      // Predicated region
      $region9: #{_compute_light_out.4} parent=5 // pred_check
        _
      $region10: #{_compute_light_out.4} parent=5 // pred_check_branch
        %181 = sbr.rel (%p178) target = $region12
      $region11: #{_compute_light_out.4} parent=5 // pred_region
        %s182 = ssub.s32 %s23, 1
        // Predicated region
        $region13: #{_compute_light_out.4} parent=11 // pred_check
          %p183 = pneg %p116
        $region14: #{_compute_light_out.4} parent=11 // pred_check_branch
          %185 = sbr.rel (%p183) target = $region16
        $region15: #{_compute_light_out.4} parent=11 // pred_region
          _
        $region16: #{_compute_light_out.4} parent=11 // pred_fallthru
          _
      $region12: #{_compute_light_out.4} parent=5 // pred_fallthru
        _
      %p186 = scmp.lt.s32.totalorder %s23, 9
      // Predicated region
      $region17: #{_compute_light_out.4} parent=5 // pred_check
        %p187 = pneg %p186
      $region18: #{_compute_light_out.4} parent=5 // pred_check_branch
        %189 = sbr.rel (%p187) target = $region20
      $region19: #{_compute_light_out.4} parent=5 // pred_region
        // Predicated region
        $region21: #{_compute_light_out.4} parent=19 // pred_check
          %p190 = pneg %p55
        $region22: #{_compute_light_out.4} parent=19 // pred_check_branch
          %192 = sbr.rel (%p190) target = $region24
        $region23: #{_compute_light_out.4} parent=19 // pred_region
          %s193 = smul.u32 16, %s30
          %p194 = scmp.lt.s32.totalorder %s193, 47
          %s195 = scalar_select %p194, %s193, 47
          %s196 = smul.addr %s195, 8
          %s197 = scalar_lea.vmem %s2, %s196
          %s198 = smul.u32 16, %s30
        $region24: #{_compute_light_out.4} parent=19 // pred_fallthru
          _
        // Predicated region
        $region25: #{_compute_light_out.4} parent=19 // pred_check
          %p199 = pneg %p89
        $region26: #{_compute_light_out.4} parent=19 // pred_check_branch
          %201 = sbr.rel (%p199) target = $region28
        $region27: #{_compute_light_out.4} parent=19 // pred_region
          %s202 = sand.u32 %s79, 1
          %s203 = sand.u32 %s79, 1
          %s204 = smul.addr %s203, 64
          %s205 = scalar_lea.vmem [#allocation6], %s204
          %s206 = smul.u32 %s30, 3
          %s207 = sadd.s32 %s206, %s31
          %s208 = sld [smem:[#allocation4 + %s207]]
          %s209 = smul.u32 16, %s30
          %s210 = smul.addr %s209, 3
          %s211 = sadd.s32 %s208, %s210
          %s212 = smul.addr %s211, 4
          %s213 = scalar_lea.vmem %s3, %s212
          // Predicated region
          $region29: #{_compute_light_out.4} parent=27 // pred_check
            _
          $region30: #{_compute_light_out.4} parent=27 // pred_check_branch
            %215 = sbr.rel (0) target = $region32
          $region31: #{_compute_light_out.4} parent=27 // pred_region
            // Predicated region
            $region33: #{_compute_light_out.4} parent=31 // pred_check
              _
            $region34: #{_compute_light_out.4} parent=31 // pred_check_branch
              %217 = sbr.rel target = $region36
            $region35: #{_compute_light_out.4} parent=31 // pred_region
              // Predicated region
              $region48: #{_compute_light_out.4} parent=35 // pred_check
                _
              $region49: #{_compute_light_out.4} parent=35 // pred_check_branch
                %262 = sbr.rel (0) target = $region51
              $region50: #{_compute_light_out.4} parent=35 // pred_region
                loop: start=0, step=1, limit=1
                $region52: #{_compute_light_out.4} parent=50 // loop_pre_header
                  _
                $region53: #{_compute_light_out.4} parent=50 // loop_header
                  %s264 = sphi 0, %s268
                  %p265 = scmp.ge.s32.totalorder %s264, 1
                  %s269 = sphi %s213, %s213
                  %s270 = sphi %s205, %s205
                $region54: #{_compute_light_out.4} parent=50 // loop_header_branch
                  %267 = sbr.rel (%p265) target = $region58
                $region55: #{_compute_light_out.4} parent=50 // loop_body
                  _
                $region56: #{_compute_light_out.4} parent=50 // loop_footer
                  %s268 = sadd.s32 1, %s264
                $region57: #{_compute_light_out.4} parent=50 // loop_footer_branch
                  %263 = sbr.rel target = $region53
                $region58: #{_compute_light_out.4} parent=50 // loop_exit
                  _
                loop: start=0, step=1, limit=1
                $region59: #{_compute_light_out.4} parent=50 // loop_pre_header
                  _
                $region60: #{_compute_light_out.4} parent=50 // loop_header
                  %s273 = sphi 0, %s277
                  %p274 = scmp.ge.s32.totalorder %s273, 1
                  %s278 = sphi %s213, %s213
                  %s279 = sphi %s205, %s205
                $region61: #{_compute_light_out.4} parent=50 // loop_header_branch
                  %276 = sbr.rel (%p274) target = $region65
                $region62: #{_compute_light_out.4} parent=50 // loop_body
                  %v280 = vld [vmem:[%s278] sm:$0xf]
                  %281 = vst [vmem:[%s279] sm:$0xf] %v280
                  %v282 = vld [vmem:[%s278 + $0xc] sm:$0xf]
                  %283 = vst [vmem:[%s279 + $0x4] sm:$0xf] %v282
                  %v284 = vld [vmem:[%s278 + $0x18] sm:$0xf]
                  %285 = vst [vmem:[%s279 + $0x8] sm:$0xf] %v284
                  %v286 = vld [vmem:[%s278 + $0x24] sm:$0xf]
                  %287 = vst [vmem:[%s279 + $0xc] sm:$0xf] %v286
                  %v288 = vld [vmem:[%s278 + $0x30] sm:$0xf]
                  %289 = vst [vmem:[%s279 + $0x10] sm:$0xf] %v288
                  %v290 = vld [vmem:[%s278 + $0x3c] sm:$0xf]
                  %291 = vst [vmem:[%s279 + $0x14] sm:$0xf] %v290
                  %v292 = vld [vmem:[%s278 + $0x48] sm:$0xf]
                  %293 = vst [vmem:[%s279 + $0x18] sm:$0xf] %v292
                  %v294 = vld [vmem:[%s278 + $0x54] sm:$0xf]
                  %295 = vst [vmem:[%s279 + $0x1c] sm:$0xf] %v294
                  %v296 = vld [vmem:[%s278 + $0x60] sm:$0xf]
                  %297 = vst [vmem:[%s279 + $0x20] sm:$0xf] %v296
                  %v298 = vld [vmem:[%s278 + $0x6c] sm:$0xf]
                  %299 = vst [vmem:[%s279 + $0x24] sm:$0xf] %v298
                  %v300 = vld [vmem:[%s278 + $0x78] sm:$0xf]
                  %301 = vst [vmem:[%s279 + $0x28] sm:$0xf] %v300
                  %v302 = vld [vmem:[%s278 + $0x84] sm:$0xf]
                  %303 = vst [vmem:[%s279 + $0x2c] sm:$0xf] %v302
                  %v304 = vld [vmem:[%s278 + $0x90] sm:$0xf]
                  %305 = vst [vmem:[%s279 + $0x30] sm:$0xf] %v304
                  %v306 = vld [vmem:[%s278 + $0x9c] sm:$0xf]
                  %307 = vst [vmem:[%s279 + $0x34] sm:$0xf] %v306
                  %v308 = vld [vmem:[%s278 + $0xa8] sm:$0xf]
                  %309 = vst [vmem:[%s279 + $0x38] sm:$0xf] %v308
                  %v310 = vld [vmem:[%s278 + $0xb4] sm:$0xf]
                  %311 = vst [vmem:[%s279 + $0x3c] sm:$0xf] %v310
                $region63: #{_compute_light_out.4} parent=50 // loop_footer
                  %s277 = sadd.s32 1, %s273
                $region64: #{_compute_light_out.4} parent=50 // loop_footer_branch
                  %272 = sbr.rel target = $region60
                $region65: #{_compute_light_out.4} parent=50 // loop_exit
                  _
              $region51: #{_compute_light_out.4} parent=35 // pred_fallthru
                _
            $region36: #{_compute_light_out.4} parent=31 // pred_fallthru
              _
            // Predicated region
            $region37: #{_compute_light_out.4} parent=31 // pred_check
              _
            $region38: #{_compute_light_out.4} parent=31 // pred_check_branch
              %219 = sbr.rel (0) target = $region40
            $region39: #{_compute_light_out.4} parent=31 // pred_region
              loop: start=0, step=1, limit=1
              $region41: #{_compute_light_out.4} parent=39 // loop_pre_header
                _
              $region42: #{_compute_light_out.4} parent=39 // loop_header
                %s222 = sphi 0, %s226
                %p223 = scmp.ge.s32.totalorder %s222, 1
                %s227 = sphi %s213, %s213
                %s228 = sphi %s205, %s205
              $region43: #{_compute_light_out.4} parent=39 // loop_header_branch
                %225 = sbr.rel (%p223) target = $region47
              $region44: #{_compute_light_out.4} parent=39 // loop_body
                %v229 = vld [vmem:[%s227] sm:$0xf]
                %230 = vst [vmem:[%s228] sm:$0xf] %v229
                %v231 = vld [vmem:[%s227 + $0xc] sm:$0xf]
                %232 = vst [vmem:[%s228 + $0x4] sm:$0xf] %v231
                %v233 = vld [vmem:[%s227 + $0x18] sm:$0xf]
                %234 = vst [vmem:[%s228 + $0x8] sm:$0xf] %v233
                %v235 = vld [vmem:[%s227 + $0x24] sm:$0xf]
                %236 = vst [vmem:[%s228 + $0xc] sm:$0xf] %v235
                %v237 = vld [vmem:[%s227 + $0x30] sm:$0xf]
                %238 = vst [vmem:[%s228 + $0x10] sm:$0xf] %v237
                %v239 = vld [vmem:[%s227 + $0x3c] sm:$0xf]
                %240 = vst [vmem:[%s228 + $0x14] sm:$0xf] %v239
                %v241 = vld [vmem:[%s227 + $0x48] sm:$0xf]
                %242 = vst [vmem:[%s228 + $0x18] sm:$0xf] %v241
                %v243 = vld [vmem:[%s227 + $0x54] sm:$0xf]
                %244 = vst [vmem:[%s228 + $0x1c] sm:$0xf] %v243
                %v245 = vld [vmem:[%s227 + $0x60] sm:$0xf]
                %246 = vst [vmem:[%s228 + $0x20] sm:$0xf] %v245
                %v247 = vld [vmem:[%s227 + $0x6c] sm:$0xf]
                %248 = vst [vmem:[%s228 + $0x24] sm:$0xf] %v247
                %v249 = vld [vmem:[%s227 + $0x78] sm:$0xf]
                %250 = vst [vmem:[%s228 + $0x28] sm:$0xf] %v249
                %v251 = vld [vmem:[%s227 + $0x84] sm:$0xf]
                %252 = vst [vmem:[%s228 + $0x2c] sm:$0xf] %v251
                %v253 = vld [vmem:[%s227 + $0x90] sm:$0xf]
                %254 = vst [vmem:[%s228 + $0x30] sm:$0xf] %v253
                %v255 = vld [vmem:[%s227 + $0x9c] sm:$0xf]
                %256 = vst [vmem:[%s228 + $0x34] sm:$0xf] %v255
                %v257 = vld [vmem:[%s227 + $0xa8] sm:$0xf]
                %258 = vst [vmem:[%s228 + $0x38] sm:$0xf] %v257
                %v259 = vld [vmem:[%s227 + $0xb4] sm:$0xf]
                %260 = vst [vmem:[%s228 + $0x3c] sm:$0xf] %v259
              $region45: #{_compute_light_out.4} parent=39 // loop_footer
                %s226 = sadd.s32 1, %s222
              $region46: #{_compute_light_out.4} parent=39 // loop_footer_branch
                %221 = sbr.rel target = $region42
              $region47: #{_compute_light_out.4} parent=39 // loop_exit
                _
            $region40: #{_compute_light_out.4} parent=31 // pred_fallthru
              _
          $region32: #{_compute_light_out.4} parent=27 // pred_fallthru
            _
          %312 = vnop
        $region28: #{_compute_light_out.4} parent=19 // pred_fallthru
          _
      $region20: #{_compute_light_out.4} parent=5 // pred_fallthru
        _
      %p313 = scmp.le.s32.totalorder 1, %s23
      %p314 = scmp.lt.s32.totalorder %s23, 10
      %p315 = pnand %p313, %p314
      %p316 = pneg %p315
      // Predicated region
      $region66: #{_compute_light_out.4} parent=5 // pred_check
        _
      $region67: #{_compute_light_out.4} parent=5 // pred_check_branch
        %318 = sbr.rel (%p315) target = $region69
      $region68: #{_compute_light_out.4} parent=5 // pred_region
        %s319 = ssub.s32 %s23, 1
        %s320 = sand.u32 %s82, 1
        %s321 = sand.u32 %s82, 1
        %s322 = smul.addr %s321, 64
        %s323 = scalar_lea.vmem [#allocation6], %s322
        // Predicated region
        $region70: #{_compute_light_out.4} parent=68 // pred_check
          %p324 = pneg %p95
        $region71: #{_compute_light_out.4} parent=68 // pred_check_branch
          %326 = sbr.rel (%p324) target = $region73
        $region72: #{_compute_light_out.4} parent=68 // pred_region
          _
        $region73: #{_compute_light_out.4} parent=68 // pred_fallthru
          _
        %s327 = smul.u32 16, %s32
        %p328 = scmp.lt.s32.totalorder %s327, 47
        %s329 = scalar_select %p328, %s327, 47
        %s330 = smul.addr %s329, 8
        %s331 = scalar_lea.vmem %s2, %s330
        %p332 = pneg %p61
        %p333 = pneg %p58
        %s334 = sand.u32 %s82, 1
        %s335 = sand.u32 %s82, 1
        %s336 = smul.addr %s335, 64
        %s337 = scalar_lea.vmem [#allocation6], %s336
        %p338 = pneg %p95
        %p339 = pneg %p92
        %p340 = pneg %p116
        %p341 = pneg %p113
        %p342 = pneg %p142
        %p343 = pneg %p139
        %s344 = smul.u32 16, %s32
        %p345 = scmp.lt.s32.totalorder %s344, 47
        %s346 = scalar_select %p345, %s344, 47
        %s347 = smul.addr %s346, 8
        %s348 = scalar_lea.vmem %s5, %s347
        %p349 = pneg %p168
        %p350 = pneg %p165
        %s351 = smul.u32 16, %s32
        %p352 = scmp.lt.s32.totalorder %s351, 47
        %s353 = scalar_select %p352, %s351, 47
        %s354 = smul.addr %s353, 4
        %s355 = scalar_lea.vmem %s6, %s354
        %s356 = smul.u32 16, %s32
        %p357 = scmp.lt.s32.totalorder %s356, 47
        %s358 = scalar_select %p357, %s356, 47
        %s359 = smul.addr %s358, 8
        %s360 = scalar_lea.vmem %s2, %s359
        %s361 = smul.u32 16, %s32
        %s362 = smul.u32 %s32, 3
        %s363 = sadd.s32 %s362, %s33
        %s364 = sld [smem:[#allocation4 + %s363]]
        %s365 = smul.u32 16, %s32
        %s366 = smul.u32 16, %s32
        %p367 = scmp.lt.s32.totalorder %s366, 47
        %s368 = scalar_select %p367, %s366, 47
        %s369 = smul.addr %s368, 8
        %s370 = scalar_lea.vmem %s5, %s369
        %s371 = smul.u32 16, %s32
        %s372 = smul.u32 16, %s32
        %p373 = scmp.lt.s32.totalorder %s372, 47
        %s374 = scalar_select %p373, %s372, 47
        %s375 = smul.addr %s374, 4
        %s376 = scalar_lea.vmem %s6, %s375
        %s377 = smul.u32 16, %s32
        %p379 = scmp.eq.s32.totalorder %s33, 0
        // Predicated region
        $region74: #{_compute_light_out.4} parent=68 // pred_check
          %p380 = pneg %p379
        $region75: #{_compute_light_out.4} parent=68 // pred_check_branch
          %382 = sbr.rel (%p380) target = $region77
        $region76: #{_compute_light_out.4} parent=68 // pred_region
          %383 = vst [vmem:[#allocation2] sm:$0xff] 0.0
          %384 = vst [vmem:[#allocation2 + $0x8] sm:$0xff] 0.0
          %385 = vst [vmem:[#allocation2 + $0x10] sm:$0xff] 0.0
          %386 = vst [vmem:[#allocation2 + $0x18] sm:$0xff] 0.0
          %387 = vst [vmem:[#allocation2 + $0x20] sm:$0xff] 0.0
          %388 = vst [vmem:[#allocation2 + $0x28] sm:$0xff] 0.0
          %389 = vst [vmem:[#allocation2 + $0x30] sm:$0xff] 0.0
          %390 = vst [vmem:[#allocation2 + $0x38] sm:$0xff] 0.0
          %391 = vst [vmem:[#allocation2 + $0x40] sm:$0xff] 0.0
          %392 = vst [vmem:[#allocation2 + $0x48] sm:$0xff] 0.0
          %393 = vst [vmem:[#allocation2 + $0x50] sm:$0xff] 0.0
          %394 = vst [vmem:[#allocation2 + $0x58] sm:$0xff] 0.0
          %395 = vst [vmem:[#allocation2 + $0x60] sm:$0xff] 0.0
          %396 = vst [vmem:[#allocation2 + $0x68] sm:$0xff] 0.0
          %397 = vst [vmem:[#allocation2 + $0x70] sm:$0xff] 0.0
          %398 = vst [vmem:[#allocation2 + $0x78] sm:$0xff] 0.0
        $region77: #{_compute_light_out.4} parent=68 // pred_fallthru
          _
        %s399 = sld [smem:[#allocation5 + %s32]]
        %p400 = scmp.lt.s32.totalorder %s33, %s399
        // Predicated region
        $region78: #{_compute_light_out.4} parent=68 // pred_check
          %p401 = pneg %p400
        $region79: #{_compute_light_out.4} parent=68 // pred_check_branch
          %403 = sbr.rel (%p401) target = $region81
        $region80: #{_compute_light_out.4} parent=68 // pred_region
          %s404 = smul.u32 %s32, 3
          %s405 = sadd.s32 %s404, %s33
          %s406 = sld [smem:[#allocation4 + %s405]]
          %s407 = smul.u32 %s406, 128
          %s408 = sshra.s32 %s407, 3
          %s409 = sand.u32 %s407, 7
          %s410 = smul.addr %s408, 4
          %s411 = scalar_lea.vmem %s4, %s410
          %v412 = vld [vmem:[%s411] sm:$0xf]
          %v413 = vld [vmem:[%s411 + $0x4] sm:$0xf]
          %v414 = vld [vmem:[%s411 + $0x8] sm:$0xf]
          %v415 = vld [vmem:[%s411 + $0xc] sm:$0xf]
          %v416 = vld [vmem:[%s411 + $0x10] sm:$0xf]
          %v417 = vld [vmem:[%s411 + $0x14] sm:$0xf]
          %v418 = vld [vmem:[%s411 + $0x18] sm:$0xf]
          %v419 = vld [vmem:[%s411 + $0x1c] sm:$0xf]
          %v420 = vld [vmem:[%s411 + $0x20] sm:$0xf]
          %v421 = vld [vmem:[%s411 + $0x24] sm:$0xf]
          %v422 = vld [vmem:[%s411 + $0x28] sm:$0xf]
          %v423 = vld [vmem:[%s411 + $0x2c] sm:$0xf]
          %v424 = vld [vmem:[%s411 + $0x30] sm:$0xf]
          %v425 = vld [vmem:[%s411 + $0x34] sm:$0xf]
          %v426 = vld [vmem:[%s411 + $0x38] sm:$0xf]
          %v427 = vld [vmem:[%s411 + $0x3c] sm:$0xf]
          %v428 = vld [vmem:[#allocation2] sm:$0xff]
          %v429 = vld [vmem:[#allocation2 + $0x8] sm:$0xff]
          %v430 = vld [vmem:[#allocation2 + $0x10] sm:$0xff]
          %v431 = vld [vmem:[#allocation2 + $0x18] sm:$0xff]
          %v432 = vld [vmem:[#allocation2 + $0x20] sm:$0xff]
          %v433 = vld [vmem:[#allocation2 + $0x28] sm:$0xff]
          %v434 = vld [vmem:[#allocation2 + $0x30] sm:$0xff]
          %v435 = vld [vmem:[#allocation2 + $0x38] sm:$0xff]
          %v436 = vld [vmem:[#allocation2 + $0x40] sm:$0xff]
          %v437 = vld [vmem:[#allocation2 + $0x48] sm:$0xff]
          %v438 = vld [vmem:[#allocation2 + $0x50] sm:$0xff]
          %v439 = vld [vmem:[#allocation2 + $0x58] sm:$0xff]
          %v440 = vld [vmem:[#allocation2 + $0x60] sm:$0xff]
          %v441 = vld [vmem:[#allocation2 + $0x68] sm:$0xff]
          %v442 = vld [vmem:[#allocation2 + $0x70] sm:$0xff]
          %v443 = vld [vmem:[#allocation2 + $0x78] sm:$0xff]
          %v444 = vld [vmem:[%s323] sm:$0xf]
          %v445 = vld [vmem:[%s323 + $0x4] sm:$0xf]
          %v446 = vld [vmem:[%s323 + $0x8] sm:$0xf]
          %v447 = vld [vmem:[%s323 + $0xc] sm:$0xf]
          %v448 = vld [vmem:[%s323 + $0x10] sm:$0xf]
          %v449 = vld [vmem:[%s323 + $0x14] sm:$0xf]
          %v450 = vld [vmem:[%s323 + $0x18] sm:$0xf]
          %v451 = vld [vmem:[%s323 + $0x1c] sm:$0xf]
          %v452 = vld [vmem:[%s323 + $0x20] sm:$0xf]
          %v453 = vld [vmem:[%s323 + $0x24] sm:$0xf]
          %v454 = vld [vmem:[%s323 + $0x28] sm:$0xf]
          %v455 = vld [vmem:[%s323 + $0x2c] sm:$0xf]
          %v456 = vld [vmem:[%s323 + $0x30] sm:$0xf]
          %v457 = vld [vmem:[%s323 + $0x34] sm:$0xf]
          %v458 = vld [vmem:[%s323 + $0x38] sm:$0xf]
          %v459 = vld [vmem:[%s323 + $0x3c] sm:$0xf]
          %v476 = vunpack.c.l.b16 %v444
          %v477 = vunpack.c.l.b16 %v445
          %v478 = vunpack.c.l.b16 %v446
          %v479 = vunpack.c.l.b16 %v447
          %v480 = vunpack.c.l.b16 %v448
          %v481 = vunpack.c.l.b16 %v449
          %v482 = vunpack.c.l.b16 %v450
          %v483 = vunpack.c.l.b16 %v451
          %v484 = vunpack.c.l.b16 %v452
          %v485 = vunpack.c.l.b16 %v453
          %v486 = vunpack.c.l.b16 %v454
          %v487 = vunpack.c.l.b16 %v455
          %v488 = vunpack.c.l.b16 %v456
          %v489 = vunpack.c.l.b16 %v457
          %v490 = vunpack.c.l.b16 %v458
          %v491 = vunpack.c.l.b16 %v459
          %v492 = vpack.c.b16 %v477, %v476
          %v493 = vpack.c.b16 %v479, %v478
          %v494 = vpack.c.b16 %v481, %v480
          %v495 = vpack.c.b16 %v483, %v482
          %v496 = vpack.c.b16 %v485, %v484
          %v497 = vpack.c.b16 %v487, %v486
          %v498 = vpack.c.b16 %v489, %v488
          %v499 = vpack.c.b16 %v491, %v490
          %v524 = vunpack.c.l.b16 %v412
          %v525 = vunpack.c.l.b16 %v413
          %v526 = vunpack.c.l.b16 %v414
          %v527 = vunpack.c.l.b16 %v415
          %v528 = vunpack.c.l.b16 %v416
          %v529 = vunpack.c.l.b16 %v417
          %v530 = vunpack.c.l.b16 %v418
          %v531 = vunpack.c.l.b16 %v419
          %v532 = vunpack.c.l.b16 %v420
          %v533 = vunpack.c.l.b16 %v421
          %v534 = vunpack.c.l.b16 %v422
          %v535 = vunpack.c.l.b16 %v423
          %v536 = vunpack.c.l.b16 %v424
          %v537 = vunpack.c.l.b16 %v425
          %v538 = vunpack.c.l.b16 %v426
          %v539 = vunpack.c.l.b16 %v427
          %v540 = vpack.c.b16 %v525, %v524
          %v541 = vpack.c.b16 %v527, %v526
          %v542 = vpack.c.b16 %v529, %v528
          %v543 = vpack.c.b16 %v531, %v530
          %v544 = vpack.c.b16 %v533, %v532
          %v545 = vpack.c.b16 %v535, %v534
          %v546 = vpack.c.b16 %v537, %v536
          %v547 = vpack.c.b16 %v539, %v538
          %556 = vmatprep.subr.bf16.mxu0 0
          %557 = vmatpush1.bf16.msra.mxu0 %v540
          %558 = vmatprep.subr.bf16.mxu0 0
          %559 = vmatpush1.bf16.msra.mxu0 %v541
          %560 = vmatprep.subr.bf16.mxu0 0
          %561 = vmatpush1.bf16.msra.mxu0 %v542
          %562 = vmatprep.subr.bf16.mxu0 0
          %563 = vmatpush1.bf16.msra.mxu0 %v543
          %564 = vmatprep.subr.bf16.mxu0 0
          %565 = vmatpush1.bf16.msra.mxu0 %v544
          %566 = vmatprep.subr.bf16.mxu0 0
          %567 = vmatpush1.bf16.msra.mxu0 %v545
          %568 = vmatprep.subr.bf16.mxu0 0
          %569 = vmatpush1.bf16.msra.mxu0 %v546
          %570 = vmatprep.subr.bf16.mxu0 0
          %571 = vmatpush1.bf16.msra.mxu0 %v547
          %572 = vmatprep.subr.bf16.mxu0 0
          %573 = vmatpush1.bf16.msra.mxu0 0
          %574 = vmatprep.subr.bf16.mxu0 0
          %575 = vmatpush1.bf16.msra.mxu0 0
          %576 = vmatprep.subr.bf16.mxu0 0
          %577 = vmatpush1.bf16.msra.mxu0 0
          %578 = vmatprep.subr.bf16.mxu0 0
          %579 = vmatpush1.bf16.msra.mxu0 0
          %580 = vmatprep.subr.bf16.mxu0 0
          %581 = vmatpush1.bf16.msra.mxu0 0
          %582 = vmatprep.subr.bf16.mxu0 0
          %583 = vmatpush1.bf16.msra.mxu0 0
          %584 = vmatprep.subr.bf16.mxu0 0
          %585 = vmatpush1.bf16.msra.mxu0 0
          %586 = vmatprep.subr.bf16.mxu0 0
          %587 = vmatpush1.bf16.msra.mxu0 0
          %588 = vmatprep.mubr.bf16.mxu0 0
          %589 = vmatmul.mubr.bf16.gmra.mrb[0].mxu0 %v492
          %v590 = vpop.f32.mrb[0].mxu0
          %v591 = vadd.f32 0.0, %v590
          %v592 = vpop.f32.mrb[0].mxu0
          %v593 = vpop.f32.mrb[0].mxu0
          %v594 = vadd.f32 0.0, %v593
          %v595 = vpop.f32.mrb[0].mxu0
          %596 = vmatprep.mubr.bf16.mxu0 0
          %597 = vmatmul.mubr.bf16.gmra.mrb[0].mxu0 %v493
          %v598 = vpop.f32.mrb[0].mxu0
          %v599 = vadd.f32 0.0, %v598
          %v600 = vpop.f32.mrb[0].mxu0
          %v601 = vpop.f32.mrb[0].mxu0
          %v602 = vadd.f32 0.0, %v601
          %v603 = vpop.f32.mrb[0].mxu0
          %604 = vmatprep.mubr.bf16.mxu0 0
          %605 = vmatmul.mubr.bf16.gmra.mrb[0].mxu0 %v494
          %v606 = vpop.f32.mrb[0].mxu0
          %v607 = vadd.f32 0.0, %v606
          %v608 = vpop.f32.mrb[0].mxu0
          %v609 = vpop.f32.mrb[0].mxu0
          %v610 = vadd.f32 0.0, %v609
          %v611 = vpop.f32.mrb[0].mxu0
          %612 = vmatprep.mubr.bf16.mxu0 0
          %613 = vmatmul.mubr.bf16.gmra.mrb[0].mxu0 %v495
          %v614 = vpop.f32.mrb[0].mxu0
          %v615 = vadd.f32 0.0, %v614
          %v616 = vpop.f32.mrb[0].mxu0
          %v617 = vpop.f32.mrb[0].mxu0
          %v618 = vadd.f32 0.0, %v617
          %v619 = vpop.f32.mrb[0].mxu0
          %620 = vmatprep.mubr.bf16.mxu0 0
          %621 = vmatmul.mubr.bf16.gmra.mrb[0].mxu0 %v496
          %v622 = vpop.f32.mrb[0].mxu0
          %v623 = vadd.f32 0.0, %v622
          %v624 = vpop.f32.mrb[0].mxu0
          %v625 = vpop.f32.mrb[0].mxu0
          %v626 = vadd.f32 0.0, %v625
          %v627 = vpop.f32.mrb[0].mxu0
          %628 = vmatprep.mubr.bf16.mxu0 0
          %629 = vmatmul.mubr.bf16.gmra.mrb[0].mxu0 %v497
          %v630 = vpop.f32.mrb[0].mxu0
          %v631 = vadd.f32 0.0, %v630
          %v632 = vpop.f32.mrb[0].mxu0
          %v633 = vpop.f32.mrb[0].mxu0
          %v634 = vadd.f32 0.0, %v633
          %v635 = vpop.f32.mrb[0].mxu0
          %636 = vmatprep.mubr.bf16.mxu0 0
          %637 = vmatmul.mubr.bf16.gmra.mrb[0].mxu0 %v498
          %v638 = vpop.f32.mrb[0].mxu0
          %v639 = vadd.f32 0.0, %v638
          %v640 = vpop.f32.mrb[0].mxu0
          %v641 = vpop.f32.mrb[0].mxu0
          %v642 = vadd.f32 0.0, %v641
          %v643 = vpop.f32.mrb[0].mxu0
          %644 = vmatprep.mubr.bf16.mxu0 0
          %645 = vmatmul.mubr.bf16.gmra.mrb[0].mxu0 %v499
          %v646 = vpop.f32.mrb[0].mxu0
          %v647 = vadd.f32 0.0, %v646
          %v648 = vpop.f32.mrb[0].mxu0
          %v649 = vpop.f32.mrb[0].mxu0
          %v650 = vadd.f32 0.0, %v649
          %v651 = vpop.f32.mrb[0].mxu0
          %652 = vdwg.mxu0
          %v653 = vadd.f32 %v428, %v591
          %v654 = vadd.f32 %v429, %v594
          %v655 = vadd.f32 %v430, %v599
          %v656 = vadd.f32 %v431, %v602
          %v657 = vadd.f32 %v432, %v607
          %v658 = vadd.f32 %v433, %v610
          %v659 = vadd.f32 %v434, %v615
          %v660 = vadd.f32 %v435, %v618
          %v661 = vadd.f32 %v436, %v623
          %v662 = vadd.f32 %v437, %v626
          %v663 = vadd.f32 %v438, %v631
          %v664 = vadd.f32 %v439, %v634
          %v665 = vadd.f32 %v440, %v639
          %v666 = vadd.f32 %v441, %v642
          %v667 = vadd.f32 %v442, %v647
          %v668 = vadd.f32 %v443, %v650
          %669 = vst [vmem:[#allocation2] sm:$0xff] %v653
          %670 = vst [vmem:[#allocation2 + $0x8] sm:$0xff] %v654
          %671 = vst [vmem:[#allocation2 + $0x10] sm:$0xff] %v655
          %672 = vst [vmem:[#allocation2 + $0x18] sm:$0xff] %v656
          %673 = vst [vmem:[#allocation2 + $0x20] sm:$0xff] %v657
          %674 = vst [vmem:[#allocation2 + $0x28] sm:$0xff] %v658
          %675 = vst [vmem:[#allocation2 + $0x30] sm:$0xff] %v659
          %676 = vst [vmem:[#allocation2 + $0x38] sm:$0xff] %v660
          %677 = vst [vmem:[#allocation2 + $0x40] sm:$0xff] %v661
          %678 = vst [vmem:[#allocation2 + $0x48] sm:$0xff] %v662
          %679 = vst [vmem:[#allocation2 + $0x50] sm:$0xff] %v663
          %680 = vst [vmem:[#allocation2 + $0x58] sm:$0xff] %v664
          %681 = vst [vmem:[#allocation2 + $0x60] sm:$0xff] %v665
          %682 = vst [vmem:[#allocation2 + $0x68] sm:$0xff] %v666
          %683 = vst [vmem:[#allocation2 + $0x70] sm:$0xff] %v667
          %684 = vst [vmem:[#allocation2 + $0x78] sm:$0xff] %v668
        $region81: #{_compute_light_out.4} parent=68 // pred_fallthru
          _
        %p685 = scmp.eq.s32.totalorder %s33, 2
        // Predicated region
        $region82: #{_compute_light_out.4} parent=68 // pred_check
          %p686 = pneg %p685
        $region83: #{_compute_light_out.4} parent=68 // pred_check_branch
          %688 = sbr.rel (%p686) target = $region85
        $region84: #{_compute_light_out.4} parent=68 // pred_region
          %v689 = vld [vmem:[%s360] sm:$0xff]
          %v690 = vld [vmem:[%s360 + $0x8] sm:$0xff]
          %v691 = vld [vmem:[%s360 + $0x10] sm:$0xff]
          %v692 = vld [vmem:[%s360 + $0x18] sm:$0xff]
          %v693 = vld [vmem:[%s360 + $0x20] sm:$0xff]
          %v694 = vld [vmem:[%s360 + $0x28] sm:$0xff]
          %v695 = vld [vmem:[%s360 + $0x30] sm:$0xff]
          %v696 = vld [vmem:[%s360 + $0x38] sm:$0xff]
          %v697 = vld [vmem:[%s360 + $0x40] sm:$0xff]
          %v698 = vld [vmem:[%s360 + $0x48] sm:$0xff]
          %v699 = vld [vmem:[%s360 + $0x50] sm:$0xff]
          %v700 = vld [vmem:[%s360 + $0x58] sm:$0xff]
          %v701 = vld [vmem:[%s360 + $0x60] sm:$0xff]
          %v702 = vld [vmem:[%s360 + $0x68] sm:$0xff]
          %v703 = vld [vmem:[%s360 + $0x70] sm:$0xff]
          %v704 = vld [vmem:[%s360 + $0x78] sm:$0xff]
          %v705 = vld [vmem:[#allocation2] sm:$0xff]
          %v706 = vld [vmem:[#allocation2 + $0x8] sm:$0xff]
          %v707 = vld [vmem:[#allocation2 + $0x10] sm:$0xff]
          %v708 = vld [vmem:[#allocation2 + $0x18] sm:$0xff]
          %v709 = vld [vmem:[#allocation2 + $0x20] sm:$0xff]
          %v710 = vld [vmem:[#allocation2 + $0x28] sm:$0xff]
          %v711 = vld [vmem:[#allocation2 + $0x30] sm:$0xff]
          %v712 = vld [vmem:[#allocation2 + $0x38] sm:$0xff]
          %v713 = vld [vmem:[#allocation2 + $0x40] sm:$0xff]
          %v714 = vld [vmem:[#allocation2 + $0x48] sm:$0xff]
          %v715 = vld [vmem:[#allocation2 + $0x50] sm:$0xff]
          %v716 = vld [vmem:[#allocation2 + $0x58] sm:$0xff]
          %v717 = vld [vmem:[#allocation2 + $0x60] sm:$0xff]
          %v718 = vld [vmem:[#allocation2 + $0x68] sm:$0xff]
          %v719 = vld [vmem:[#allocation2 + $0x70] sm:$0xff]
          %v720 = vld [vmem:[#allocation2 + $0x78] sm:$0xff]
          %v721 = vmul.f32 %v705, 0.13333334
          %v722 = vmul.f32 %v706, 0.13333334
          %v723 = vmul.f32 %v707, 0.13333334
          %v724 = vmul.f32 %v708, 0.13333334
          %v725 = vmul.f32 %v709, 0.13333334
          %v726 = vmul.f32 %v710, 0.13333334
          %v727 = vmul.f32 %v711, 0.13333334
          %v728 = vmul.f32 %v712, 0.13333334
          %v729 = vmul.f32 %v713, 0.13333334
          %v730 = vmul.f32 %v714, 0.13333334
          %v731 = vmul.f32 %v715, 0.13333334
          %v732 = vmul.f32 %v716, 0.13333334
          %v733 = vmul.f32 %v717, 0.13333334
          %v734 = vmul.f32 %v718, 0.13333334
          %v735 = vmul.f32 %v719, 0.13333334
          %v736 = vmul.f32 %v720, 0.13333334
          %v737 = vadd.f32 %v689, %v721
          %v738 = vadd.f32 %v690, %v722
          %v739 = vadd.f32 %v691, %v723
          %v740 = vadd.f32 %v692, %v724
          %v741 = vadd.f32 %v693, %v725
          %v742 = vadd.f32 %v694, %v726
          %v743 = vadd.f32 %v695, %v727
          %v744 = vadd.f32 %v696, %v728
          %v745 = vadd.f32 %v697, %v729
          %v746 = vadd.f32 %v698, %v730
          %v747 = vadd.f32 %v699, %v731
          %v748 = vadd.f32 %v700, %v732
          %v749 = vadd.f32 %v701, %v733
          %v750 = vadd.f32 %v702, %v734
          %v751 = vadd.f32 %v703, %v735
          %v752 = vadd.f32 %v704, %v736
          %753 = vst [vmem:[%s370] sm:$0xff] %v737
          %754 = vst [vmem:[%s370 + $0x8] sm:$0xff] %v738
          %755 = vst [vmem:[%s370 + $0x10] sm:$0xff] %v739
          %756 = vst [vmem:[%s370 + $0x18] sm:$0xff] %v740
          %757 = vst [vmem:[%s370 + $0x20] sm:$0xff] %v741
          %758 = vst [vmem:[%s370 + $0x28] sm:$0xff] %v742
          %759 = vst [vmem:[%s370 + $0x30] sm:$0xff] %v743
          %760 = vst [vmem:[%s370 + $0x38] sm:$0xff] %v744
          %761 = vst [vmem:[%s370 + $0x40] sm:$0xff] %v745
          %762 = vst [vmem:[%s370 + $0x48] sm:$0xff] %v746
          %763 = vst [vmem:[%s370 + $0x50] sm:$0xff] %v747
          %764 = vst [vmem:[%s370 + $0x58] sm:$0xff] %v748
          %765 = vst [vmem:[%s370 + $0x60] sm:$0xff] %v749
          %766 = vst [vmem:[%s370 + $0x68] sm:$0xff] %v750
          %767 = vst [vmem:[%s370 + $0x70] sm:$0xff] %v751
          %768 = vst [vmem:[%s370 + $0x78] sm:$0xff] %v752
          %v769 = vld [vmem:[#allocation2] sm:$0xff]
          %v770 = vld [vmem:[#allocation2 + $0x8] sm:$0xff]
          %v771 = vld [vmem:[#allocation2 + $0x10] sm:$0xff]
          %v772 = vld [vmem:[#allocation2 + $0x18] sm:$0xff]
          %v773 = vld [vmem:[#allocation2 + $0x20] sm:$0xff]
          %v774 = vld [vmem:[#allocation2 + $0x28] sm:$0xff]
          %v775 = vld [vmem:[#allocation2 + $0x30] sm:$0xff]
          %v776 = vld [vmem:[#allocation2 + $0x38] sm:$0xff]
          %v777 = vld [vmem:[#allocation2 + $0x40] sm:$0xff]
          %v778 = vld [vmem:[#allocation2 + $0x48] sm:$0xff]
          %v779 = vld [vmem:[#allocation2 + $0x50] sm:$0xff]
          %v780 = vld [vmem:[#allocation2 + $0x58] sm:$0xff]
          %v781 = vld [vmem:[#allocation2 + $0x60] sm:$0xff]
          %v782 = vld [vmem:[#allocation2 + $0x68] sm:$0xff]
          %v783 = vld [vmem:[#allocation2 + $0x70] sm:$0xff]
          %v784 = vld [vmem:[#allocation2 + $0x78] sm:$0xff]
          %v785 = vpack.c.bf16 %v770, %v769
          %v786 = vpack.c.bf16 %v772, %v771
          %v787 = vpack.c.bf16 %v774, %v773
          %v788 = vpack.c.bf16 %v776, %v775
          %v789 = vpack.c.bf16 %v778, %v777
          %v790 = vpack.c.bf16 %v780, %v779
          %v791 = vpack.c.bf16 %v782, %v781
          %v792 = vpack.c.bf16 %v784, %v783
          %v801 = vunpack.c.l.b16 %v785
          %v802 = vunpack.c.h.b16 %v785
          %v803 = vunpack.c.l.b16 %v786
          %v804 = vunpack.c.h.b16 %v786
          %v805 = vunpack.c.l.b16 %v787
          %v806 = vunpack.c.h.b16 %v787
          %v807 = vunpack.c.l.b16 %v788
          %v808 = vunpack.c.h.b16 %v788
          %v809 = vunpack.c.l.b16 %v789
          %v810 = vunpack.c.h.b16 %v789
          %v811 = vunpack.c.l.b16 %v790
          %v812 = vunpack.c.h.b16 %v790
          %v813 = vunpack.c.l.b16 %v791
          %v814 = vunpack.c.h.b16 %v791
          %v815 = vunpack.c.l.b16 %v792
          %v816 = vunpack.c.h.b16 %v792
          %v817 = vpack.c.b16 %v801, %v801
          %v818 = vpack.c.b16 %v802, %v802
          %v819 = vpack.c.b16 %v803, %v803
          %v820 = vpack.c.b16 %v804, %v804
          %v821 = vpack.c.b16 %v805, %v805
          %v822 = vpack.c.b16 %v806, %v806
          %v823 = vpack.c.b16 %v807, %v807
          %v824 = vpack.c.b16 %v808, %v808
          %v825 = vpack.c.b16 %v809, %v809
          %v826 = vpack.c.b16 %v810, %v810
          %v827 = vpack.c.b16 %v811, %v811
          %v828 = vpack.c.b16 %v812, %v812
          %v829 = vpack.c.b16 %v813, %v813
          %v830 = vpack.c.b16 %v814, %v814
          %v831 = vpack.c.b16 %v815, %v815
          %v832 = vpack.c.b16 %v816, %v816
          %849 = vst [vmem:[%s376] sm:$0xf] %v817
          %850 = vst [vmem:[%s376 + $0x4] sm:$0xf] %v818
          %851 = vst [vmem:[%s376 + $0x8] sm:$0xf] %v819
          %852 = vst [vmem:[%s376 + $0xc] sm:$0xf] %v820
          %853 = vst [vmem:[%s376 + $0x10] sm:$0xf] %v821
          %854 = vst [vmem:[%s376 + $0x14] sm:$0xf] %v822
          %855 = vst [vmem:[%s376 + $0x18] sm:$0xf] %v823
          %856 = vst [vmem:[%s376 + $0x1c] sm:$0xf] %v824
          %857 = vst [vmem:[%s376 + $0x20] sm:$0xf] %v825
          %858 = vst [vmem:[%s376 + $0x24] sm:$0xf] %v826
          %859 = vst [vmem:[%s376 + $0x28] sm:$0xf] %v827
          %860 = vst [vmem:[%s376 + $0x2c] sm:$0xf] %v828
          %861 = vst [vmem:[%s376 + $0x30] sm:$0xf] %v829
          %862 = vst [vmem:[%s376 + $0x34] sm:$0xf] %v830
          %863 = vst [vmem:[%s376 + $0x38] sm:$0xf] %v831
          %864 = vst [vmem:[%s376 + $0x3c] sm:$0xf] %v832
        $region85: #{_compute_light_out.4} parent=68 // pred_fallthru
          _
        %s865 = smul.u32 16, %s32
        %p866 = scmp.lt.s32.totalorder %s865, 47
        %s867 = scalar_select %p866, %s865, 47
        %s868 = smul.addr %s867, 8
        %s869 = scalar_lea.vmem %s5, %s868
        %s870 = smul.u32 16, %s32
        %p871 = scmp.lt.s32.totalorder %s870, 47
        %s872 = scalar_select %p871, %s870, 47
        %s873 = smul.addr %s872, 4
        %s874 = scalar_lea.vmem %s6, %s873
        // Predicated region
        $region86: #{_compute_light_out.4} parent=68 // pred_check
          %p875 = pneg %p139
        $region87: #{_compute_light_out.4} parent=68 // pred_check_branch
          %877 = sbr.rel (%p875) target = $region89
        $region88: #{_compute_light_out.4} parent=68 // pred_region
          %s878 = smul.u32 16, %s32
        $region89: #{_compute_light_out.4} parent=68 // pred_fallthru
          _
        // Predicated region
        $region90: #{_compute_light_out.4} parent=68 // pred_check
          %p879 = pneg %p165
        $region91: #{_compute_light_out.4} parent=68 // pred_check_branch
          %881 = sbr.rel (%p879) target = $region93
        $region92: #{_compute_light_out.4} parent=68 // pred_region
          %s882 = smul.u32 16, %s32
        $region93: #{_compute_light_out.4} parent=68 // pred_fallthru
          _
      $region69: #{_compute_light_out.4} parent=5 // pred_fallthru
        _
      %p883 = scmp.le.s32.totalorder 2, %s23
      // Predicated region
      $region94: #{_compute_light_out.4} parent=5 // pred_check
        %p884 = pneg %p883
      $region95: #{_compute_light_out.4} parent=5 // pred_check_branch
        %886 = sbr.rel (%p884) target = $region97
      $region96: #{_compute_light_out.4} parent=5 // pred_region
        %s887 = ssub.s32 %s23, 2
        // Predicated region
        $region98: #{_compute_light_out.4} parent=96 // pred_check
          %p888 = pneg %p145
        $region99: #{_compute_light_out.4} parent=96 // pred_check_branch
          %890 = sbr.rel (%p888) target = $region101
        $region100: #{_compute_light_out.4} parent=96 // pred_region
          %s891 = smul.u32 16, %s34
          %p892 = scmp.lt.s32.totalorder %s891, 47
          %s893 = scalar_select %p892, %s891, 47
          %s894 = smul.addr %s893, 8
          %s895 = scalar_lea.vmem %s5, %s894
        $region101: #{_compute_light_out.4} parent=96 // pred_fallthru
          _
        // Predicated region
        $region102: #{_compute_light_out.4} parent=96 // pred_check
          %p896 = pneg %p171
        $region103: #{_compute_light_out.4} parent=96 // pred_check_branch
          %898 = sbr.rel (%p896) target = $region105
        $region104: #{_compute_light_out.4} parent=96 // pred_region
          %s899 = smul.u32 16, %s34
          %p900 = scmp.lt.s32.totalorder %s899, 47
          %s901 = scalar_select %p900, %s899, 47
          %s902 = smul.addr %s901, 4
          %s903 = scalar_lea.vmem %s6, %s902
        $region105: #{_compute_light_out.4} parent=96 // pred_fallthru
          _
      $region97: #{_compute_light_out.4} parent=5 // pred_fallthru
        _
    $region6: #{_compute_light_out.4} parent=1 // loop_footer
      %s27 = sadd.s32 1, %s23
    $region7: #{_compute_light_out.4} parent=1 // loop_footer_branch
      %22 = sbr.rel target = $region3
    $region8: #{_compute_light_out.4} parent=1 // loop_exit
      _

// kernel: _compute_light_out.3
$region0: #{_compute_light_out.3}
  #allocation0 [shape = 'u32[]', space=smem, size = 0x4, offset = 0x4, fixed_abs, tag = 'smem constant byte address 0x4 - core index']
  #allocation1 [shape = 'u32[144,128]{1,0:T(1,128)}', space=vmem, size = 0x12000, scoped, tag = 'internal scratch']
  #allocation2 [shape = 'f32[128,128]{1,0:T(8,128)}', space=vmem, size = 0x10000, scoped, tag = 'scratch operand']
  #allocation3 [shape = 's32[1]{0}', space=sflag, size = 0x4, scoped, tag = 'scoped memory for _compute_light_out.3']
  #allocation4 [shape = 'u8[512]{0}', space=smem, size = 0x200, scoped, tag = 'prefetched SMEM operand 0']
  #allocation5 [shape = 'u8[512]{0}', space=smem, size = 0x200, scoped, tag = 'prefetched SMEM operand 1']
  %s0 = inlined_call_operand.vmem [shape: s32[9], index: 0, kind: input, shape index: {}]
  %s1 = inlined_call_operand.vmem [shape: s32[3], index: 1, kind: input, shape index: {}]
  %s2 = inlined_call_operand.vmem [shape: f32[384,128], index: 2, kind: input, shape index: {}]
  %s3 = inlined_call_operand.vmem [shape: bf16[384,384], index: 3, kind: input, shape index: {}]
  %s4 = inlined_call_operand.vmem [shape: bf16[384,128], index: 4, kind: input, shape index: {}]
  %s5 = inlined_call_operand.vmem [shape: f32[384,128], index: 5, kind: output, shape index: {0}]
  %s6 = inlined_call_operand.vmem [shape: bf16[384,128], index: 6, kind: output, shape index: {1}]
  %7 = xla_tuple %s5, %s6
  %s8 = sld [smem:[#allocation0]]
  $region106: #{_compute_light_out.3} parent=0
    _
  %s10 = ssub.s32 1, %s8
  %s11 = scalar_select 0, %s10, %s8
  %s12 = sshll.u32 %s0, 4
  %s13 = int_to_ptr.vmem [resolvable:$true] %s12
  %15 = dma.vmem_to_smem %s13, 16, [#allocation4], [#allocation3]
  %s16 = sshll.u32 %s1, 4
  %s17 = int_to_ptr.vmem [resolvable:$true] %s16
  %19 = dma.vmem_to_smem %s17, 16, [#allocation5], [#allocation3]
  %20 = dma.done [#allocation3], 32
  %21 = sfence
  $region1: #{_compute_light_out.3} parent=0
    #allocation6 [shape = 'u8[65536]{0}', space=vmem, size = 0x10000, scoped, tag = 'input window, operand 3']
    loop: start=0, step=1, limit=11
    $region2: #{_compute_light_out.3} parent=1 // loop_pre_header
      _
    $region3: #{_compute_light_out.3} parent=1 // loop_header
      %s23 = sphi 0, %s27
      %p24 = scmp.ge.s32.totalorder %s23, 11
      %s30 = sphi 0, %s42
      %s31 = sphi 0, %s38
      %s32 = sphi 0, %s30
      %s33 = sphi 0, %s31
      %s34 = sphi 0, %s32
      %s35 = sphi 0, %s33
      %s45 = sphi 0, %s47
      %s48 = sphi 0, %s45
      %s49 = sphi 0, %s48
      %s65 = sphi 0, %s49
      %s79 = sphi 0, %s81
      %s82 = sphi 0, %s79
      %s83 = sphi 0, %s82
      %s99 = sphi 0, %s83
      %s103 = sphi 0, %s103
      %s105 = sphi 0, %s103
      %s106 = sphi 0, %s105
      %s120 = sphi 0, %s106
      %s126 = sphi 0, %s128
      %s129 = sphi 0, %s126
      %s130 = sphi 0, %s129
      %s146 = sphi 0, %s130
      %s152 = sphi 0, %s154
      %s155 = sphi 0, %s152
      %s156 = sphi 0, %s155
      %s172 = sphi 0, %s156
    $region4: #{_compute_light_out.3} parent=1 // loop_header_branch
      %26 = sbr.rel (%p24) target = $region8
    $region5: #{_compute_light_out.3} parent=1 // loop_body
      %s28 = ssub.s32 %s23, 1
      %s29 = ssub.s32 %s23, 2
      %s36 = sadd.s32 1, %s31
      %p37 = scmp.ge.s32.totalorder %s36, 3
      %s38 = scalar_select %p37, 0, %s36
      %s39 = sadd.s32 1, %s30
      %s40 = scalar_select %p37, %s39, %s30
      %p41 = scmp.ge.s32.totalorder %s40, 3
      %s42 = scalar_select %p41, 0, %s40
      %s43 = ssub.s32 %s30, %s42
      %p44 = scmp.eq.s32.totalorder %s43, 0
      %s46 = sadd.s32 %s45, 1
      %s47 = scalar_select %p44, %s45, %s46
      %p50 = pneg %p44
      %p51 = scmp.eq.s32.totalorder %s23, 8
      %p52 = por %p50, %p51
      %p53 = scmp.ne.s32.totalorder %s45, %s48
      %p54 = scmp.eq.s32.totalorder %s23, 0
      %p55 = por %p53, %p54
      %p56 = scmp.ne.s32.totalorder %s45, %s48
      %p57 = scmp.eq.s32.totalorder %s28, 8
      %p58 = por %p56, %p57
      %p59 = scmp.ne.s32.totalorder %s48, %s49
      %p60 = scmp.eq.s32.totalorder %s28, 0
      %p61 = por %p59, %p60
      %p62 = scmp.ne.s32.totalorder %s48, %s49
      %p63 = scmp.eq.s32.totalorder %s29, 8
      %p64 = por %p62, %p63
      %p66 = scmp.ne.s32.totalorder %s49, %s65
      %p67 = scmp.eq.s32.totalorder %s29, 0
      %p68 = por %p66, %p67
      %s69 = smul.u32 %s30, 3
      %s70 = sadd.s32 %s69, %s31
      %s71 = sld [smem:[#allocation4 + %s70]]
      %s72 = smul.u32 %s42, 3
      %s73 = sadd.s32 %s72, %s38
      %s74 = sld [smem:[#allocation4 + %s73]]
      %s75 = ssub.s32 %s30, %s42
      %s76 = ssub.s32 %s71, %s74
      %s77 = sor.u32 %s75, %s76
      %p78 = scmp.eq.s32.totalorder %s77, 0
      %s80 = sadd.s32 %s79, 1
      %s81 = scalar_select %p78, %s79, %s80
      %p84 = pneg %p78
      %p85 = scmp.eq.s32.totalorder %s23, 8
      %p86 = por %p84, %p85
      %p87 = scmp.ne.s32.totalorder %s79, %s82
      %p88 = scmp.eq.s32.totalorder %s23, 0
      %p89 = por %p87, %p88
      %p90 = scmp.ne.s32.totalorder %s79, %s82
      %p91 = scmp.eq.s32.totalorder %s28, 8
      %p92 = por %p90, %p91
      %p93 = scmp.ne.s32.totalorder %s82, %s83
      %p94 = scmp.eq.s32.totalorder %s28, 0
      %p95 = por %p93, %p94
      %p96 = scmp.ne.s32.totalorder %s82, %s83
      %p97 = scmp.eq.s32.totalorder %s29, 8
      %p98 = por %p96, %p97
      %p100 = scmp.ne.s32.totalorder %s83, %s99
      %p101 = scmp.eq.s32.totalorder %s29, 0
      %p102 = por %p100, %p101
      %s104 = sadd.s32 %s103, 1
      %p107 = scmp.eq.s32.totalorder %s23, 8
      %p108 = scmp.ne.s32.totalorder %s103, %s105
      %p109 = scmp.eq.s32.totalorder %s23, 0
      %p110 = por %p108, %p109
      %p111 = scmp.ne.s32.totalorder %s103, %s105
      %p112 = scmp.eq.s32.totalorder %s28, 8
      %p113 = por %p111, %p112
      %p114 = scmp.ne.s32.totalorder %s105, %s106
      %p115 = scmp.eq.s32.totalorder %s28, 0
      %p116 = por %p114, %p115
      %p117 = scmp.ne.s32.totalorder %s105, %s106
      %p118 = scmp.eq.s32.totalorder %s29, 8
      %p119 = por %p117, %p118
      %p121 = scmp.ne.s32.totalorder %s106, %s120
      %p122 = scmp.eq.s32.totalorder %s29, 0
      %p123 = por %p121, %p122
      %s124 = ssub.s32 %s30, %s42
      %p125 = scmp.eq.s32.totalorder %s124, 0
      %s127 = sadd.s32 %s126, 1
      %s128 = scalar_select %p125, %s126, %s127
      %p131 = pneg %p125
      %p132 = scmp.eq.s32.totalorder %s23, 8
      %p133 = por %p131, %p132
      %p134 = scmp.ne.s32.totalorder %s126, %s129
      %p135 = scmp.eq.s32.totalorder %s23, 0
      %p136 = por %p134, %p135
      %p137 = scmp.ne.s32.totalorder %s126, %s129
      %p138 = scmp.eq.s32.totalorder %s28, 8
      %p139 = por %p137, %p138
      %p140 = scmp.ne.s32.totalorder %s129, %s130
      %p141 = scmp.eq.s32.totalorder %s28, 0
      %p142 = por %p140, %p141
      %p143 = scmp.ne.s32.totalorder %s129, %s130
      %p144 = scmp.eq.s32.totalorder %s29, 8
      %p145 = por %p143, %p144
      %p147 = scmp.ne.s32.totalorder %s130, %s146
      %p148 = scmp.eq.s32.totalorder %s29, 0
      %p149 = por %p147, %p148
      %s150 = ssub.s32 %s30, %s42
      %p151 = scmp.eq.s32.totalorder %s150, 0
      %s153 = sadd.s32 %s152, 1
      %s154 = scalar_select %p151, %s152, %s153
      %p157 = pneg %p151
      %p158 = scmp.eq.s32.totalorder %s23, 8
      %p159 = por %p157, %p158
      %p160 = scmp.ne.s32.totalorder %s152, %s155
      %p161 = scmp.eq.s32.totalorder %s23, 0
      %p162 = por %p160, %p161
      %p163 = scmp.ne.s32.totalorder %s152, %s155
      %p164 = scmp.eq.s32.totalorder %s28, 8
      %p165 = por %p163, %p164
      %p166 = scmp.ne.s32.totalorder %s155, %s156
      %p167 = scmp.eq.s32.totalorder %s28, 0
      %p168 = por %p166, %p167
      %p169 = scmp.ne.s32.totalorder %s155, %s156
      %p170 = scmp.eq.s32.totalorder %s29, 8
      %p171 = por %p169, %p170
      %p173 = scmp.ne.s32.totalorder %s156, %s172
      %p174 = scmp.eq.s32.totalorder %s29, 0
      %p175 = por %p173, %p174
      %p176 = scmp.le.s32.totalorder 1, %s23
      %p177 = scmp.lt.s32.totalorder %s23, 10
      %p178 = pnand %p176, %p177
      %p179 = pneg %p178
      // Predicated region
      $region9: #{_compute_light_out.3} parent=5 // pred_check
        _
      $region10: #{_compute_light_out.3} parent=5 // pred_check_branch
        %181 = sbr.rel (%p178) target = $region12
      $region11: #{_compute_light_out.3} parent=5 // pred_region
        %s182 = ssub.s32 %s23, 1
        // Predicated region
        $region13: #{_compute_light_out.3} parent=11 // pred_check
          %p183 = pneg %p116
        $region14: #{_compute_light_out.3} parent=11 // pred_check_branch
          %185 = sbr.rel (%p183) target = $region16
        $region15: #{_compute_light_out.3} parent=11 // pred_region
          _
        $region16: #{_compute_light_out.3} parent=11 // pred_fallthru
          _
      $region12: #{_compute_light_out.3} parent=5 // pred_fallthru
        _
      %p186 = scmp.lt.s32.totalorder %s23, 9
      // Predicated region
      $region17: #{_compute_light_out.3} parent=5 // pred_check
        %p187 = pneg %p186
      $region18: #{_compute_light_out.3} parent=5 // pred_check_branch
        %189 = sbr.rel (%p187) target = $region20
      $region19: #{_compute_light_out.3} parent=5 // pred_region
        // Predicated region
        $region21: #{_compute_light_out.3} parent=19 // pred_check
          %p190 = pneg %p55
        $region22: #{_compute_light_out.3} parent=19 // pred_check_branch
          %192 = sbr.rel (%p190) target = $region24
        $region23: #{_compute_light_out.3} parent=19 // pred_region
          %s193 = smul.u32 16, %s30
          %p194 = scmp.lt.s32.totalorder %s193, 47
          %s195 = scalar_select %p194, %s193, 47
          %s196 = smul.addr %s195, 8
          %s197 = scalar_lea.vmem %s2, %s196
          %s198 = smul.u32 16, %s30
        $region24: #{_compute_light_out.3} parent=19 // pred_fallthru
          _
        // Predicated region
        $region25: #{_compute_light_out.3} parent=19 // pred_check
          %p199 = pneg %p89
        $region26: #{_compute_light_out.3} parent=19 // pred_check_branch
          %201 = sbr.rel (%p199) target = $region28
        $region27: #{_compute_light_out.3} parent=19 // pred_region
          %s202 = sand.u32 %s79, 1
          %s203 = sand.u32 %s79, 1
          %s204 = smul.addr %s203, 64
          %s205 = scalar_lea.vmem [#allocation6], %s204
          %s206 = smul.u32 %s30, 3
          %s207 = sadd.s32 %s206, %s31
          %s208 = sld [smem:[#allocation4 + %s207]]
          %s209 = smul.u32 16, %s30
          %s210 = smul.addr %s209, 3
          %s211 = sadd.s32 %s208, %s210
          %s212 = smul.addr %s211, 4
          %s213 = scalar_lea.vmem %s3, %s212
          // Predicated region
          $region29: #{_compute_light_out.3} parent=27 // pred_check
            _
          $region30: #{_compute_light_out.3} parent=27 // pred_check_branch
            %215 = sbr.rel (0) target = $region32
          $region31: #{_compute_light_out.3} parent=27 // pred_region
            // Predicated region
            $region33: #{_compute_light_out.3} parent=31 // pred_check
              _
            $region34: #{_compute_light_out.3} parent=31 // pred_check_branch
              %217 = sbr.rel target = $region36
            $region35: #{_compute_light_out.3} parent=31 // pred_region
              // Predicated region
              $region48: #{_compute_light_out.3} parent=35 // pred_check
                _
              $region49: #{_compute_light_out.3} parent=35 // pred_check_branch
                %262 = sbr.rel (0) target = $region51
              $region50: #{_compute_light_out.3} parent=35 // pred_region
                loop: start=0, step=1, limit=1
                $region52: #{_compute_light_out.3} parent=50 // loop_pre_header
                  _
                $region53: #{_compute_light_out.3} parent=50 // loop_header
                  %s264 = sphi 0, %s268
                  %p265 = scmp.ge.s32.totalorder %s264, 1
                  %s269 = sphi %s213, %s213
                  %s270 = sphi %s205, %s205
                $region54: #{_compute_light_out.3} parent=50 // loop_header_branch
                  %267 = sbr.rel (%p265) target = $region58
                $region55: #{_compute_light_out.3} parent=50 // loop_body
                  _
                $region56: #{_compute_light_out.3} parent=50 // loop_footer
                  %s268 = sadd.s32 1, %s264
                $region57: #{_compute_light_out.3} parent=50 // loop_footer_branch
                  %263 = sbr.rel target = $region53
                $region58: #{_compute_light_out.3} parent=50 // loop_exit
                  _
                loop: start=0, step=1, limit=1
                $region59: #{_compute_light_out.3} parent=50 // loop_pre_header
                  _
                $region60: #{_compute_light_out.3} parent=50 // loop_header
                  %s273 = sphi 0, %s277
                  %p274 = scmp.ge.s32.totalorder %s273, 1
                  %s278 = sphi %s213, %s213
                  %s279 = sphi %s205, %s205
                $region61: #{_compute_light_out.3} parent=50 // loop_header_branch
                  %276 = sbr.rel (%p274) target = $region65
                $region62: #{_compute_light_out.3} parent=50 // loop_body
                  %v280 = vld [vmem:[%s278] sm:$0xf]
                  %281 = vst [vmem:[%s279] sm:$0xf] %v280
                  %v282 = vld [vmem:[%s278 + $0xc] sm:$0xf]
                  %283 = vst [vmem:[%s279 + $0x4] sm:$0xf] %v282
                  %v284 = vld [vmem:[%s278 + $0x18] sm:$0xf]
                  %285 = vst [vmem:[%s279 + $0x8] sm:$0xf] %v284
                  %v286 = vld [vmem:[%s278 + $0x24] sm:$0xf]
                  %287 = vst [vmem:[%s279 + $0xc] sm:$0xf] %v286
                  %v288 = vld [vmem:[%s278 + $0x30] sm:$0xf]
                  %289 = vst [vmem:[%s279 + $0x10] sm:$0xf] %v288
                  %v290 = vld [vmem:[%s278 + $0x3c] sm:$0xf]
                  %291 = vst [vmem:[%s279 + $0x14] sm:$0xf] %v290
                  %v292 = vld [vmem:[%s278 + $0x48] sm:$0xf]
                  %293 = vst [vmem:[%s279 + $0x18] sm:$0xf] %v292
                  %v294 = vld [vmem:[%s278 + $0x54] sm:$0xf]
                  %295 = vst [vmem:[%s279 + $0x1c] sm:$0xf] %v294
                  %v296 = vld [vmem:[%s278 + $0x60] sm:$0xf]
                  %297 = vst [vmem:[%s279 + $0x20] sm:$0xf] %v296
                  %v298 = vld [vmem:[%s278 + $0x6c] sm:$0xf]
                  %299 = vst [vmem:[%s279 + $0x24] sm:$0xf] %v298
                  %v300 = vld [vmem:[%s278 + $0x78] sm:$0xf]
                  %301 = vst [vmem:[%s279 + $0x28] sm:$0xf] %v300
                  %v302 = vld [vmem:[%s278 + $0x84] sm:$0xf]
                  %303 = vst [vmem:[%s279 + $0x2c] sm:$0xf] %v302
                  %v304 = vld [vmem:[%s278 + $0x90] sm:$0xf]
                  %305 = vst [vmem:[%s279 + $0x30] sm:$0xf] %v304
                  %v306 = vld [vmem:[%s278 + $0x9c] sm:$0xf]
                  %307 = vst [vmem:[%s279 + $0x34] sm:$0xf] %v306
                  %v308 = vld [vmem:[%s278 + $0xa8] sm:$0xf]
                  %309 = vst [vmem:[%s279 + $0x38] sm:$0xf] %v308
                  %v310 = vld [vmem:[%s278 + $0xb4] sm:$0xf]
                  %311 = vst [vmem:[%s279 + $0x3c] sm:$0xf] %v310
                $region63: #{_compute_light_out.3} parent=50 // loop_footer
                  %s277 = sadd.s32 1, %s273
                $region64: #{_compute_light_out.3} parent=50 // loop_footer_branch
                  %272 = sbr.rel target = $region60
                $region65: #{_compute_light_out.3} parent=50 // loop_exit
                  _
              $region51: #{_compute_light_out.3} parent=35 // pred_fallthru
                _
            $region36: #{_compute_light_out.3} parent=31 // pred_fallthru
              _
            // Predicated region
            $region37: #{_compute_light_out.3} parent=31 // pred_check
              _
            $region38: #{_compute_light_out.3} parent=31 // pred_check_branch
              %219 = sbr.rel (0) target = $region40
            $region39: #{_compute_light_out.3} parent=31 // pred_region
              loop: start=0, step=1, limit=1
              $region41: #{_compute_light_out.3} parent=39 // loop_pre_header
                _
              $region42: #{_compute_light_out.3} parent=39 // loop_header
                %s222 = sphi 0, %s226
                %p223 = scmp.ge.s32.totalorder %s222, 1
                %s227 = sphi %s213, %s213
                %s228 = sphi %s205, %s205
              $region43: #{_compute_light_out.3} parent=39 // loop_header_branch
                %225 = sbr.rel (%p223) target = $region47
              $region44: #{_compute_light_out.3} parent=39 // loop_body
                %v229 = vld [vmem:[%s227] sm:$0xf]
                %230 = vst [vmem:[%s228] sm:$0xf] %v229
                %v231 = vld [vmem:[%s227 + $0xc] sm:$0xf]
                %232 = vst [vmem:[%s228 + $0x4] sm:$0xf] %v231
                %v233 = vld [vmem:[%s227 + $0x18] sm:$0xf]
                %234 = vst [vmem:[%s228 + $0x8] sm:$0xf] %v233
                %v235 = vld [vmem:[%s227 + $0x24] sm:$0xf]
                %236 = vst [vmem:[%s228 + $0xc] sm:$0xf] %v235
                %v237 = vld [vmem:[%s227 + $0x30] sm:$0xf]
                %238 = vst [vmem:[%s228 + $0x10] sm:$0xf] %v237
                %v239 = vld [vmem:[%s227 + $0x3c] sm:$0xf]
                %240 = vst [vmem:[%s228 + $0x14] sm:$0xf] %v239
                %v241 = vld [vmem:[%s227 + $0x48] sm:$0xf]
                %242 = vst [vmem:[%s228 + $0x18] sm:$0xf] %v241
                %v243 = vld [vmem:[%s227 + $0x54] sm:$0xf]
                %244 = vst [vmem:[%s228 + $0x1c] sm:$0xf] %v243
                %v245 = vld [vmem:[%s227 + $0x60] sm:$0xf]
                %246 = vst [vmem:[%s228 + $0x20] sm:$0xf] %v245
                %v247 = vld [vmem:[%s227 + $0x6c] sm:$0xf]
                %248 = vst [vmem:[%s228 + $0x24] sm:$0xf] %v247
                %v249 = vld [vmem:[%s227 + $0x78] sm:$0xf]
                %250 = vst [vmem:[%s228 + $0x28] sm:$0xf] %v249
                %v251 = vld [vmem:[%s227 + $0x84] sm:$0xf]
                %252 = vst [vmem:[%s228 + $0x2c] sm:$0xf] %v251
                %v253 = vld [vmem:[%s227 + $0x90] sm:$0xf]
                %254 = vst [vmem:[%s228 + $0x30] sm:$0xf] %v253
                %v255 = vld [vmem:[%s227 + $0x9c] sm:$0xf]
                %256 = vst [vmem:[%s228 + $0x34] sm:$0xf] %v255
                %v257 = vld [vmem:[%s227 + $0xa8] sm:$0xf]
                %258 = vst [vmem:[%s228 + $0x38] sm:$0xf] %v257
                %v259 = vld [vmem:[%s227 + $0xb4] sm:$0xf]
                %260 = vst [vmem:[%s228 + $0x3c] sm:$0xf] %v259
              $region45: #{_compute_light_out.3} parent=39 // loop_footer
                %s226 = sadd.s32 1, %s222
              $region46: #{_compute_light_out.3} parent=39 // loop_footer_branch
                %221 = sbr.rel target = $region42
              $region47: #{_compute_light_out.3} parent=39 // loop_exit
                _
            $region40: #{_compute_light_out.3} parent=31 // pred_fallthru
              _
          $region32: #{_compute_light_out.3} parent=27 // pred_fallthru
            _
          %312 = vnop
        $region28: #{_compute_light_out.3} parent=19 // pred_fallthru
          _
      $region20: #{_compute_light_out.3} parent=5 // pred_fallthru
        _
      %p313 = scmp.le.s32.totalorder 1, %s23
      %p314 = scmp.lt.s32.totalorder %s23, 10
      %p315 = pnand %p313, %p314
      %p316 = pneg %p315
      // Predicated region
      $region66: #{_compute_light_out.3} parent=5 // pred_check
        _
      $region67: #{_compute_light_out.3} parent=5 // pred_check_branch
        %318 = sbr.rel (%p315) target = $region69
      $region68: #{_compute_light_out.3} parent=5 // pred_region
        %s319 = ssub.s32 %s23, 1
        %s320 = sand.u32 %s82, 1
        %s321 = sand.u32 %s82, 1
        %s322 = smul.addr %s321, 64
        %s323 = scalar_lea.vmem [#allocation6], %s322
        // Predicated region
        $region70: #{_compute_light_out.3} parent=68 // pred_check
          %p324 = pneg %p95
        $region71: #{_compute_light_out.3} parent=68 // pred_check_branch
          %326 = sbr.rel (%p324) target = $region73
        $region72: #{_compute_light_out.3} parent=68 // pred_region
          _
        $region73: #{_compute_light_out.3} parent=68 // pred_fallthru
          _
        %s327 = smul.u32 16, %s32
        %p328 = scmp.lt.s32.totalorder %s327, 47
        %s329 = scalar_select %p328, %s327, 47
        %s330 = smul.addr %s329, 8
        %s331 = scalar_lea.vmem %s2, %s330
        %p332 = pneg %p61
        %p333 = pneg %p58
        %s334 = sand.u32 %s82, 1
        %s335 = sand.u32 %s82, 1
        %s336 = smul.addr %s335, 64
        %s337 = scalar_lea.vmem [#allocation6], %s336
        %p338 = pneg %p95
        %p339 = pneg %p92
        %p340 = pneg %p116
        %p341 = pneg %p113
        %p342 = pneg %p142
        %p343 = pneg %p139
        %s344 = smul.u32 16, %s32
        %p345 = scmp.lt.s32.totalorder %s344, 47
        %s346 = scalar_select %p345, %s344, 47
        %s347 = smul.addr %s346, 8
        %s348 = scalar_lea.vmem %s5, %s347
        %p349 = pneg %p168
        %p350 = pneg %p165
        %s351 = smul.u32 16, %s32
        %p352 = scmp.lt.s32.totalorder %s351, 47
        %s353 = scalar_select %p352, %s351, 47
        %s354 = smul.addr %s353, 4
        %s355 = scalar_lea.vmem %s6, %s354
        %s356 = smul.u32 16, %s32
        %p357 = scmp.lt.s32.totalorder %s356, 47
        %s358 = scalar_select %p357, %s356, 47
        %s359 = smul.addr %s358, 8
        %s360 = scalar_lea.vmem %s2, %s359
        %s361 = smul.u32 16, %s32
        %s362 = smul.u32 %s32, 3
        %s363 = sadd.s32 %s362, %s33
        %s364 = sld [smem:[#allocation4 + %s363]]
        %s365 = smul.u32 16, %s32
        %s366 = smul.u32 16, %s32
        %p367 = scmp.lt.s32.totalorder %s366, 47
        %s368 = scalar_select %p367, %s366, 47
        %s369 = smul.addr %s368, 8
        %s370 = scalar_lea.vmem %s5, %s369
        %s371 = smul.u32 16, %s32
        %s372 = smul.u32 16, %s32
        %p373 = scmp.lt.s32.totalorder %s372, 47
        %s374 = scalar_select %p373, %s372, 47
        %s375 = smul.addr %s374, 4
        %s376 = scalar_lea.vmem %s6, %s375
        %s377 = smul.u32 16, %s32
        %p379 = scmp.eq.s32.totalorder %s33, 0
        // Predicated region
        $region74: #{_compute_light_out.3} parent=68 // pred_check
          %p380 = pneg %p379
        $region75: #{_compute_light_out.3} parent=68 // pred_check_branch
          %382 = sbr.rel (%p380) target = $region77
        $region76: #{_compute_light_out.3} parent=68 // pred_region
          %383 = vst [vmem:[#allocation2] sm:$0xff] 0.0
          %384 = vst [vmem:[#allocation2 + $0x8] sm:$0xff] 0.0
          %385 = vst [vmem:[#allocation2 + $0x10] sm:$0xff] 0.0
          %386 = vst [vmem:[#allocation2 + $0x18] sm:$0xff] 0.0
          %387 = vst [vmem:[#allocation2 + $0x20] sm:$0xff] 0.0
          %388 = vst [vmem:[#allocation2 + $0x28] sm:$0xff] 0.0
          %389 = vst [vmem:[#allocation2 + $0x30] sm:$0xff] 0.0
          %390 = vst [vmem:[#allocation2 + $0x38] sm:$0xff] 0.0
          %391 = vst [vmem:[#allocation2 + $0x40] sm:$0xff] 0.0
          %392 = vst [vmem:[#allocation2 + $0x48] sm:$0xff] 0.0
          %393 = vst [vmem:[#allocation2 + $0x50] sm:$0xff] 0.0
          %394 = vst [vmem:[#allocation2 + $0x58] sm:$0xff] 0.0
          %395 = vst [vmem:[#allocation2 + $0x60] sm:$0xff] 0.0
          %396 = vst [vmem:[#allocation2 + $0x68] sm:$0xff] 0.0
          %397 = vst [vmem:[#allocation2 + $0x70] sm:$0xff] 0.0
          %398 = vst [vmem:[#allocation2 + $0x78] sm:$0xff] 0.0
        $region77: #{_compute_light_out.3} parent=68 // pred_fallthru
          _
        %s399 = sld [smem:[#allocation5 + %s32]]
        %p400 = scmp.lt.s32.totalorder %s33, %s399
        // Predicated region
        $region78: #{_compute_light_out.3} parent=68 // pred_check
          %p401 = pneg %p400
        $region79: #{_compute_light_out.3} parent=68 // pred_check_branch
          %403 = sbr.rel (%p401) target = $region81
        $region80: #{_compute_light_out.3} parent=68 // pred_region
          %s404 = smul.u32 %s32, 3
          %s405 = sadd.s32 %s404, %s33
          %s406 = sld [smem:[#allocation4 + %s405]]
          %s407 = smul.u32 %s406, 128
          %s408 = sshra.s32 %s407, 3
          %s409 = sand.u32 %s407, 7
          %s410 = smul.addr %s408, 4
          %s411 = scalar_lea.vmem %s4, %s410
          %v412 = vld [vmem:[%s411] sm:$0xf]
          %v413 = vld [vmem:[%s411 + $0x4] sm:$0xf]
          %v414 = vld [vmem:[%s411 + $0x8] sm:$0xf]
          %v415 = vld [vmem:[%s411 + $0xc] sm:$0xf]
          %v416 = vld [vmem:[%s411 + $0x10] sm:$0xf]
          %v417 = vld [vmem:[%s411 + $0x14] sm:$0xf]
          %v418 = vld [vmem:[%s411 + $0x18] sm:$0xf]
          %v419 = vld [vmem:[%s411 + $0x1c] sm:$0xf]
          %v420 = vld [vmem:[%s411 + $0x20] sm:$0xf]
          %v421 = vld [vmem:[%s411 + $0x24] sm:$0xf]
          %v422 = vld [vmem:[%s411 + $0x28] sm:$0xf]
          %v423 = vld [vmem:[%s411 + $0x2c] sm:$0xf]
          %v424 = vld [vmem:[%s411 + $0x30] sm:$0xf]
          %v425 = vld [vmem:[%s411 + $0x34] sm:$0xf]
          %v426 = vld [vmem:[%s411 + $0x38] sm:$0xf]
          %v427 = vld [vmem:[%s411 + $0x3c] sm:$0xf]
          %v428 = vld [vmem:[#allocation2] sm:$0xff]
          %v429 = vld [vmem:[#allocation2 + $0x8] sm:$0xff]
          %v430 = vld [vmem:[#allocation2 + $0x10] sm:$0xff]
          %v431 = vld [vmem:[#allocation2 + $0x18] sm:$0xff]
          %v432 = vld [vmem:[#allocation2 + $0x20] sm:$0xff]
          %v433 = vld [vmem:[#allocation2 + $0x28] sm:$0xff]
          %v434 = vld [vmem:[#allocation2 + $0x30] sm:$0xff]
          %v435 = vld [vmem:[#allocation2 + $0x38] sm:$0xff]
          %v436 = vld [vmem:[#allocation2 + $0x40] sm:$0xff]
          %v437 = vld [vmem:[#allocation2 + $0x48] sm:$0xff]
          %v438 = vld [vmem:[#allocation2 + $0x50] sm:$0xff]
          %v439 = vld [vmem:[#allocation2 + $0x58] sm:$0xff]
          %v440 = vld [vmem:[#allocation2 + $0x60] sm:$0xff]
          %v441 = vld [vmem:[#allocation2 + $0x68] sm:$0xff]
          %v442 = vld [vmem:[#allocation2 + $0x70] sm:$0xff]
          %v443 = vld [vmem:[#allocation2 + $0x78] sm:$0xff]
          %v444 = vld [vmem:[%s323] sm:$0xf]
          %v445 = vld [vmem:[%s323 + $0x4] sm:$0xf]
          %v446 = vld [vmem:[%s323 + $0x8] sm:$0xf]
          %v447 = vld [vmem:[%s323 + $0xc] sm:$0xf]
          %v448 = vld [vmem:[%s323 + $0x10] sm:$0xf]
          %v449 = vld [vmem:[%s323 + $0x14] sm:$0xf]
          %v450 = vld [vmem:[%s323 + $0x18] sm:$0xf]
          %v451 = vld [vmem:[%s323 + $0x1c] sm:$0xf]
          %v452 = vld [vmem:[%s323 + $0x20] sm:$0xf]
          %v453 = vld [vmem:[%s323 + $0x24] sm:$0xf]
          %v454 = vld [vmem:[%s323 + $0x28] sm:$0xf]
          %v455 = vld [vmem:[%s323 + $0x2c] sm:$0xf]
          %v456 = vld [vmem:[%s323 + $0x30] sm:$0xf]
          %v457 = vld [vmem:[%s323 + $0x34] sm:$0xf]
          %v458 = vld [vmem:[%s323 + $0x38] sm:$0xf]
          %v459 = vld [vmem:[%s323 + $0x3c] sm:$0xf]
          %v476 = vunpack.c.l.b16 %v444
          %v477 = vunpack.c.l.b16 %v445
          %v478 = vunpack.c.l.b16 %v446
          %v479 = vunpack.c.l.b16 %v447
          %v480 = vunpack.c.l.b16 %v448
          %v481 = vunpack.c.l.b16 %v449
          %v482 = vunpack.c.l.b16 %v450
          %v483 = vunpack.c.l.b16 %v451
          %v484 = vunpack.c.l.b16 %v452
          %v485 = vunpack.c.l.b16 %v453
          %v486 = vunpack.c.l.b16 %v454
          %v487 = vunpack.c.l.b16 %v455
          %v488 = vunpack.c.l.b16 %v456
          %v489 = vunpack.c.l.b16 %v457
          %v490 = vunpack.c.l.b16 %v458
          %v491 = vunpack.c.l.b16 %v459
          %v492 = vpack.c.b16 %v477, %v476
          %v493 = vpack.c.b16 %v479, %v478
          %v494 = vpack.c.b16 %v481, %v480
          %v495 = vpack.c.b16 %v483, %v482
          %v496 = vpack.c.b16 %v485, %v484
          %v497 = vpack.c.b16 %v487, %v486
          %v498 = vpack.c.b16 %v489, %v488
          %v499 = vpack.c.b16 %v491, %v490
          %v524 = vunpack.c.l.b16 %v412
          %v525 = vunpack.c.l.b16 %v413
          %v526 = vunpack.c.l.b16 %v414
          %v527 = vunpack.c.l.b16 %v415
          %v528 = vunpack.c.l.b16 %v416
          %v529 = vunpack.c.l.b16 %v417
          %v530 = vunpack.c.l.b16 %v418
          %v531 = vunpack.c.l.b16 %v419
          %v532 = vunpack.c.l.b16 %v420
          %v533 = vunpack.c.l.b16 %v421
          %v534 = vunpack.c.l.b16 %v422
          %v535 = vunpack.c.l.b16 %v423
          %v536 = vunpack.c.l.b16 %v424
          %v537 = vunpack.c.l.b16 %v425
          %v538 = vunpack.c.l.b16 %v426
          %v539 = vunpack.c.l.b16 %v427
          %v540 = vpack.c.b16 %v525, %v524
          %v541 = vpack.c.b16 %v527, %v526
          %v542 = vpack.c.b16 %v529, %v528
          %v543 = vpack.c.b16 %v531, %v530
          %v544 = vpack.c.b16 %v533, %v532
          %v545 = vpack.c.b16 %v535, %v534
          %v546 = vpack.c.b16 %v537, %v536
          %v547 = vpack.c.b16 %v539, %v538
          %556 = vmatprep.subr.bf16.mxu0 0
          %557 = vmatpush1.bf16.msra.mxu0 %v540
          %558 = vmatprep.subr.bf16.mxu0 0
          %559 = vmatpush1.bf16.msra.mxu0 %v541
          %560 = vmatprep.subr.bf16.mxu0 0
          %561 = vmatpush1.bf16.msra.mxu0 %v542
          %562 = vmatprep.subr.bf16.mxu0 0
          %563 = vmatpush1.bf16.msra.mxu0 %v543
          %564 = vmatprep.subr.bf16.mxu0 0
          %565 = vmatpush1.bf16.msra.mxu0 %v544
          %566 = vmatprep.subr.bf16.mxu0 0
          %567 = vmatpush1.bf16.msra.mxu0 %v545
          %568 = vmatprep.subr.bf16.mxu0 0
          %569 = vmatpush1.bf16.msra.mxu0 %v546
          %570 = vmatprep.subr.bf16.mxu0 0
          %571 = vmatpush1.bf16.msra.mxu0 %v547
          %572 = vmatprep.subr.bf16.mxu0 0
          %573 = vmatpush1.bf16.msra.mxu0 0
          %574 = vmatprep.subr.bf16.mxu0 0
          %575 = vmatpush1.bf16.msra.mxu0 0
          %576 = vmatprep.subr.bf16.mxu0 0
          %577 = vmatpush1.bf16.msra.mxu0 0
          %578 = vmatprep.subr.bf16.mxu0 0
          %579 = vmatpush1.bf16.msra.mxu0 0
          %580 = vmatprep.subr.bf16.mxu0 0
          %581 = vmatpush1.bf16.msra.mxu0 0
          %582 = vmatprep.subr.bf16.mxu0 0
          %583 = vmatpush1.bf16.msra.mxu0 0
          %584 = vmatprep.subr.bf16.mxu0 0
          %585 = vmatpush1.bf16.msra.mxu0 0
          %586 = vmatprep.subr.bf16.mxu0 0
          %587 = vmatpush1.bf16.msra.mxu0 0
          %588 = vmatprep.mubr.bf16.mxu0 0
          %589 = vmatmul.mubr.bf16.gmra.mrb[0].mxu0 %v492
          %v590 = vpop.f32.mrb[0].mxu0
          %v591 = vadd.f32 0.0, %v590
          %v592 = vpop.f32.mrb[0].mxu0
          %v593 = vpop.f32.mrb[0].mxu0
          %v594 = vadd.f32 0.0, %v593
          %v595 = vpop.f32.mrb[0].mxu0
          %596 = vmatprep.mubr.bf16.mxu0 0
          %597 = vmatmul.mubr.bf16.gmra.mrb[0].mxu0 %v493
          %v598 = vpop.f32.mrb[0].mxu0
          %v599 = vadd.f32 0.0, %v598
          %v600 = vpop.f32.mrb[0].mxu0
          %v601 = vpop.f32.mrb[0].mxu0
          %v602 = vadd.f32 0.0, %v601
          %v603 = vpop.f32.mrb[0].mxu0
          %604 = vmatprep.mubr.bf16.mxu0 0
          %605 = vmatmul.mubr.bf16.gmra.mrb[0].mxu0 %v494
          %v606 = vpop.f32.mrb[0].mxu0
          %v607 = vadd.f32 0.0, %v606
          %v608 = vpop.f32.mrb[0].mxu0
          %v609 = vpop.f32.mrb[0].mxu0
          %v610 = vadd.f32 0.0, %v609
          %v611 = vpop.f32.mrb[0].mxu0
          %612 = vmatprep.mubr.bf16.mxu0 0
          %613 = vmatmul.mubr.bf16.gmra.mrb[0].mxu0 %v495
          %v614 = vpop.f32.mrb[0].mxu0
          %v615 = vadd.f32 0.0, %v614
          %v616 = vpop.f32.mrb[0].mxu0
          %v617 = vpop.f32.mrb[0].mxu0
          %v618 = vadd.f32 0.0, %v617
          %v619 = vpop.f32.mrb[0].mxu0
          %620 = vmatprep.mubr.bf16.mxu0 0
          %621 = vmatmul.mubr.bf16.gmra.mrb[0].mxu0 %v496
          %v622 = vpop.f32.mrb[0].mxu0
          %v623 = vadd.f32 0.0, %v622
          %v624 = vpop.f32.mrb[0].mxu0
          %v625 = vpop.f32.mrb[0].mxu0
          %v626 = vadd.f32 0.0, %v625
          %v627 = vpop.f32.mrb[0].mxu0
          %628 = vmatprep.mubr.bf16.mxu0 0
          %629 = vmatmul.mubr.bf16.gmra.mrb[0].mxu0 %v497
          %v630 = vpop.f32.mrb[0].mxu0
          %v631 = vadd.f32 0.0, %v630
          %v632 = vpop.f32.mrb[0].mxu0
          %v633 = vpop.f32.mrb[0].mxu0
          %v634 = vadd.f32 0.0, %v633
          %v635 = vpop.f32.mrb[0].mxu0
          %636 = vmatprep.mubr.bf16.mxu0 0
          %637 = vmatmul.mubr.bf16.gmra.mrb[0].mxu0 %v498
          %v638 = vpop.f32.mrb[0].mxu0
          %v639 = vadd.f32 0.0, %v638
          %v640 = vpop.f32.mrb[0].mxu0
          %v641 = vpop.f32.mrb[0].mxu0
          %v642 = vadd.f32 0.0, %v641
          %v643 = vpop.f32.mrb[0].mxu0
          %644 = vmatprep.mubr.bf16.mxu0 0
          %645 = vmatmul.mubr.bf16.gmra.mrb[0].mxu0 %v499
          %v646 = vpop.f32.mrb[0].mxu0
          %v647 = vadd.f32 0.0, %v646
          %v648 = vpop.f32.mrb[0].mxu0
          %v649 = vpop.f32.mrb[0].mxu0
          %v650 = vadd.f32 0.0, %v649
          %v651 = vpop.f32.mrb[0].mxu0
          %652 = vdwg.mxu0
          %v653 = vadd.f32 %v428, %v591
          %v654 = vadd.f32 %v429, %v594
          %v655 = vadd.f32 %v430, %v599
          %v656 = vadd.f32 %v431, %v602
          %v657 = vadd.f32 %v432, %v607
          %v658 = vadd.f32 %v433, %v610
          %v659 = vadd.f32 %v434, %v615
          %v660 = vadd.f32 %v435, %v618
          %v661 = vadd.f32 %v436, %v623
          %v662 = vadd.f32 %v437, %v626
          %v663 = vadd.f32 %v438, %v631
          %v664 = vadd.f32 %v439, %v634
          %v665 = vadd.f32 %v440, %v639
          %v666 = vadd.f32 %v441, %v642
          %v667 = vadd.f32 %v442, %v647
          %v668 = vadd.f32 %v443, %v650
          %669 = vst [vmem:[#allocation2] sm:$0xff] %v653
          %670 = vst [vmem:[#allocation2 + $0x8] sm:$0xff] %v654
          %671 = vst [vmem:[#allocation2 + $0x10] sm:$0xff] %v655
          %672 = vst [vmem:[#allocation2 + $0x18] sm:$0xff] %v656
          %673 = vst [vmem:[#allocation2 + $0x20] sm:$0xff] %v657
          %674 = vst [vmem:[#allocation2 + $0x28] sm:$0xff] %v658
          %675 = vst [vmem:[#allocation2 + $0x30] sm:$0xff] %v659
          %676 = vst [vmem:[#allocation2 + $0x38] sm:$0xff] %v660
          %677 = vst [vmem:[#allocation2 + $0x40] sm:$0xff] %v661
          %678 = vst [vmem:[#allocation2 + $0x48] sm:$0xff] %v662
          %679 = vst [vmem:[#allocation2 + $0x50] sm:$0xff] %v663
          %680 = vst [vmem:[#allocation2 + $0x58] sm:$0xff] %v664
          %681 = vst [vmem:[#allocation2 + $0x60] sm:$0xff] %v665
          %682 = vst [vmem:[#allocation2 + $0x68] sm:$0xff] %v666
          %683 = vst [vmem:[#allocation2 + $0x70] sm:$0xff] %v667
          %684 = vst [vmem:[#allocation2 + $0x78] sm:$0xff] %v668
        $region81: #{_compute_light_out.3} parent=68 // pred_fallthru
          _
        %p685 = scmp.eq.s32.totalorder %s33, 2
        // Predicated region
        $region82: #{_compute_light_out.3} parent=68 // pred_check
          %p686 = pneg %p685
        $region83: #{_compute_light_out.3} parent=68 // pred_check_branch
          %688 = sbr.rel (%p686) target = $region85
        $region84: #{_compute_light_out.3} parent=68 // pred_region
          %v689 = vld [vmem:[%s360] sm:$0xff]
          %v690 = vld [vmem:[%s360 + $0x8] sm:$0xff]
          %v691 = vld [vmem:[%s360 + $0x10] sm:$0xff]
          %v692 = vld [vmem:[%s360 + $0x18] sm:$0xff]
          %v693 = vld [vmem:[%s360 + $0x20] sm:$0xff]
          %v694 = vld [vmem:[%s360 + $0x28] sm:$0xff]
          %v695 = vld [vmem:[%s360 + $0x30] sm:$0xff]
          %v696 = vld [vmem:[%s360 + $0x38] sm:$0xff]
          %v697 = vld [vmem:[%s360 + $0x40] sm:$0xff]
          %v698 = vld [vmem:[%s360 + $0x48] sm:$0xff]
          %v699 = vld [vmem:[%s360 + $0x50] sm:$0xff]
          %v700 = vld [vmem:[%s360 + $0x58] sm:$0xff]
          %v701 = vld [vmem:[%s360 + $0x60] sm:$0xff]
          %v702 = vld [vmem:[%s360 + $0x68] sm:$0xff]
          %v703 = vld [vmem:[%s360 + $0x70] sm:$0xff]
          %v704 = vld [vmem:[%s360 + $0x78] sm:$0xff]
          %v705 = vld [vmem:[#allocation2] sm:$0xff]
          %v706 = vld [vmem:[#allocation2 + $0x8] sm:$0xff]
          %v707 = vld [vmem:[#allocation2 + $0x10] sm:$0xff]
          %v708 = vld [vmem:[#allocation2 + $0x18] sm:$0xff]
          %v709 = vld [vmem:[#allocation2 + $0x20] sm:$0xff]
          %v710 = vld [vmem:[#allocation2 + $0x28] sm:$0xff]
          %v711 = vld [vmem:[#allocation2 + $0x30] sm:$0xff]
          %v712 = vld [vmem:[#allocation2 + $0x38] sm:$0xff]
          %v713 = vld [vmem:[#allocation2 + $0x40] sm:$0xff]
          %v714 = vld [vmem:[#allocation2 + $0x48] sm:$0xff]
          %v715 = vld [vmem:[#allocation2 + $0x50] sm:$0xff]
          %v716 = vld [vmem:[#allocation2 + $0x58] sm:$0xff]
          %v717 = vld [vmem:[#allocation2 + $0x60] sm:$0xff]
          %v718 = vld [vmem:[#allocation2 + $0x68] sm:$0xff]
          %v719 = vld [vmem:[#allocation2 + $0x70] sm:$0xff]
          %v720 = vld [vmem:[#allocation2 + $0x78] sm:$0xff]
          %v721 = vmul.f32 %v705, 0.26666668
          %v722 = vmul.f32 %v706, 0.26666668
          %v723 = vmul.f32 %v707, 0.26666668
          %v724 = vmul.f32 %v708, 0.26666668
          %v725 = vmul.f32 %v709, 0.26666668
          %v726 = vmul.f32 %v710, 0.26666668
          %v727 = vmul.f32 %v711, 0.26666668
          %v728 = vmul.f32 %v712, 0.26666668
          %v729 = vmul.f32 %v713, 0.26666668
          %v730 = vmul.f32 %v714, 0.26666668
          %v731 = vmul.f32 %v715, 0.26666668
          %v732 = vmul.f32 %v716, 0.26666668
          %v733 = vmul.f32 %v717, 0.26666668
          %v734 = vmul.f32 %v718, 0.26666668
          %v735 = vmul.f32 %v719, 0.26666668
          %v736 = vmul.f32 %v720, 0.26666668
          %v737 = vadd.f32 %v689, %v721
          %v738 = vadd.f32 %v690, %v722
          %v739 = vadd.f32 %v691, %v723
          %v740 = vadd.f32 %v692, %v724
          %v741 = vadd.f32 %v693, %v725
          %v742 = vadd.f32 %v694, %v726
          %v743 = vadd.f32 %v695, %v727
          %v744 = vadd.f32 %v696, %v728
          %v745 = vadd.f32 %v697, %v729
          %v746 = vadd.f32 %v698, %v730
          %v747 = vadd.f32 %v699, %v731
          %v748 = vadd.f32 %v700, %v732
          %v749 = vadd.f32 %v701, %v733
          %v750 = vadd.f32 %v702, %v734
          %v751 = vadd.f32 %v703, %v735
          %v752 = vadd.f32 %v704, %v736
          %753 = vst [vmem:[%s370] sm:$0xff] %v737
          %754 = vst [vmem:[%s370 + $0x8] sm:$0xff] %v738
          %755 = vst [vmem:[%s370 + $0x10] sm:$0xff] %v739
          %756 = vst [vmem:[%s370 + $0x18] sm:$0xff] %v740
          %757 = vst [vmem:[%s370 + $0x20] sm:$0xff] %v741
          %758 = vst [vmem:[%s370 + $0x28] sm:$0xff] %v742
          %759 = vst [vmem:[%s370 + $0x30] sm:$0xff] %v743
          %760 = vst [vmem:[%s370 + $0x38] sm:$0xff] %v744
          %761 = vst [vmem:[%s370 + $0x40] sm:$0xff] %v745
          %762 = vst [vmem:[%s370 + $0x48] sm:$0xff] %v746
          %763 = vst [vmem:[%s370 + $0x50] sm:$0xff] %v747
          %764 = vst [vmem:[%s370 + $0x58] sm:$0xff] %v748
          %765 = vst [vmem:[%s370 + $0x60] sm:$0xff] %v749
          %766 = vst [vmem:[%s370 + $0x68] sm:$0xff] %v750
          %767 = vst [vmem:[%s370 + $0x70] sm:$0xff] %v751
          %768 = vst [vmem:[%s370 + $0x78] sm:$0xff] %v752
          %v769 = vld [vmem:[#allocation2] sm:$0xff]
          %v770 = vld [vmem:[#allocation2 + $0x8] sm:$0xff]
          %v771 = vld [vmem:[#allocation2 + $0x10] sm:$0xff]
          %v772 = vld [vmem:[#allocation2 + $0x18] sm:$0xff]
          %v773 = vld [vmem:[#allocation2 + $0x20] sm:$0xff]
          %v774 = vld [vmem:[#allocation2 + $0x28] sm:$0xff]
          %v775 = vld [vmem:[#allocation2 + $0x30] sm:$0xff]
          %v776 = vld [vmem:[#allocation2 + $0x38] sm:$0xff]
          %v777 = vld [vmem:[#allocation2 + $0x40] sm:$0xff]
          %v778 = vld [vmem:[#allocation2 + $0x48] sm:$0xff]
          %v779 = vld [vmem:[#allocation2 + $0x50] sm:$0xff]
          %v780 = vld [vmem:[#allocation2 + $0x58] sm:$0xff]
          %v781 = vld [vmem:[#allocation2 + $0x60] sm:$0xff]
          %v782 = vld [vmem:[#allocation2 + $0x68] sm:$0xff]
          %v783 = vld [vmem:[#allocation2 + $0x70] sm:$0xff]
          %v784 = vld [vmem:[#allocation2 + $0x78] sm:$0xff]
          %v785 = vpack.c.bf16 %v770, %v769
          %v786 = vpack.c.bf16 %v772, %v771
          %v787 = vpack.c.bf16 %v774, %v773
          %v788 = vpack.c.bf16 %v776, %v775
          %v789 = vpack.c.bf16 %v778, %v777
          %v790 = vpack.c.bf16 %v780, %v779
          %v791 = vpack.c.bf16 %v782, %v781
          %v792 = vpack.c.bf16 %v784, %v783
          %v801 = vunpack.c.l.b16 %v785
          %v802 = vunpack.c.h.b16 %v785
          %v803 = vunpack.c.l.b16 %v786
          %v804 = vunpack.c.h.b16 %v786
          %v805 = vunpack.c.l.b16 %v787
          %v806 = vunpack.c.h.b16 %v787
          %v807 = vunpack.c.l.b16 %v788
          %v808 = vunpack.c.h.b16 %v788
          %v809 = vunpack.c.l.b16 %v789
          %v810 = vunpack.c.h.b16 %v789
          %v811 = vunpack.c.l.b16 %v790
          %v812 = vunpack.c.h.b16 %v790
          %v813 = vunpack.c.l.b16 %v791
          %v814 = vunpack.c.h.b16 %v791
          %v815 = vunpack.c.l.b16 %v792
          %v816 = vunpack.c.h.b16 %v792
          %v817 = vpack.c.b16 %v801, %v801
          %v818 = vpack.c.b16 %v802, %v802
          %v819 = vpack.c.b16 %v803, %v803
          %v820 = vpack.c.b16 %v804, %v804
          %v821 = vpack.c.b16 %v805, %v805
          %v822 = vpack.c.b16 %v806, %v806
          %v823 = vpack.c.b16 %v807, %v807
          %v824 = vpack.c.b16 %v808, %v808
          %v825 = vpack.c.b16 %v809, %v809
          %v826 = vpack.c.b16 %v810, %v810
          %v827 = vpack.c.b16 %v811, %v811
          %v828 = vpack.c.b16 %v812, %v812
          %v829 = vpack.c.b16 %v813, %v813
          %v830 = vpack.c.b16 %v814, %v814
          %v831 = vpack.c.b16 %v815, %v815
          %v832 = vpack.c.b16 %v816, %v816
          %849 = vst [vmem:[%s376] sm:$0xf] %v817
          %850 = vst [vmem:[%s376 + $0x4] sm:$0xf] %v818
          %851 = vst [vmem:[%s376 + $0x8] sm:$0xf] %v819
          %852 = vst [vmem:[%s376 + $0xc] sm:$0xf] %v820
          %853 = vst [vmem:[%s376 + $0x10] sm:$0xf] %v821
          %854 = vst [vmem:[%s376 + $0x14] sm:$0xf] %v822
          %855 = vst [vmem:[%s376 + $0x18] sm:$0xf] %v823
          %856 = vst [vmem:[%s376 + $0x1c] sm:$0xf] %v824
          %857 = vst [vmem:[%s376 + $0x20] sm:$0xf] %v825
          %858 = vst [vmem:[%s376 + $0x24] sm:$0xf] %v826
          %859 = vst [vmem:[%s376 + $0x28] sm:$0xf] %v827
          %860 = vst [vmem:[%s376 + $0x2c] sm:$0xf] %v828
          %861 = vst [vmem:[%s376 + $0x30] sm:$0xf] %v829
          %862 = vst [vmem:[%s376 + $0x34] sm:$0xf] %v830
          %863 = vst [vmem:[%s376 + $0x38] sm:$0xf] %v831
          %864 = vst [vmem:[%s376 + $0x3c] sm:$0xf] %v832
        $region85: #{_compute_light_out.3} parent=68 // pred_fallthru
          _
        %s865 = smul.u32 16, %s32
        %p866 = scmp.lt.s32.totalorder %s865, 47
        %s867 = scalar_select %p866, %s865, 47
        %s868 = smul.addr %s867, 8
        %s869 = scalar_lea.vmem %s5, %s868
        %s870 = smul.u32 16, %s32
        %p871 = scmp.lt.s32.totalorder %s870, 47
        %s872 = scalar_select %p871, %s870, 47
        %s873 = smul.addr %s872, 4
        %s874 = scalar_lea.vmem %s6, %s873
        // Predicated region
        $region86: #{_compute_light_out.3} parent=68 // pred_check
          %p875 = pneg %p139
        $region87: #{_compute_light_out.3} parent=68 // pred_check_branch
          %877 = sbr.rel (%p875) target = $region89
        $region88: #{_compute_light_out.3} parent=68 // pred_region
          %s878 = smul.u32 16, %s32
        $region89: #{_compute_light_out.3} parent=68 // pred_fallthru
          _
        // Predicated region
        $region90: #{_compute_light_out.3} parent=68 // pred_check
          %p879 = pneg %p165
        $region91: #{_compute_light_out.3} parent=68 // pred_check_branch
          %881 = sbr.rel (%p879) target = $region93
        $region92: #{_compute_light_out.3} parent=68 // pred_region
          %s882 = smul.u32 16, %s32
        $region93: #{_compute_light_out.3} parent=68 // pred_fallthru
          _
      $region69: #{_compute_light_out.3} parent=5 // pred_fallthru
        _
      %p883 = scmp.le.s32.totalorder 2, %s23
      // Predicated region
      $region94: #{_compute_light_out.3} parent=5 // pred_check
        %p884 = pneg %p883
      $region95: #{_compute_light_out.3} parent=5 // pred_check_branch
        %886 = sbr.rel (%p884) target = $region97
      $region96: #{_compute_light_out.3} parent=5 // pred_region
        %s887 = ssub.s32 %s23, 2
        // Predicated region
        $region98: #{_compute_light_out.3} parent=96 // pred_check
          %p888 = pneg %p145
        $region99: #{_compute_light_out.3} parent=96 // pred_check_branch
          %890 = sbr.rel (%p888) target = $region101
        $region100: #{_compute_light_out.3} parent=96 // pred_region
          %s891 = smul.u32 16, %s34
          %p892 = scmp.lt.s32.totalorder %s891, 47
          %s893 = scalar_select %p892, %s891, 47
          %s894 = smul.addr %s893, 8
          %s895 = scalar_lea.vmem %s5, %s894
        $region101: #{_compute_light_out.3} parent=96 // pred_fallthru
          _
        // Predicated region
        $region102: #{_compute_light_out.3} parent=96 // pred_check
          %p896 = pneg %p171
        $region103: #{_compute_light_out.3} parent=96 // pred_check_branch
          %898 = sbr.rel (%p896) target = $region105
        $region104: #{_compute_light_out.3} parent=96 // pred_region
          %s899 = smul.u32 16, %s34
          %p900 = scmp.lt.s32.totalorder %s899, 47
          %s901 = scalar_select %p900, %s899, 47
          %s902 = smul.addr %s901, 4
          %s903 = scalar_lea.vmem %s6, %s902
        $region105: #{_compute_light_out.3} parent=96 // pred_fallthru
          _
      $region97: #{_compute_light_out.3} parent=5 // pred_fallthru
        _
    $region6: #{_compute_light_out.3} parent=1 // loop_footer
      %s27 = sadd.s32 1, %s23
    $region7: #{_compute_light_out.3} parent=1 // loop_footer_branch
      %22 = sbr.rel target = $region3
    $region8: #{_compute_light_out.3} parent=1 // loop_exit
      _

</llo_original>
